<compile_context>
chip_gen: v5e
topology: v5e:2x2
jax: 0.10.0
libtpu: 0.0.40
codegen_flags: <defaults>
</compile_context>

<pallas_src>
import functools

import jax
import jax.numpy as jnp
from jax import lax
from jax.experimental import pallas as pl
from jax.experimental.pallas import tpu as pltpu


def _round_up(x, m):
    return ((x + m - 1) // m) * m


def _pick_block(n, max_block):
    """Multiple-of-8 row block <= max_block with bounded padding waste."""
    bn = min(max_block, _round_up(n, 8))
    bn = max(8, (bn // 8) * 8)
    while bn > 64 and (-n) % bn >= bn // 2:
        bn = max(8, ((bn // 2) // 8) * 8)
    return bn


def _sigmoid(x):
    return 1.0 / (1.0 + jnp.exp(-x))


# ---------------------------------------------------------------------------
# 1) Char-CNN embedding (the `embedding` submodule of ELMo), fully fused.
#    gather + every conv tap = ONE lane-dense MXU matmul per row block.
# ---------------------------------------------------------------------------
def _cnn_embed_kernel(conv_meta, L, V, sum_oc, oc_out_pad, x_dtype,
                      ids_ref, w_ref, b_ref, out_ref):
    ids = ids_ref[...]                                        # (bn, L) int32
    bn = ids.shape[0]
    # One-hot via ONE vectorized compare (row order v*L + l matches w_ref rows).
    iota_v = lax.broadcasted_iota(jnp.int32, (bn, V, L), 1)
    onehot = (iota_v == ids[:, None, :]).astype(x_dtype).reshape(bn, V * L)
    y = jnp.dot(onehot, w_ref[...],
                preferred_element_type=jnp.float32)           # (bn, C_pad)

    # Max-over-time pooling per conv: balanced pairwise tree (log2(T) depth).
    parts = []
    off = 0
    for (k, oc, oc_al) in conv_meta:
        T = L - k + 1
        vals = [y[:, off + t * oc_al: off + t * oc_al + oc_al] for t in range(T)]
        while len(vals) > 1:
            nxt = [jnp.maximum(a, b) for a, b in zip(vals[0::2], vals[1::2])]
            if len(vals) % 2:
                nxt.append(vals[-1])
            vals = nxt
        parts.append(vals[0][:, :oc])      # drop per-conv alignment pad columns
        off += T * oc_al
    res = jnp.concatenate(parts, axis=1)                      # (bn, sum_oc)
    if oc_out_pad > sum_oc:                                   # lane-pad to 128*
        res = jnp.concatenate(
            [res, jnp.zeros((bn, oc_out_pad - sum_oc), jnp.float32)], axis=1)
    # Bias hoisted after max (bias is time-invariant); one full-width store.
    out_ref[...] = (res + b_ref[...]).astype(out_ref.dtype)


def _build_cnn_combined_weight(emb_table, conv_ws, conv_bs, kernel_output, L,
                               compute_dtype):
    """Fold embedding table + Conv1d taps into one (V*L, C_pad) matrix.

    Row r = v*L + l  <->  "character v at char-position l".
    Column (per conv i) = off_i + t*oc_al_i + o  <->  window t, out-channel o.
    """
    V, _ = emb_table.shape
    cols, conv_meta = [], []
    for (k, oc), W in zip(kernel_output, conv_ws):            # W: (k, E, oc)
        T = L - k + 1
        # Lane-align per-window slices when oc is already >= 128 (production).
        oc_al = oc if oc < 128 else _round_up(oc, 128)
        M = jnp.einsum('ve,keo->kvo', emb_table, W)           # (k, V, oc)
        l_idx = jnp.arange(L)[:, None]                        # (L, 1)
        t_idx = jnp.arange(T)[None, :]                        # (1, T)
        j = l_idx - t_idx                                     # tap index l - t
        valid = (j >= 0) & (j < k)
        blk = M[jnp.clip(j, 0, k - 1)]                        # (L, T, V, oc)
        blk = jnp.where(valid[:, :, None, None], blk, 0.0)
        blk = jnp.transpose(blk, (2, 0, 1, 3))                # (V, L, T, oc)
        if oc_al > oc:
            blk = jnp.pad(blk, ((0, 0), (0, 0), (0, 0), (0, oc_al - oc)))
        cols.append(blk.reshape(V * L, T * oc_al))
        conv_meta.append((k, oc, oc_al))
    w_comb = jnp.concatenate(cols, axis=1)                    # (V*L, C)
    c_pad = _round_up(w_comb.shape[1], 128)
    if c_pad != w_comb.shape[1]:
        w_comb = jnp.pad(w_comb, ((0, 0), (0, c_pad - w_comb.shape[1])))
    sum_oc = sum(oc for _, oc in kernel_output)
    oc_out_pad = _round_up(sum_oc, 128)
    bias = jnp.concatenate(conv_bs)
    bias = jnp.pad(bias, (0, oc_out_pad - sum_oc)).reshape(1, oc_out_pad)
    # TODO(synk): for production vocab/char-length on v7x (64 MiB VMEM), split the
    # trick into two matmuls (one-hot over V, then (bn, L*E) @ (L*E, C)) or tile the
    # K axis as a grid reduction; at demo sizes the resident weight is ~3 MB.
    return (w_comb.astype(compute_dtype), bias.astype(jnp.float32),
            tuple(conv_meta), sum_oc, oc_out_pad)


def cnn_embedding_forward(char_batch, cnn_prep, *, block_n=512,
                          compute_dtype=jnp.float32):
    """char ids (B, S, L) int32 -> (B, S, sum_oc) float32 (eval mode)."""
    B, S, L = char_batch.shape
    V = cnn_prep['V']
    sum_oc, oc_out_pad = cnn_prep['sum_oc'], cnn_prep['oc_out_pad']
    w_comb, bias, conv_meta = cnn_prep['w'], cnn_prep['b'], cnn_prep['conv_meta']
    c_pad = w_comb.shape[1]

    ids = char_batch.reshape(B * S, L).astype(jnp.int32)
    N = B * S
    bn = _pick_block(N, block_n)
    n_pad = _round_up(N, bn)
    if n_pad != N:
        ids = jnp.pad(ids, ((0, n_pad - N), (0, 0)))          # pad rows = char 0

    out = pl.pallas_call(
        functools.partial(_cnn_embed_kernel, conv_meta, L, V,
                          sum_oc, oc_out_pad, compute_dtype),
        out_shape=jax.ShapeDtypeStruct((n_pad, oc_out_pad), jnp.float32),
        grid_spec=pltpu.PrefetchScalarGridSpec(
            num_scalar_prefetch=0,
            grid=(n_pad // bn,),
            in_specs=[pl.BlockSpec((bn, L), lambda i: (i, 0)),
                      pl.BlockSpec((V * L, c_pad), lambda i: (0, 0)),
                      pl.BlockSpec((1, oc_out_pad), lambda i: (0, 0))],
            out_specs=pl.BlockSpec((bn, oc_out_pad), lambda i: (i, 0)),
        ),
        compiler_params=pltpu.CompilerParams(
            dimension_semantics=("parallel",)),
    )(ids, w_comb, bias)
    return out[:N, :sum_oc].reshape(B, S, sum_oc)


# ---------------------------------------------------------------------------
# 2) Generic linear kernel (fused LSTM input projections + the shared fc head).
#    Output N padded to 128 lanes (unmasked stores); bf16-capable MXU inputs.
# ---------------------------------------------------------------------------
def _linear_kernel(cdt, x_ref, w_ref, b_ref, o_ref):
    o_ref[...] = (jnp.dot(x_ref[...].astype(cdt), w_ref[...],
                          preferred_element_type=jnp.float32)
                  + b_ref[...]).astype(o_ref.dtype)


def linear(x, w, b, *, block_m=512, compute_dtype=jnp.float32):
    """(M, K) @ (K, N) + b -> (M, N) float32; lane-dense output per block."""
    M, K = x.shape
    N = w.shape[1]
    n_pad = _round_up(N, 128)
    if n_pad != N:
        w = jnp.pad(w, ((0, 0), (0, n_pad - N)))
        b = jnp.pad(b, (0, n_pad - N))
    w = w.astype(compute_dtype)
    bm = _pick_block(M, block_m)
    m_pad = _round_up(M, bm)
    if m_pad != M:
        x = jnp.pad(x, ((0, m_pad - M), (0, 0)))
    out = pl.pallas_call(
        functools.partial(_linear_kernel, compute_dtype),
        out_shape=jax.ShapeDtypeStruct((m_pad, n_pad), jnp.float32),
        grid_spec=pltpu.PrefetchScalarGridSpec(
            num_scalar_prefetch=0,
            grid=(m_pad // bm,),
            in_specs=[pl.BlockSpec((bm, K), lambda i: (i, 0)),
                      pl.BlockSpec((K, n_pad), lambda i: (0, 0)),
                      pl.BlockSpec((1, n_pad), lambda i: (0, 0))],
            out_specs=pl.BlockSpec((bm, n_pad), lambda i: (i, 0)),
        ),
        compiler_params=pltpu.CompilerParams(
            dimension_semantics=("parallel",)),
    )(x, w, b.reshape(1, n_pad))
    return out[:M, :N]


# ---------------------------------------------------------------------------
# 3) Fused bidirectional LSTM recurrence kernel.
#    Grid = (direction=2 "parallel", time-chunks "arbitrary").  The backward
#    direction's gx is time-reversed in the wrapper so the kernel body is
#    direction-agnostic.  h/c live in VMEM scratch across time chunks; the
#    per-timestep loop is a fori_loop inside the kernel (no per-step grid
#    overhead).  Output hidden dim is lane-padded to Hp (multiple of 128).
# ---------------------------------------------------------------------------
def _bilstm_kernel(H, Hp, Tc, cdt, gx_ref, whh_ref, out_ref, h_ref, c_ref):
    @pl.when(pl.program_id(1) == 0)       # start of this direction's sequence
    def _():
        h_ref[...] = jnp.zeros_like(h_ref)
        c_ref[...] = jnp.zeros_like(c_ref)

    whh = whh_ref[...].astype(cdt)                            # (Hp, 4H)
    B = h_ref.shape[0]
    zpad = jnp.zeros((B, Hp - H), jnp.float32) if Hp > H else None

    def step(tp, carry):
        h_pad, c = carry
        gates = gx_ref[tp] + jnp.dot(h_pad.astype(cdt), whh,
                                     preferred_element_type=jnp.float32)
        # Gate columns pre-reordered to [i, f, o, g]: sigmoid on a contiguous
        # 3H block, tanh on a contiguous H block.
        sfo = _sigmoid(gates[:, :3 * H])
        g = jnp.tanh(gates[:, 3 * H:])
        i_g = sfo[:, 0 * H:1 * H]
        f_g = sfo[:, 1 * H:2 * H]
        o_g = sfo[:, 2 * H:3 * H]
        c_new = f_g * c + i_g * g
        h_new = o_g * jnp.tanh(c_new)
        if Hp > H:
            h_pad_new = jnp.concatenate([h_new, zpad], axis=1)
        else:
            h_pad_new = h_new
        out_ref[tp] = h_pad_new.astype(out_ref.dtype)         # lane-dense store
        return h_pad_new, c_new

    h_fin, c_fin = lax.fori_loop(0, Tc, step, (h_ref[...], c_ref[...]),
                                 unroll=True if Tc <= 16 else False)
    h_ref[...] = h_fin
    c_ref[...] = c_fin


def bilstm_layer(x, layer_prep, *, time_chunk=128, compute_dtype=jnp.float32):
    """x: (T, B, in_dim) float32  ->  (T, B, 2H) float32 (fwd ++ bwd)."""
    T, B, in_dim = x.shape
    H, Hp = layer_prep['H'], layer_prep['Hp']

    # Fused input projection for BOTH directions: one (T*B, in) @ (in, 8H) matmul.
    gx = linear(x.reshape(T * B, in_dim), layer_prep['w_ih_t'], layer_prep['b'],
                compute_dtype=compute_dtype).reshape(T, B, 8 * H)
    gx_f = gx[..., :4 * H]
    gx_b = jnp.flip(gx[..., 4 * H:], axis=0)   # bwd walks the sequence backwards

    Tc = min(time_chunk, T)
    T_pad = _round_up(T, Tc)
    gx2 = jnp.stack([gx_f, gx_b], axis=0)                      # (2, T, B, 4H)
    if T_pad != T:
        gx2 = jnp.pad(gx2, ((0, 0), (0, T_pad - T), (0, 0), (0, 0)))
    nc = T_pad // Tc

    out = pl.pallas_call(
        functools.partial(_bilstm_kernel, H, Hp, Tc, compute_dtype),
        out_shape=jax.ShapeDtypeStruct((2, T_pad, B, Hp), jnp.float32),
        grid_spec=pltpu.PrefetchScalarGridSpec(
            num_scalar_prefetch=0,
            grid=(2, nc),
            in_specs=[pl.BlockSpec((None, Tc, B, 4 * H),
                                   lambda d, i: (d, i, 0, 0)),
                      pl.BlockSpec((None, Hp, 4 * H),
                                   lambda d, i: (d, 0, 0))],
            out_specs=pl.BlockSpec((None, Tc, B, Hp),
                                   lambda d, i: (d, i, 0, 0)),
            scratch_shapes=[pltpu.VMEM((B, Hp), jnp.float32),   # h carry
                            pltpu.VMEM((B, H), jnp.float32)],   # c carry
        ),
        compiler_params=pltpu.CompilerParams(
            # direction axis parallel (both v7x TensorCores busy), time arbitrary
            dimension_semantics=("parallel", "arbitrary")),
    )(gx2, layer_prep['w_hh_t'])

    out_f = out[0, :T, :, :H]
    out_b = jnp.flip(out[1, :T, :, :H], axis=0)
    return jnp.concatenate([out_f, out_b], axis=-1)            # (T, B, 2H)


# ---------------------------------------------------------------------------
# Parameter preparation (done ONCE): weight transposes, direction fusion,
# gate reorder (i,f,g,o) -> (i,f,o,g), CNN weight folding, dtype casting.
# ---------------------------------------------------------------------------
def _reorder_gates(w, H, axis=0):
    idx = [(0, H), (H, 2 * H), (3 * H, 4 * H), (2 * H, 3 * H)]
    parts = [lax.slice_in_dim(w, a, b, axis=axis) for a, b in idx]
    return jnp.concatenate(parts, axis=axis)


def prepare_elmo_params(params, char_len, *, compute_dtype=jnp.float32):
    w_comb, cnn_bias, conv_meta, sum_oc, oc_out_pad = _build_cnn_combined_weight(
        params['emb_table'], params['conv_ws'], params['conv_bs'],
        params['kernel_output'], char_len, compute_dtype)
    prep = {'compute_dtype': compute_dtype,
            'cnn': dict(w=w_comb, b=cnn_bias, conv_meta=conv_meta,
                        sum_oc=sum_oc, oc_out_pad=oc_out_pad,
                        V=params['emb_table'].shape[0], L=char_len)}

    H = params['lstm'][0]['fwd']['w_hh'].shape[1]
    Hp = H if H % 128 == 0 else _round_up(H, 128)
    layers = []
    for layer in params['lstm']:
        w_ih_t_parts, b_parts, whh_parts = [], [], []
        for key in ('fwd', 'bwd'):
            p = layer[key]
            w_ih_t_parts.append(_reorder_gates(p['w_ih'], H, axis=0).T)  # (in,4H)
            b_parts.append(_reorder_gates(p['b_ih'] + p['b_hh'], H, axis=0))
            whh_t = _reorder_gates(p['w_hh'], H, axis=0).T               # (H, 4H)
            whh_parts.append(jnp.pad(whh_t, ((0, Hp - H), (0, 0))))
        layers.append(dict(
            H=H, Hp=Hp,
            w_ih_t=jnp.concatenate(w_ih_t_parts, axis=1),                # (in, 8H)
            b=jnp.concatenate(b_parts),                                  # (8H,)
            w_hh_t=jnp.stack(whh_parts, axis=0).astype(compute_dtype)))  # (2,Hp,4H)
    prep['lstm'] = layers
    prep['fc_w_t'] = params['fc_w'].T                                    # (H, O)
    prep['fc_b'] = params['fc_b']
    return prep


# ---------------------------------------------------------------------------
# ELMo forward (eval mode).
# ---------------------------------------------------------------------------
def elmo_forward(char_batch, prep):
    """Returns (forward_prediction, backward_prediction), each (S, B, output_dim)."""
    cdt = prep['compute_dtype']
    emb = cnn_embedding_forward(char_batch, prep['cnn'], compute_dtype=cdt)
    # TODO(synk): nn.Dropout(0.3) (ELMo) and Dropout(0.5) (CNNEmbedding) are
    # identity in eval mode; training-mode random masking is omitted.
    x = jnp.transpose(emb, (1, 0, 2))                                    # permute(1,0,2)
    layer_in = x
    for layer in prep['lstm']:                       # 2 layers, bidirectional
        layer_in = bilstm_layer(layer_in, layer, compute_dtype=cdt)

    # output.reshape(seq, batch, -1, 2) + interleaved split, exactly as in spec.
    T, B = layer_in.shape[:2]
    H = prep['lstm'][-1]['H']
    out4 = layer_in.reshape(T, B, H, 2)
    fwd_h, bwd_h = out4[..., 0], out4[..., 1]
    stacked = jnp.concatenate([fwd_h.reshape(T * B, H),
                               bwd_h.reshape(T * B, H)], axis=0)
    pred = linear(stacked, prep['fc_w_t'], prep['fc_b'], compute_dtype=cdt)
    O = prep['fc_w_t'].shape[1]
    forward_prediction = pred[:T * B].reshape(T, B, O)
    backward_prediction = pred[T * B:].reshape(T, B, O)
    return forward_prediction, backward_prediction


# ---------------------------------------------------------------------------
# Pure-JAX reference (matches the PyTorch module in eval mode).
# ---------------------------------------------------------------------------
def _ref_cnn_embedding(char_batch, emb_table, conv_ws, conv_bs, kernel_output):
    a = jnp.take(emb_table, char_batch, axis=0)                          # (B,S,L,E)
    B, S, L, E = a.shape
    xb = a.reshape(B * S, L, E)
    outs = []
    for (k, oc), W, bias in zip(kernel_output, conv_ws, conv_bs):
        T = L - k + 1
        windows = jnp.stack([xb[:, t:t + k, :] for t in range(T)], axis=1)
        conv = jnp.einsum('ntjc,jco->nto', windows, W) + bias.reshape(1, 1, oc)
        outs.append(conv.max(axis=1))
    return jnp.concatenate(outs, axis=1).reshape(B, S, -1)


def _ref_lstm_dir(x_seq, p, *, reverse):
    T, B, _ = x_seq.shape
    H = p['w_hh'].shape[1]
    xs = jnp.flip(x_seq, axis=0) if reverse else x_seq

    def step(carry, x_t):
        h, c = carry
        gates = x_t @ p['w_ih'].T + h @ p['w_hh'].T + p['b_ih'] + p['b_hh']
        i = _sigmoid(gates[:, 0 * H:1 * H])
        f = _sigmoid(gates[:, 1 * H:2 * H])
        g = jnp.tanh(gates[:, 2 * H:3 * H])
        o = _sigmoid(gates[:, 3 * H:4 * H])
        c = f * c + i * g
        h = o * jnp.tanh(c)
        return (h, c), h

    init = (jnp.zeros((B, H), jnp.float32), jnp.zeros((B, H), jnp.float32))
    _, hs = jax.lax.scan(step, init, xs)
    return jnp.flip(hs, axis=0) if reverse else hs


def ref_elmo(char_batch, params):
    emb = _ref_cnn_embedding(char_batch, params['emb_table'], params['conv_ws'],
                             params['conv_bs'], params['kernel_output'])
    x = jnp.transpose(emb, (1, 0, 2))
    layer_in = x
    for layer in params['lstm']:
        fwd = _ref_lstm_dir(layer_in, layer['fwd'], reverse=False)
        bwd = _ref_lstm_dir(layer_in, layer['bwd'], reverse=True)
        layer_in = jnp.concatenate([fwd, bwd], axis=-1)
    T, B = layer_in.shape[:2]
    out4 = layer_in.reshape(T, B, -1, 2)
    fwd_h, bwd_h = out4[..., 0], out4[..., 1]
    fp = fwd_h @ params['fc_w'].T + params['fc_b']
    bp = bwd_h @ params['fc_w'].T + params['fc_b']
    return fp, bp


if __name__ == "__main__":
    key = jax.random.PRNGKey(0)
    B, S, L = 2, 8, 16                 # batch, seq_len, max_character_len
    V, E = 50, 16                      # character_set_size, char emb dim
    kernel_output = [(2, 16), (3, 16), (4, 32)]   # (kernel_size, out_channels)
    emb_dim = sum(oc for _, oc in kernel_output)  # 64 -> ELMo emb_dim
    H = 32                             # enc_hid_dim
    O = 32                             # output_dim
    n_layers = 2

    kit = iter(jax.random.split(key, 40))
    char_batch = jax.random.randint(next(kit), (B, S, L), 0, V, dtype=jnp.int32)

    emb_table = 0.1 * jax.random.normal(next(kit), (V, E), jnp.float32)
    emb_table = emb_table.at[0].set(0.0)          # padding_idx=0

    conv_ws, conv_bs = [], []
    for (k, oc) in kernel_output:
        # PyTorch Conv1d weight layout is (oc, E, k); convert to (k, E, oc).
        wt = 0.1 * jax.random.normal(next(kit), (oc, E, k), jnp.float32)
        conv_ws.append(jnp.transpose(wt, (2, 1, 0)))
        conv_bs.append(0.1 * jax.random.normal(next(kit), (oc,), jnp.float32))

    lstm_params = []
    in_dim = emb_dim
    for _ in range(n_layers):
        layer = {}
        for d in ('fwd', 'bwd'):
            layer[d] = dict(
                w_ih=0.1 * jax.random.normal(next(kit), (4 * H, in_dim), jnp.float32),
                w_hh=0.1 * jax.random.normal(next(kit), (4 * H, H), jnp.float32),
                b_ih=0.1 * jax.random.normal(next(kit), (4 * H,), jnp.float32),
                b_hh=0.1 * jax.random.normal(next(kit), (4 * H,), jnp.float32))
        lstm_params.append(layer)
        in_dim = 2 * H

    params = dict(emb_table=emb_table, conv_ws=conv_ws, conv_bs=conv_bs,
                  kernel_output=kernel_output, lstm=lstm_params,
                  fc_w=0.1 * jax.random.normal(next(kit), (O, H), jnp.float32),
                  fc_b=0.1 * jax.random.normal(next(kit), (O,), jnp.float32))

    # NOTE: pass compute_dtype=jnp.bfloat16 on v5e/v6e/v7x for MXU-native matmul
    # inputs (per perf review); the demo stays f32 so the reference check is tight.
    prep = prepare_elmo_params(params, char_len=L, compute_dtype=jnp.float32)
    run = jax.jit(lambda cb: elmo_forward(cb, prep))

    fwd_pred, bwd_pred = jax.block_until_ready(run(char_batch))

    rf, rb = ref_elmo(char_batch, params)
    assert fwd_pred.shape == (S, B, O) and bwd_pred.shape == (S, B, O), \
        (fwd_pred.shape, bwd_pred.shape)
    assert jnp.allclose(fwd_pred, rf, atol=2e-3, rtol=2e-3), \
        float(jnp.max(jnp.abs(fwd_pred - rf)))
    assert jnp.allclose(bwd_pred, rb, atol=2e-3, rtol=2e-3), \
        float(jnp.max(jnp.abs(bwd_pred - rb)))
    print("KERNEL_OK")
</pallas_src>

<mosaic_0001>
module attributes {stable_mosaic.version = 11 : i64} {
  func.func @_cnn_embed_kernel(%arg0: i32, %arg1: memref<16x16xi32, #tpu.memory_space<vmem>>, %arg2: memref<800x896xf32, #tpu.memory_space<vmem>>, %arg3: memref<1x128xf32, #tpu.memory_space<vmem>>, %arg4: memref<16x128xf32, #tpu.memory_space<vmem>>) attributes {dimension_semantics = [#tpu.dimension_semantics<parallel>], iteration_bounds = array<i64: 1>, scalar_prefetch = 0 : i64, scratch_operands = 0 : i64, tpu.core_type = #tpu.core_type<tc>, window_params = [{transform_indices = @transform_0, window_bounds = array<i64: 16, 16>}, {pipeline_mode = #tpu.pipeline_mode<synchronous>, transform_indices = @transform_1, window_bounds = array<i64: 800, 896>}, {pipeline_mode = #tpu.pipeline_mode<synchronous>, transform_indices = @transform_2, window_bounds = array<i64: 1, 128>}, {transform_indices = @transform_3, window_bounds = array<i64: 16, 128>}]} {
    %c0 = arith.constant 0 : index
    %c0_0 = arith.constant 0 : index
    %0 = vector.load %arg1[%c0, %c0_0] : memref<16x16xi32, #tpu.memory_space<vmem>>, vector<16x16xi32>
    %1 = tpu.iota {dimensions = array<i32: 1>} : vector<16x50x16xi32>
    %2 = vector.shape_cast %0 : vector<16x16xi32> to vector<16x1x16xi32>
    %3 = vector.broadcast %2 : vector<16x1x16xi32> to vector<16x50x16xi32>
    %4 = arith.cmpi eq, %1, %3 : vector<16x50x16xi32>
    %5 = arith.extui %4 : vector<16x50x16xi1> to vector<16x50x16xi32>
    %6 = arith.sitofp %5 : vector<16x50x16xi32> to vector<16x50x16xf32>
    %7 = vector.shape_cast %6 : vector<16x50x16xf32> to vector<16x800xf32>
    %c0_1 = arith.constant 0 : index
    %c0_2 = arith.constant 0 : index
    %8 = vector.load %arg2[%c0_1, %c0_2] : memref<800x896xf32, #tpu.memory_space<vmem>>, vector<800x896xf32>
    %cst = arith.constant dense<0.000000e+00> : vector<16x896xf32>
    %9 = tpu.matmul %7, %8, %cst {dimension_numbers = #tpu.dot_dimension_numbers<[1], [0], [0], [1], [0, 0, 1, 1], [], []>} : vector<16x800xf32>, vector<800x896xf32>, vector<16x896xf32> -> vector<16x896xf32>
    %10 = vector.extract_strided_slice %9 {offsets = [0, 0], sizes = [16, 16], strides = [1, 1]} : vector<16x896xf32> to vector<16x16xf32>
    %11 = vector.extract_strided_slice %9 {offsets = [0, 16], sizes = [16, 16], strides = [1, 1]} : vector<16x896xf32> to vector<16x16xf32>
    %12 = vector.extract_strided_slice %9 {offsets = [0, 32], sizes = [16, 16], strides = [1, 1]} : vector<16x896xf32> to vector<16x16xf32>
    %13 = vector.extract_strided_slice %9 {offsets = [0, 48], sizes = [16, 16], strides = [1, 1]} : vector<16x896xf32> to vector<16x16xf32>
    %14 = vector.extract_strided_slice %9 {offsets = [0, 64], sizes = [16, 16], strides = [1, 1]} : vector<16x896xf32> to vector<16x16xf32>
    %15 = vector.extract_strided_slice %9 {offsets = [0, 80], sizes = [16, 16], strides = [1, 1]} : vector<16x896xf32> to vector<16x16xf32>
    %16 = vector.extract_strided_slice %9 {offsets = [0, 96], sizes = [16, 16], strides = [1, 1]} : vector<16x896xf32> to vector<16x16xf32>
    %17 = vector.extract_strided_slice %9 {offsets = [0, 112], sizes = [16, 16], strides = [1, 1]} : vector<16x896xf32> to vector<16x16xf32>
    %18 = vector.extract_strided_slice %9 {offsets = [0, 128], sizes = [16, 16], strides = [1, 1]} : vector<16x896xf32> to vector<16x16xf32>
    %19 = vector.extract_strided_slice %9 {offsets = [0, 144], sizes = [16, 16], strides = [1, 1]} : vector<16x896xf32> to vector<16x16xf32>
    %20 = vector.extract_strided_slice %9 {offsets = [0, 160], sizes = [16, 16], strides = [1, 1]} : vector<16x896xf32> to vector<16x16xf32>
    %21 = vector.extract_strided_slice %9 {offsets = [0, 176], sizes = [16, 16], strides = [1, 1]} : vector<16x896xf32> to vector<16x16xf32>
    %22 = vector.extract_strided_slice %9 {offsets = [0, 192], sizes = [16, 16], strides = [1, 1]} : vector<16x896xf32> to vector<16x16xf32>
    %23 = vector.extract_strided_slice %9 {offsets = [0, 208], sizes = [16, 16], strides = [1, 1]} : vector<16x896xf32> to vector<16x16xf32>
    %24 = vector.extract_strided_slice %9 {offsets = [0, 224], sizes = [16, 16], strides = [1, 1]} : vector<16x896xf32> to vector<16x16xf32>
    %25 = arith.maximumf %10, %11 : vector<16x16xf32>
    %26 = arith.maximumf %12, %13 : vector<16x16xf32>
    %27 = arith.maximumf %14, %15 : vector<16x16xf32>
    %28 = arith.maximumf %16, %17 : vector<16x16xf32>
    %29 = arith.maximumf %18, %19 : vector<16x16xf32>
    %30 = arith.maximumf %20, %21 : vector<16x16xf32>
    %31 = arith.maximumf %22, %23 : vector<16x16xf32>
    %32 = arith.maximumf %25, %26 : vector<16x16xf32>
    %33 = arith.maximumf %27, %28 : vector<16x16xf32>
    %34 = arith.maximumf %29, %30 : vector<16x16xf32>
    %35 = arith.maximumf %31, %24 : vector<16x16xf32>
    %36 = arith.maximumf %32, %33 : vector<16x16xf32>
    %37 = arith.maximumf %34, %35 : vector<16x16xf32>
    %38 = arith.maximumf %36, %37 : vector<16x16xf32>
    %39 = vector.extract_strided_slice %9 {offsets = [0, 240], sizes = [16, 16], strides = [1, 1]} : vector<16x896xf32> to vector<16x16xf32>
    %40 = vector.extract_strided_slice %9 {offsets = [0, 256], sizes = [16, 16], strides = [1, 1]} : vector<16x896xf32> to vector<16x16xf32>
    %41 = vector.extract_strided_slice %9 {offsets = [0, 272], sizes = [16, 16], strides = [1, 1]} : vector<16x896xf32> to vector<16x16xf32>
    %42 = vector.extract_strided_slice %9 {offsets = [0, 288], sizes = [16, 16], strides = [1, 1]} : vector<16x896xf32> to vector<16x16xf32>
    %43 = vector.extract_strided_slice %9 {offsets = [0, 304], sizes = [16, 16], strides = [1, 1]} : vector<16x896xf32> to vector<16x16xf32>
    %44 = vector.extract_strided_slice %9 {offsets = [0, 320], sizes = [16, 16], strides = [1, 1]} : vector<16x896xf32> to vector<16x16xf32>
    %45 = vector.extract_strided_slice %9 {offsets = [0, 336], sizes = [16, 16], strides = [1, 1]} : vector<16x896xf32> to vector<16x16xf32>
    %46 = vector.extract_strided_slice %9 {offsets = [0, 352], sizes = [16, 16], strides = [1, 1]} : vector<16x896xf32> to vector<16x16xf32>
    %47 = vector.extract_strided_slice %9 {offsets = [0, 368], sizes = [16, 16], strides = [1, 1]} : vector<16x896xf32> to vector<16x16xf32>
    %48 = vector.extract_strided_slice %9 {offsets = [0, 384], sizes = [16, 16], strides = [1, 1]} : vector<16x896xf32> to vector<16x16xf32>
    %49 = vector.extract_strided_slice %9 {offsets = [0, 400], sizes = [16, 16], strides = [1, 1]} : vector<16x896xf32> to vector<16x16xf32>
    %50 = vector.extract_strided_slice %9 {offsets = [0, 416], sizes = [16, 16], strides = [1, 1]} : vector<16x896xf32> to vector<16x16xf32>
    %51 = vector.extract_strided_slice %9 {offsets = [0, 432], sizes = [16, 16], strides = [1, 1]} : vector<16x896xf32> to vector<16x16xf32>
    %52 = vector.extract_strided_slice %9 {offsets = [0, 448], sizes = [16, 16], strides = [1, 1]} : vector<16x896xf32> to vector<16x16xf32>
    %53 = arith.maximumf %39, %40 : vector<16x16xf32>
    %54 = arith.maximumf %41, %42 : vector<16x16xf32>
    %55 = arith.maximumf %43, %44 : vector<16x16xf32>
    %56 = arith.maximumf %45, %46 : vector<16x16xf32>
    %57 = arith.maximumf %47, %48 : vector<16x16xf32>
    %58 = arith.maximumf %49, %50 : vector<16x16xf32>
    %59 = arith.maximumf %51, %52 : vector<16x16xf32>
    %60 = arith.maximumf %53, %54 : vector<16x16xf32>
    %61 = arith.maximumf %55, %56 : vector<16x16xf32>
    %62 = arith.maximumf %57, %58 : vector<16x16xf32>
    %63 = arith.maximumf %60, %61 : vector<16x16xf32>
    %64 = arith.maximumf %62, %59 : vector<16x16xf32>
    %65 = arith.maximumf %63, %64 : vector<16x16xf32>
    %66 = vector.extract_strided_slice %9 {offsets = [0, 464], sizes = [16, 32], strides = [1, 1]} : vector<16x896xf32> to vector<16x32xf32>
    %67 = vector.extract_strided_slice %9 {offsets = [0, 496], sizes = [16, 32], strides = [1, 1]} : vector<16x896xf32> to vector<16x32xf32>
    %68 = vector.extract_strided_slice %9 {offsets = [0, 528], sizes = [16, 32], strides = [1, 1]} : vector<16x896xf32> to vector<16x32xf32>
    %69 = vector.extract_strided_slice %9 {offsets = [0, 560], sizes = [16, 32], strides = [1, 1]} : vector<16x896xf32> to vector<16x32xf32>
    %70 = vector.extract_strided_slice %9 {offsets = [0, 592], sizes = [16, 32], strides = [1, 1]} : vector<16x896xf32> to vector<16x32xf32>
    %71 = vector.extract_strided_slice %9 {offsets = [0, 624], sizes = [16, 32], strides = [1, 1]} : vector<16x896xf32> to vector<16x32xf32>
    %72 = vector.extract_strided_slice %9 {offsets = [0, 656], sizes = [16, 32], strides = [1, 1]} : vector<16x896xf32> to vector<16x32xf32>
    %73 = vector.extract_strided_slice %9 {offsets = [0, 688], sizes = [16, 32], strides = [1, 1]} : vector<16x896xf32> to vector<16x32xf32>
    %74 = vector.extract_strided_slice %9 {offsets = [0, 720], sizes = [16, 32], strides = [1, 1]} : vector<16x896xf32> to vector<16x32xf32>
    %75 = vector.extract_strided_slice %9 {offsets = [0, 752], sizes = [16, 32], strides = [1, 1]} : vector<16x896xf32> to vector<16x32xf32>
    %76 = vector.extract_strided_slice %9 {offsets = [0, 784], sizes = [16, 32], strides = [1, 1]} : vector<16x896xf32> to vector<16x32xf32>
    %77 = vector.extract_strided_slice %9 {offsets = [0, 816], sizes = [16, 32], strides = [1, 1]} : vector<16x896xf32> to vector<16x32xf32>
    %78 = vector.extract_strided_slice %9 {offsets = [0, 848], sizes = [16, 32], strides = [1, 1]} : vector<16x896xf32> to vector<16x32xf32>
    %79 = arith.maximumf %66, %67 : vector<16x32xf32>
    %80 = arith.maximumf %68, %69 : vector<16x32xf32>
    %81 = arith.maximumf %70, %71 : vector<16x32xf32>
    %82 = arith.maximumf %72, %73 : vector<16x32xf32>
    %83 = arith.maximumf %74, %75 : vector<16x32xf32>
    %84 = arith.maximumf %76, %77 : vector<16x32xf32>
    %85 = arith.maximumf %79, %80 : vector<16x32xf32>
    %86 = arith.maximumf %81, %82 : vector<16x32xf32>
    %87 = arith.maximumf %83, %84 : vector<16x32xf32>
    %88 = arith.maximumf %85, %86 : vector<16x32xf32>
    %89 = arith.maximumf %87, %78 : vector<16x32xf32>
    %90 = arith.maximumf %88, %89 : vector<16x32xf32>
    %91 = tpu.concatenate %38, %65, %90 in 1 : vector<16x16xf32>, vector<16x16xf32>, vector<16x32xf32> -> vector<16x64xf32>
    %cst_3 = arith.constant 0.000000e+00 : f32
    %92 = vector.broadcast %cst_3 : f32 to vector<16x64xf32>
    %93 = tpu.concatenate %91, %92 in 1 : vector<16x64xf32>, vector<16x64xf32> -> vector<16x128xf32>
    %c0_4 = arith.constant 0 : index
    %c0_5 = arith.constant 0 : index
    %94 = vector.load %arg3[%c0_4, %c0_5] : memref<1x128xf32, #tpu.memory_space<vmem>>, vector<1x128xf32>
    %95 = vector.broadcast %94 : vector<1x128xf32> to vector<16x128xf32>
    %96 = arith.addf %93, %95 : vector<16x128xf32>
    %c0_6 = arith.constant 0 : index
    %c0_7 = arith.constant 0 : index
    %97 = vector.load %arg4[%c0_6, %c0_7] : memref<16x128xf32, #tpu.memory_space<vmem>>, vector<16x128xf32>
    tpu.vector_store %arg4[%c0_6, %c0_7], %96 {strides = array<i32>} : memref<16x128xf32, #tpu.memory_space<vmem>>, vector<16x128xf32>,
    return
  }
  func.func @transform_0(%arg0: i32) -> (i32, i32) {
    %c0_i32 = arith.constant 0 : i32
    %c0_i32_0 = arith.constant 0 : i32
    return %arg0, %c0_i32 : i32, i32
  }
  func.func @transform_1(%arg0: i32) -> (i32, i32) {
    %c0_i32 = arith.constant 0 : i32
    %c0_i32_0 = arith.constant 0 : i32
    %c0_i32_1 = arith.constant 0 : i32
    return %c0_i32, %c0_i32_0 : i32, i32
  }
  func.func @transform_2(%arg0: i32) -> (i32, i32) {
    %c0_i32 = arith.constant 0 : i32
    %c0_i32_0 = arith.constant 0 : i32
    %c0_i32_1 = arith.constant 0 : i32
    return %c0_i32, %c0_i32_0 : i32, i32
  }
  func.func @transform_3(%arg0: i32) -> (i32, i32) {
    %c0_i32 = arith.constant 0 : i32
    %c0_i32_0 = arith.constant 0 : i32
    return %arg0, %c0_i32 : i32, i32
  }
}

module attributes {stable_mosaic.version = 11 : i64} {
  func.func @_linear_kernel(%arg0: i32, %arg1: memref<16x64xf32, #tpu.memory_space<vmem>>, %arg2: memref<64x256xf32, #tpu.memory_space<vmem>>, %arg3: memref<1x256xf32, #tpu.memory_space<vmem>>, %arg4: memref<16x256xf32, #tpu.memory_space<vmem>>) attributes {dimension_semantics = [#tpu.dimension_semantics<parallel>], iteration_bounds = array<i64: 1>, scalar_prefetch = 0 : i64, scratch_operands = 0 : i64, tpu.core_type = #tpu.core_type<tc>, window_params = [{transform_indices = @transform_0, window_bounds = array<i64: 16, 64>}, {pipeline_mode = #tpu.pipeline_mode<synchronous>, transform_indices = @transform_1, window_bounds = array<i64: 64, 256>}, {pipeline_mode = #tpu.pipeline_mode<synchronous>, transform_indices = @transform_2, window_bounds = array<i64: 1, 256>}, {transform_indices = @transform_3, window_bounds = array<i64: 16, 256>}]} {
    %c0 = arith.constant 0 : index
    %c0_0 = arith.constant 0 : index
    %0 = vector.load %arg1[%c0, %c0_0] : memref<16x64xf32, #tpu.memory_space<vmem>>, vector<16x64xf32>
    %c0_1 = arith.constant 0 : index
    %c0_2 = arith.constant 0 : index
    %1 = vector.load %arg2[%c0_1, %c0_2] : memref<64x256xf32, #tpu.memory_space<vmem>>, vector<64x256xf32>
    %cst = arith.constant dense<0.000000e+00> : vector<16x256xf32>
    %2 = tpu.matmul %0, %1, %cst {dimension_numbers = #tpu.dot_dimension_numbers<[1], [0], [0], [1], [0, 0, 1, 1], [], []>} : vector<16x64xf32>, vector<64x256xf32>, vector<16x256xf32> -> vector<16x256xf32>
    %c0_3 = arith.constant 0 : index
    %c0_4 = arith.constant 0 : index
    %3 = vector.load %arg3[%c0_3, %c0_4] : memref<1x256xf32, #tpu.memory_space<vmem>>, vector<1x256xf32>
    %4 = vector.broadcast %3 : vector<1x256xf32> to vector<16x256xf32>
    %5 = arith.addf %2, %4 : vector<16x256xf32>
    %c0_5 = arith.constant 0 : index
    %c0_6 = arith.constant 0 : index
    %6 = vector.load %arg4[%c0_5, %c0_6] : memref<16x256xf32, #tpu.memory_space<vmem>>, vector<16x256xf32>
    tpu.vector_store %arg4[%c0_5, %c0_6], %5 {strides = array<i32>} : memref<16x256xf32, #tpu.memory_space<vmem>>, vector<16x256xf32>,
    return
  }
  func.func @transform_0(%arg0: i32) -> (i32, i32) {
    %c0_i32 = arith.constant 0 : i32
    %c0_i32_0 = arith.constant 0 : i32
    return %arg0, %c0_i32 : i32, i32
  }
  func.func @transform_1(%arg0: i32) -> (i32, i32) {
    %c0_i32 = arith.constant 0 : i32
    %c0_i32_0 = arith.constant 0 : i32
    %c0_i32_1 = arith.constant 0 : i32
    return %c0_i32, %c0_i32_0 : i32, i32
  }
  func.func @transform_2(%arg0: i32) -> (i32, i32) {
    %c0_i32 = arith.constant 0 : i32
    %c0_i32_0 = arith.constant 0 : i32
    %c0_i32_1 = arith.constant 0 : i32
    return %c0_i32, %c0_i32_0 : i32, i32
  }
  func.func @transform_3(%arg0: i32) -> (i32, i32) {
    %c0_i32 = arith.constant 0 : i32
    %c0_i32_0 = arith.constant 0 : i32
    return %arg0, %c0_i32 : i32, i32
  }
}

module attributes {stable_mosaic.version = 11 : i64} {
  func.func @_bilstm_kernel(%arg0: i32, %arg1: i32, %arg2: memref<1x8x2x128xf32, #tpu.memory_space<vmem>>, %arg3: memref<1x128x128xf32, #tpu.memory_space<vmem>>, %arg4: memref<1x8x2x128xf32, #tpu.memory_space<vmem>>, %arg5: memref<2x128xf32, #tpu.memory_space<vmem>>, %arg6: memref<2x32xf32, #tpu.memory_space<vmem>>) attributes {dimension_semantics = [#tpu.dimension_semantics<parallel>, #tpu.dimension_semantics<arbitrary>], iteration_bounds = array<i64: 2, 1>, scalar_prefetch = 0 : i64, scratch_operands = 2 : i64, tpu.core_type = #tpu.core_type<tc>, window_params = [{transform_indices = @transform_0, window_bounds = array<i64: 1, 8, 2, 128>}, {transform_indices = @transform_1, window_bounds = array<i64: 1, 128, 128>}, {transform_indices = @transform_2, window_bounds = array<i64: 1, 8, 2, 128>}]} {
    %c0_i32 = arith.constant 0 : i32
    %0 = arith.cmpi eq, %arg1, %c0_i32 : i32
    %1 = arith.extui %0 : i1 to i32
    %c0_i32_0 = arith.constant 0 : i32
    %2 = arith.cmpi ne, %1, %c0_i32_0 : i32
    scf.if %2 {
      %cst_92 = arith.constant 0.000000e+00 : f32
      %234 = vector.broadcast %cst_92 : f32 to vector<2x128xf32>
      %c0_93 = arith.constant 0 : index
      %c0_94 = arith.constant 0 : index
      %235 = vector.load %arg5[%c0_93, %c0_94] : memref<2x128xf32, #tpu.memory_space<vmem>>, vector<2x128xf32>
      tpu.vector_store %arg5[%c0_93, %c0_94], %234 {strides = array<i32>} : memref<2x128xf32, #tpu.memory_space<vmem>>, vector<2x128xf32>,
      %cst_95 = arith.constant 0.000000e+00 : f32
      %236 = vector.broadcast %cst_95 : f32 to vector<2x32xf32>
      %c0_96 = arith.constant 0 : index
      %c0_97 = arith.constant 0 : index
      %237 = vector.load %arg6[%c0_96, %c0_97] : memref<2x32xf32, #tpu.memory_space<vmem>>, vector<2x32xf32>
      tpu.vector_store %arg6[%c0_96, %c0_97], %236 {strides = array<i32>} : memref<2x32xf32, #tpu.memory_space<vmem>>, vector<2x32xf32>,
    } else {
    }
    %c0 = arith.constant 0 : index
    %c0_1 = arith.constant 0 : index
    %c0_2 = arith.constant 0 : index
    %3 = vector.load %arg3[%c0, %c0_1, %c0_2] : memref<1x128x128xf32, #tpu.memory_space<vmem>>, vector<1x128x128xf32>
    %4 = vector.shape_cast %3 : vector<1x128x128xf32> to vector<128x128xf32>
    %cst = arith.constant 0.000000e+00 : f32
    %5 = vector.broadcast %cst : f32 to vector<2x96xf32>
    %c0_3 = arith.constant 0 : index
    %c0_4 = arith.constant 0 : index
    %6 = vector.load %arg5[%c0_3, %c0_4] : memref<2x128xf32, #tpu.memory_space<vmem>>, vector<2x128xf32>
    %c0_5 = arith.constant 0 : index
    %c0_6 = arith.constant 0 : index
    %7 = vector.load %arg6[%c0_5, %c0_6] : memref<2x32xf32, #tpu.memory_space<vmem>>, vector<2x32xf32>
    %c0_i32_7 = arith.constant 0 : i32
    %c0_8 = arith.constant 0 : index
    %8 = arith.index_cast %c0_i32_7 : i32 to index
    %c0_9 = arith.constant 0 : index
    %c0_10 = arith.constant 0 : index
    %9 = vector.load %arg2[%c0_8, %8, %c0_9, %c0_10] : memref<1x8x2x128xf32, #tpu.memory_space<vmem>>, vector<1x1x2x128xf32>
    %10 = vector.shape_cast %9 : vector<1x1x2x128xf32> to vector<2x128xf32>
    %cst_11 = arith.constant dense<0.000000e+00> : vector<2x128xf32>
    %11 = tpu.matmul %6, %4, %cst_11 {dimension_numbers = #tpu.dot_dimension_numbers<[1], [0], [0], [1], [0, 0, 1, 1], [], []>} : vector<2x128xf32>, vector<128x128xf32>, vector<2x128xf32> -> vector<2x128xf32>
    %12 = arith.addf %10, %11 : vector<2x128xf32>
    %13 = vector.extract_strided_slice %12 {offsets = [0, 0], sizes = [2, 96], strides = [1, 1]} : vector<2x128xf32> to vector<2x96xf32>
    %cst_12 = arith.constant 0.000000e+00 : f32
    %14 = vector.broadcast %cst_12 : f32 to vector<2x96xf32>
    %15 = arith.subf %14, %13 : vector<2x96xf32>
    %16 = math.exp %15 : vector<2x96xf32>
    %cst_13 = arith.constant 1.000000e+00 : f32
    %17 = vector.broadcast %cst_13 : f32 to vector<2x96xf32>
    %18 = arith.addf %17, %16 : vector<2x96xf32>
    %cst_14 = arith.constant 1.000000e+00 : f32
    %19 = vector.broadcast %cst_14 : f32 to vector<2x96xf32>
    %20 = arith.divf %19, %18 : vector<2x96xf32>
    %21 = vector.extract_strided_slice %12 {offsets = [0, 96], sizes = [2, 32], strides = [1, 1]} : vector<2x128xf32> to vector<2x32xf32>
    %22 = math.tanh %21 : vector<2x32xf32>
    %23 = vector.extract_strided_slice %20 {offsets = [0, 0], sizes = [2, 32], strides = [1, 1]} : vector<2x96xf32> to vector<2x32xf32>
    %24 = vector.extract_strided_slice %20 {offsets = [0, 32], sizes = [2, 32], strides = [1, 1]} : vector<2x96xf32> to vector<2x32xf32>
    %25 = vector.extract_strided_slice %20 {offsets = [0, 64], sizes = [2, 32], strides = [1, 1]} : vector<2x96xf32> to vector<2x32xf32>
    %26 = arith.mulf %24, %7 : vector<2x32xf32>
    %27 = arith.mulf %23, %22 : vector<2x32xf32>
    %28 = arith.addf %26, %27 : vector<2x32xf32>
    %29 = math.tanh %28 : vector<2x32xf32>
    %30 = arith.mulf %25, %29 : vector<2x32xf32>
    %31 = tpu.concatenate %30, %5 in 1 : vector<2x32xf32>, vector<2x96xf32> -> vector<2x128xf32>
    %c0_15 = arith.constant 0 : index
    %32 = arith.index_cast %c0_i32_7 : i32 to index
    %c0_16 = arith.constant 0 : index
    %c0_17 = arith.constant 0 : index
    %33 = vector.load %arg4[%c0_15, %32, %c0_16, %c0_17] : memref<1x8x2x128xf32, #tpu.memory_space<vmem>>, vector<1x1x2x128xf32>
    %34 = vector.shape_cast %33 : vector<1x1x2x128xf32> to vector<2x128xf32>
    %35 = vector.shape_cast %31 : vector<2x128xf32> to vector<1x1x2x128xf32>
    tpu.vector_store %arg4[%c0_15, %32, %c0_16, %c0_17], %35 {strides = array<i32>} : memref<1x8x2x128xf32, #tpu.memory_space<vmem>>, vector<1x1x2x128xf32>,
    %c1_i32 = arith.constant 1 : i32
    %c0_18 = arith.constant 0 : index
    %36 = arith.index_cast %c1_i32 : i32 to index
    %c0_19 = arith.constant 0 : index
    %c0_20 = arith.constant 0 : index
    %37 = vector.load %arg2[%c0_18, %36, %c0_19, %c0_20] : memref<1x8x2x128xf32, #tpu.memory_space<vmem>>, vector<1x1x2x128xf32>
    %38 = vector.shape_cast %37 : vector<1x1x2x128xf32> to vector<2x128xf32>
    %cst_21 = arith.constant dense<0.000000e+00> : vector<2x128xf32>
    %39 = tpu.matmul %31, %4, %cst_21 {dimension_numbers = #tpu.dot_dimension_numbers<[1], [0], [0], [1], [0, 0, 1, 1], [], []>} : vector<2x128xf32>, vector<128x128xf32>, vector<2x128xf32> -> vector<2x128xf32>
    %40 = arith.addf %38, %39 : vector<2x128xf32>
    %41 = vector.extract_strided_slice %40 {offsets = [0, 0], sizes = [2, 96], strides = [1, 1]} : vector<2x128xf32> to vector<2x96xf32>
    %cst_22 = arith.constant 0.000000e+00 : f32
    %42 = vector.broadcast %cst_22 : f32 to vector<2x96xf32>
    %43 = arith.subf %42, %41 : vector<2x96xf32>
    %44 = math.exp %43 : vector<2x96xf32>
    %cst_23 = arith.constant 1.000000e+00 : f32
    %45 = vector.broadcast %cst_23 : f32 to vector<2x96xf32>
    %46 = arith.addf %45, %44 : vector<2x96xf32>
    %cst_24 = arith.constant 1.000000e+00 : f32
    %47 = vector.broadcast %cst_24 : f32 to vector<2x96xf32>
    %48 = arith.divf %47, %46 : vector<2x96xf32>
    %49 = vector.extract_strided_slice %40 {offsets = [0, 96], sizes = [2, 32], strides = [1, 1]} : vector<2x128xf32> to vector<2x32xf32>
    %50 = math.tanh %49 : vector<2x32xf32>
    %51 = vector.extract_strided_slice %48 {offsets = [0, 0], sizes = [2, 32], strides = [1, 1]} : vector<2x96xf32> to vector<2x32xf32>
    %52 = vector.extract_strided_slice %48 {offsets = [0, 32], sizes = [2, 32], strides = [1, 1]} : vector<2x96xf32> to vector<2x32xf32>
    %53 = vector.extract_strided_slice %48 {offsets = [0, 64], sizes = [2, 32], strides = [1, 1]} : vector<2x96xf32> to vector<2x32xf32>
    %54 = arith.mulf %52, %28 : vector<2x32xf32>
    %55 = arith.mulf %51, %50 : vector<2x32xf32>
    %56 = arith.addf %54, %55 : vector<2x32xf32>
    %57 = math.tanh %56 : vector<2x32xf32>
    %58 = arith.mulf %53, %57 : vector<2x32xf32>
    %59 = tpu.concatenate %58, %5 in 1 : vector<2x32xf32>, vector<2x96xf32> -> vector<2x128xf32>
    %c0_25 = arith.constant 0 : index
    %60 = arith.index_cast %c1_i32 : i32 to index
    %c0_26 = arith.constant 0 : index
    %c0_27 = arith.constant 0 : index
    %61 = vector.load %arg4[%c0_25, %60, %c0_26, %c0_27] : memref<1x8x2x128xf32, #tpu.memory_space<vmem>>, vector<1x1x2x128xf32>
    %62 = vector.shape_cast %61 : vector<1x1x2x128xf32> to vector<2x128xf32>
    %63 = vector.shape_cast %59 : vector<2x128xf32> to vector<1x1x2x128xf32>
    tpu.vector_store %arg4[%c0_25, %60, %c0_26, %c0_27], %63 {strides = array<i32>} : memref<1x8x2x128xf32, #tpu.memory_space<vmem>>, vector<1x1x2x128xf32>,
    %c2_i32 = arith.constant 2 : i32
    %c0_28 = arith.constant 0 : index
    %64 = arith.index_cast %c2_i32 : i32 to index
    %c0_29 = arith.constant 0 : index
    %c0_30 = arith.constant 0 : index
    %65 = vector.load %arg2[%c0_28, %64, %c0_29, %c0_30] : memref<1x8x2x128xf32, #tpu.memory_space<vmem>>, vector<1x1x2x128xf32>
    %66 = vector.shape_cast %65 : vector<1x1x2x128xf32> to vector<2x128xf32>
    %cst_31 = arith.constant dense<0.000000e+00> : vector<2x128xf32>
    %67 = tpu.matmul %59, %4, %cst_31 {dimension_numbers = #tpu.dot_dimension_numbers<[1], [0], [0], [1], [0, 0, 1, 1], [], []>} : vector<2x128xf32>, vector<128x128xf32>, vector<2x128xf32> -> vector<2x128xf32>
    %68 = arith.addf %66, %67 : vector<2x128xf32>
    %69 = vector.extract_strided_slice %68 {offsets = [0, 0], sizes = [2, 96], strides = [1, 1]} : vector<2x128xf32> to vector<2x96xf32>
    %cst_32 = arith.constant 0.000000e+00 : f32
    %70 = vector.broadcast %cst_32 : f32 to vector<2x96xf32>
    %71 = arith.subf %70, %69 : vector<2x96xf32>
    %72 = math.exp %71 : vector<2x96xf32>
    %cst_33 = arith.constant 1.000000e+00 : f32
    %73 = vector.broadcast %cst_33 : f32 to vector<2x96xf32>
    %74 = arith.addf %73, %72 : vector<2x96xf32>
    %cst_34 = arith.constant 1.000000e+00 : f32
    %75 = vector.broadcast %cst_34 : f32 to vector<2x96xf32>
    %76 = arith.divf %75, %74 : vector<2x96xf32>
    %77 = vector.extract_strided_slice %68 {offsets = [0, 96], sizes = [2, 32], strides = [1, 1]} : vector<2x128xf32> to vector<2x32xf32>
    %78 = math.tanh %77 : vector<2x32xf32>
    %79 = vector.extract_strided_slice %76 {offsets = [0, 0], sizes = [2, 32], strides = [1, 1]} : vector<2x96xf32> to vector<2x32xf32>
    %80 = vector.extract_strided_slice %76 {offsets = [0, 32], sizes = [2, 32], strides = [1, 1]} : vector<2x96xf32> to vector<2x32xf32>
    %81 = vector.extract_strided_slice %76 {offsets = [0, 64], sizes = [2, 32], strides = [1, 1]} : vector<2x96xf32> to vector<2x32xf32>
    %82 = arith.mulf %80, %56 : vector<2x32xf32>
    %83 = arith.mulf %79, %78 : vector<2x32xf32>
    %84 = arith.addf %82, %83 : vector<2x32xf32>
    %85 = math.tanh %84 : vector<2x32xf32>
    %86 = arith.mulf %81, %85 : vector<2x32xf32>
    %87 = tpu.concatenate %86, %5 in 1 : vector<2x32xf32>, vector<2x96xf32> -> vector<2x128xf32>
    %c0_35 = arith.constant 0 : index
    %88 = arith.index_cast %c2_i32 : i32 to index
    %c0_36 = arith.constant 0 : index
    %c0_37 = arith.constant 0 : index
    %89 = vector.load %arg4[%c0_35, %88, %c0_36, %c0_37] : memref<1x8x2x128xf32, #tpu.memory_space<vmem>>, vector<1x1x2x128xf32>
    %90 = vector.shape_cast %89 : vector<1x1x2x128xf32> to vector<2x128xf32>
    %91 = vector.shape_cast %87 : vector<2x128xf32> to vector<1x1x2x128xf32>
    tpu.vector_store %arg4[%c0_35, %88, %c0_36, %c0_37], %91 {strides = array<i32>} : memref<1x8x2x128xf32, #tpu.memory_space<vmem>>, vector<1x1x2x128xf32>,
    %c3_i32 = arith.constant 3 : i32
    %c0_38 = arith.constant 0 : index
    %92 = arith.index_cast %c3_i32 : i32 to index
    %c0_39 = arith.constant 0 : index
    %c0_40 = arith.constant 0 : index
    %93 = vector.load %arg2[%c0_38, %92, %c0_39, %c0_40] : memref<1x8x2x128xf32, #tpu.memory_space<vmem>>, vector<1x1x2x128xf32>
    %94 = vector.shape_cast %93 : vector<1x1x2x128xf32> to vector<2x128xf32>
    %cst_41 = arith.constant dense<0.000000e+00> : vector<2x128xf32>
    %95 = tpu.matmul %87, %4, %cst_41 {dimension_numbers = #tpu.dot_dimension_numbers<[1], [0], [0], [1], [0, 0, 1, 1], [], []>} : vector<2x128xf32>, vector<128x128xf32>, vector<2x128xf32> -> vector<2x128xf32>
    %96 = arith.addf %94, %95 : vector<2x128xf32>
    %97 = vector.extract_strided_slice %96 {offsets = [0, 0], sizes = [2, 96], strides = [1, 1]} : vector<2x128xf32> to vector<2x96xf32>
    %cst_42 = arith.constant 0.000000e+00 : f32
    %98 = vector.broadcast %cst_42 : f32 to vector<2x96xf32>
    %99 = arith.subf %98, %97 : vector<2x96xf32>
    %100 = math.exp %99 : vector<2x96xf32>
    %cst_43 = arith.constant 1.000000e+00 : f32
    %101 = vector.broadcast %cst_43 : f32 to vector<2x96xf32>
    %102 = arith.addf %101, %100 : vector<2x96xf32>
    %cst_44 = arith.constant 1.000000e+00 : f32
    %103 = vector.broadcast %cst_44 : f32 to vector<2x96xf32>
    %104 = arith.divf %103, %102 : vector<2x96xf32>
    %105 = vector.extract_strided_slice %96 {offsets = [0, 96], sizes = [2, 32], strides = [1, 1]} : vector<2x128xf32> to vector<2x32xf32>
    %106 = math.tanh %105 : vector<2x32xf32>
    %107 = vector.extract_strided_slice %104 {offsets = [0, 0], sizes = [2, 32], strides = [1, 1]} : vector<2x96xf32> to vector<2x32xf32>
    %108 = vector.extract_strided_slice %104 {offsets = [0, 32], sizes = [2, 32], strides = [1, 1]} : vector<2x96xf32> to vector<2x32xf32>
    %109 = vector.extract_strided_slice %104 {offsets = [0, 64], sizes = [2, 32], strides = [1, 1]} : vector<2x96xf32> to vector<2x32xf32>
    %110 = arith.mulf %108, %84 : vector<2x32xf32>
    %111 = arith.mulf %107, %106 : vector<2x32xf32>
    %112 = arith.addf %110, %111 : vector<2x32xf32>
    %113 = math.tanh %112 : vector<2x32xf32>
    %114 = arith.mulf %109, %113 : vector<2x32xf32>
    %115 = tpu.concatenate %114, %5 in 1 : vector<2x32xf32>, vector<2x96xf32> -> vector<2x128xf32>
    %c0_45 = arith.constant 0 : index
    %116 = arith.index_cast %c3_i32 : i32 to index
    %c0_46 = arith.constant 0 : index
    %c0_47 = arith.constant 0 : index
    %117 = vector.load %arg4[%c0_45, %116, %c0_46, %c0_47] : memref<1x8x2x128xf32, #tpu.memory_space<vmem>>, vector<1x1x2x128xf32>
    %118 = vector.shape_cast %117 : vector<1x1x2x128xf32> to vector<2x128xf32>
    %119 = vector.shape_cast %115 : vector<2x128xf32> to vector<1x1x2x128xf32>
    tpu.vector_store %arg4[%c0_45, %116, %c0_46, %c0_47], %119 {strides = array<i32>} : memref<1x8x2x128xf32, #tpu.memory_space<vmem>>, vector<1x1x2x128xf32>,
    %c4_i32 = arith.constant 4 : i32
    %c0_48 = arith.constant 0 : index
    %120 = arith.index_cast %c4_i32 : i32 to index
    %c0_49 = arith.constant 0 : index
    %c0_50 = arith.constant 0 : index
    %121 = vector.load %arg2[%c0_48, %120, %c0_49, %c0_50] : memref<1x8x2x128xf32, #tpu.memory_space<vmem>>, vector<1x1x2x128xf32>
    %122 = vector.shape_cast %121 : vector<1x1x2x128xf32> to vector<2x128xf32>
    %cst_51 = arith.constant dense<0.000000e+00> : vector<2x128xf32>
    %123 = tpu.matmul %115, %4, %cst_51 {dimension_numbers = #tpu.dot_dimension_numbers<[1], [0], [0], [1], [0, 0, 1, 1], [], []>} : vector<2x128xf32>, vector<128x128xf32>, vector<2x128xf32> -> vector<2x128xf32>
    %124 = arith.addf %122, %123 : vector<2x128xf32>
    %125 = vector.extract_strided_slice %124 {offsets = [0, 0], sizes = [2, 96], strides = [1, 1]} : vector<2x128xf32> to vector<2x96xf32>
    %cst_52 = arith.constant 0.000000e+00 : f32
    %126 = vector.broadcast %cst_52 : f32 to vector<2x96xf32>
    %127 = arith.subf %126, %125 : vector<2x96xf32>
    %128 = math.exp %127 : vector<2x96xf32>
    %cst_53 = arith.constant 1.000000e+00 : f32
    %129 = vector.broadcast %cst_53 : f32 to vector<2x96xf32>
    %130 = arith.addf %129, %128 : vector<2x96xf32>
    %cst_54 = arith.constant 1.000000e+00 : f32
    %131 = vector.broadcast %cst_54 : f32 to vector<2x96xf32>
    %132 = arith.divf %131, %130 : vector<2x96xf32>
    %133 = vector.extract_strided_slice %124 {offsets = [0, 96], sizes = [2, 32], strides = [1, 1]} : vector<2x128xf32> to vector<2x32xf32>
    %134 = math.tanh %133 : vector<2x32xf32>
    %135 = vector.extract_strided_slice %132 {offsets = [0, 0], sizes = [2, 32], strides = [1, 1]} : vector<2x96xf32> to vector<2x32xf32>
    %136 = vector.extract_strided_slice %132 {offsets = [0, 32], sizes = [2, 32], strides = [1, 1]} : vector<2x96xf32> to vector<2x32xf32>
    %137 = vector.extract_strided_slice %132 {offsets = [0, 64], sizes = [2, 32], strides = [1, 1]} : vector<2x96xf32> to vector<2x32xf32>
    %138 = arith.mulf %136, %112 : vector<2x32xf32>
    %139 = arith.mulf %135, %134 : vector<2x32xf32>
    %140 = arith.addf %138, %139 : vector<2x32xf32>
    %141 = math.tanh %140 : vector<2x32xf32>
    %142 = arith.mulf %137, %141 : vector<2x32xf32>
    %143 = tpu.concatenate %142, %5 in 1 : vector<2x32xf32>, vector<2x96xf32> -> vector<2x128xf32>
    %c0_55 = arith.constant 0 : index
    %144 = arith.index_cast %c4_i32 : i32 to index
    %c0_56 = arith.constant 0 : index
    %c0_57 = arith.constant 0 : index
    %145 = vector.load %arg4[%c0_55, %144, %c0_56, %c0_57] : memref<1x8x2x128xf32, #tpu.memory_space<vmem>>, vector<1x1x2x128xf32>
    %146 = vector.shape_cast %145 : vector<1x1x2x128xf32> to vector<2x128xf32>
    %147 = vector.shape_cast %143 : vector<2x128xf32> to vector<1x1x2x128xf32>
    tpu.vector_store %arg4[%c0_55, %144, %c0_56, %c0_57], %147 {strides = array<i32>} : memref<1x8x2x128xf32, #tpu.memory_space<vmem>>, vector<1x1x2x128xf32>,
    %c5_i32 = arith.constant 5 : i32
    %c0_58 = arith.constant 0 : index
    %148 = arith.index_cast %c5_i32 : i32 to index
    %c0_59 = arith.constant 0 : index
    %c0_60 = arith.constant 0 : index
    %149 = vector.load %arg2[%c0_58, %148, %c0_59, %c0_60] : memref<1x8x2x128xf32, #tpu.memory_space<vmem>>, vector<1x1x2x128xf32>
    %150 = vector.shape_cast %149 : vector<1x1x2x128xf32> to vector<2x128xf32>
    %cst_61 = arith.constant dense<0.000000e+00> : vector<2x128xf32>
    %151 = tpu.matmul %143, %4, %cst_61 {dimension_numbers = #tpu.dot_dimension_numbers<[1], [0], [0], [1], [0, 0, 1, 1], [], []>} : vector<2x128xf32>, vector<128x128xf32>, vector<2x128xf32> -> vector<2x128xf32>
    %152 = arith.addf %150, %151 : vector<2x128xf32>
    %153 = vector.extract_strided_slice %152 {offsets = [0, 0], sizes = [2, 96], strides = [1, 1]} : vector<2x128xf32> to vector<2x96xf32>
    %cst_62 = arith.constant 0.000000e+00 : f32
    %154 = vector.broadcast %cst_62 : f32 to vector<2x96xf32>
    %155 = arith.subf %154, %153 : vector<2x96xf32>
    %156 = math.exp %155 : vector<2x96xf32>
    %cst_63 = arith.constant 1.000000e+00 : f32
    %157 = vector.broadcast %cst_63 : f32 to vector<2x96xf32>
    %158 = arith.addf %157, %156 : vector<2x96xf32>
    %cst_64 = arith.constant 1.000000e+00 : f32
    %159 = vector.broadcast %cst_64 : f32 to vector<2x96xf32>
    %160 = arith.divf %159, %158 : vector<2x96xf32>
    %161 = vector.extract_strided_slice %152 {offsets = [0, 96], sizes = [2, 32], strides = [1, 1]} : vector<2x128xf32> to vector<2x32xf32>
    %162 = math.tanh %161 : vector<2x32xf32>
    %163 = vector.extract_strided_slice %160 {offsets = [0, 0], sizes = [2, 32], strides = [1, 1]} : vector<2x96xf32> to vector<2x32xf32>
    %164 = vector.extract_strided_slice %160 {offsets = [0, 32], sizes = [2, 32], strides = [1, 1]} : vector<2x96xf32> to vector<2x32xf32>
    %165 = vector.extract_strided_slice %160 {offsets = [0, 64], sizes = [2, 32], strides = [1, 1]} : vector<2x96xf32> to vector<2x32xf32>
    %166 = arith.mulf %164, %140 : vector<2x32xf32>
    %167 = arith.mulf %163, %162 : vector<2x32xf32>
    %168 = arith.addf %166, %167 : vector<2x32xf32>
    %169 = math.tanh %168 : vector<2x32xf32>
    %170 = arith.mulf %165, %169 : vector<2x32xf32>
    %171 = tpu.concatenate %170, %5 in 1 : vector<2x32xf32>, vector<2x96xf32> -> vector<2x128xf32>
    %c0_65 = arith.constant 0 : index
    %172 = arith.index_cast %c5_i32 : i32 to index
    %c0_66 = arith.constant 0 : index
    %c0_67 = arith.constant 0 : index
    %173 = vector.load %arg4[%c0_65, %172, %c0_66, %c0_67] : memref<1x8x2x128xf32, #tpu.memory_space<vmem>>, vector<1x1x2x128xf32>
    %174 = vector.shape_cast %173 : vector<1x1x2x128xf32> to vector<2x128xf32>
    %175 = vector.shape_cast %171 : vector<2x128xf32> to vector<1x1x2x128xf32>
    tpu.vector_store %arg4[%c0_65, %172, %c0_66, %c0_67], %175 {strides = array<i32>} : memref<1x8x2x128xf32, #tpu.memory_space<vmem>>, vector<1x1x2x128xf32>,
    %c6_i32 = arith.constant 6 : i32
    %c0_68 = arith.constant 0 : index
    %176 = arith.index_cast %c6_i32 : i32 to index
    %c0_69 = arith.constant 0 : index
    %c0_70 = arith.constant 0 : index
    %177 = vector.load %arg2[%c0_68, %176, %c0_69, %c0_70] : memref<1x8x2x128xf32, #tpu.memory_space<vmem>>, vector<1x1x2x128xf32>
    %178 = vector.shape_cast %177 : vector<1x1x2x128xf32> to vector<2x128xf32>
    %cst_71 = arith.constant dense<0.000000e+00> : vector<2x128xf32>
    %179 = tpu.matmul %171, %4, %cst_71 {dimension_numbers = #tpu.dot_dimension_numbers<[1], [0], [0], [1], [0, 0, 1, 1], [], []>} : vector<2x128xf32>, vector<128x128xf32>, vector<2x128xf32> -> vector<2x128xf32>
    %180 = arith.addf %178, %179 : vector<2x128xf32>
    %181 = vector.extract_strided_slice %180 {offsets = [0, 0], sizes = [2, 96], strides = [1, 1]} : vector<2x128xf32> to vector<2x96xf32>
    %cst_72 = arith.constant 0.000000e+00 : f32
    %182 = vector.broadcast %cst_72 : f32 to vector<2x96xf32>
    %183 = arith.subf %182, %181 : vector<2x96xf32>
    %184 = math.exp %183 : vector<2x96xf32>
    %cst_73 = arith.constant 1.000000e+00 : f32
    %185 = vector.broadcast %cst_73 : f32 to vector<2x96xf32>
    %186 = arith.addf %185, %184 : vector<2x96xf32>
    %cst_74 = arith.constant 1.000000e+00 : f32
    %187 = vector.broadcast %cst_74 : f32 to vector<2x96xf32>
    %188 = arith.divf %187, %186 : vector<2x96xf32>
    %189 = vector.extract_strided_slice %180 {offsets = [0, 96], sizes = [2, 32], strides = [1, 1]} : vector<2x128xf32> to vector<2x32xf32>
    %190 = math.tanh %189 : vector<2x32xf32>
    %191 = vector.extract_strided_slice %188 {offsets = [0, 0], sizes = [2, 32], strides = [1, 1]} : vector<2x96xf32> to vector<2x32xf32>
    %192 = vector.extract_strided_slice %188 {offsets = [0, 32], sizes = [2, 32], strides = [1, 1]} : vector<2x96xf32> to vector<2x32xf32>
    %193 = vector.extract_strided_slice %188 {offsets = [0, 64], sizes = [2, 32], strides = [1, 1]} : vector<2x96xf32> to vector<2x32xf32>
    %194 = arith.mulf %192, %168 : vector<2x32xf32>
    %195 = arith.mulf %191, %190 : vector<2x32xf32>
    %196 = arith.addf %194, %195 : vector<2x32xf32>
    %197 = math.tanh %196 : vector<2x32xf32>
    %198 = arith.mulf %193, %197 : vector<2x32xf32>
    %199 = tpu.concatenate %198, %5 in 1 : vector<2x32xf32>, vector<2x96xf32> -> vector<2x128xf32>
    %c0_75 = arith.constant 0 : index
    %200 = arith.index_cast %c6_i32 : i32 to index
    %c0_76 = arith.constant 0 : index
    %c0_77 = arith.constant 0 : index
    %201 = vector.load %arg4[%c0_75, %200, %c0_76, %c0_77] : memref<1x8x2x128xf32, #tpu.memory_space<vmem>>, vector<1x1x2x128xf32>
    %202 = vector.shape_cast %201 : vector<1x1x2x128xf32> to vector<2x128xf32>
    %203 = vector.shape_cast %199 : vector<2x128xf32> to vector<1x1x2x128xf32>
    tpu.vector_store %arg4[%c0_75, %200, %c0_76, %c0_77], %203 {strides = array<i32>} : memref<1x8x2x128xf32, #tpu.memory_space<vmem>>, vector<1x1x2x128xf32>,
    %c7_i32 = arith.constant 7 : i32
    %c0_78 = arith.constant 0 : index
    %204 = arith.index_cast %c7_i32 : i32 to index
    %c0_79 = arith.constant 0 : index
    %c0_80 = arith.constant 0 : index
    %205 = vector.load %arg2[%c0_78, %204, %c0_79, %c0_80] : memref<1x8x2x128xf32, #tpu.memory_space<vmem>>, vector<1x1x2x128xf32>
    %206 = vector.shape_cast %205 : vector<1x1x2x128xf32> to vector<2x128xf32>
    %cst_81 = arith.constant dense<0.000000e+00> : vector<2x128xf32>
    %207 = tpu.matmul %199, %4, %cst_81 {dimension_numbers = #tpu.dot_dimension_numbers<[1], [0], [0], [1], [0, 0, 1, 1], [], []>} : vector<2x128xf32>, vector<128x128xf32>, vector<2x128xf32> -> vector<2x128xf32>
    %208 = arith.addf %206, %207 : vector<2x128xf32>
    %209 = vector.extract_strided_slice %208 {offsets = [0, 0], sizes = [2, 96], strides = [1, 1]} : vector<2x128xf32> to vector<2x96xf32>
    %cst_82 = arith.constant 0.000000e+00 : f32
    %210 = vector.broadcast %cst_82 : f32 to vector<2x96xf32>
    %211 = arith.subf %210, %209 : vector<2x96xf32>
    %212 = math.exp %211 : vector<2x96xf32>
    %cst_83 = arith.constant 1.000000e+00 : f32
    %213 = vector.broadcast %cst_83 : f32 to vector<2x96xf32>
    %214 = arith.addf %213, %212 : vector<2x96xf32>
    %cst_84 = arith.constant 1.000000e+00 : f32
    %215 = vector.broadcast %cst_84 : f32 to vector<2x96xf32>
    %216 = arith.divf %215, %214 : vector<2x96xf32>
    %217 = vector.extract_strided_slice %208 {offsets = [0, 96], sizes = [2, 32], strides = [1, 1]} : vector<2x128xf32> to vector<2x32xf32>
    %218 = math.tanh %217 : vector<2x32xf32>
    %219 = vector.extract_strided_slice %216 {offsets = [0, 0], sizes = [2, 32], strides = [1, 1]} : vector<2x96xf32> to vector<2x32xf32>
    %220 = vector.extract_strided_slice %216 {offsets = [0, 32], sizes = [2, 32], strides = [1, 1]} : vector<2x96xf32> to vector<2x32xf32>
    %221 = vector.extract_strided_slice %216 {offsets = [0, 64], sizes = [2, 32], strides = [1, 1]} : vector<2x96xf32> to vector<2x32xf32>
    %222 = arith.mulf %220, %196 : vector<2x32xf32>
    %223 = arith.mulf %219, %218 : vector<2x32xf32>
    %224 = arith.addf %222, %223 : vector<2x32xf32>
    %225 = math.tanh %224 : vector<2x32xf32>
    %226 = arith.mulf %221, %225 : vector<2x32xf32>
    %227 = tpu.concatenate %226, %5 in 1 : vector<2x32xf32>, vector<2x96xf32> -> vector<2x128xf32>
    %c0_85 = arith.constant 0 : index
    %228 = arith.index_cast %c7_i32 : i32 to index
    %c0_86 = arith.constant 0 : index
    %c0_87 = arith.constant 0 : index
    %229 = vector.load %arg4[%c0_85, %228, %c0_86, %c0_87] : memref<1x8x2x128xf32, #tpu.memory_space<vmem>>, vector<1x1x2x128xf32>
    %230 = vector.shape_cast %229 : vector<1x1x2x128xf32> to vector<2x128xf32>
    %231 = vector.shape_cast %227 : vector<2x128xf32> to vector<1x1x2x128xf32>
    tpu.vector_store %arg4[%c0_85, %228, %c0_86, %c0_87], %231 {strides = array<i32>} : memref<1x8x2x128xf32, #tpu.memory_space<vmem>>, vector<1x1x2x128xf32>,
    %c8_i32 = arith.constant 8 : i32
    %c0_88 = arith.constant 0 : index
    %c0_89 = arith.constant 0 : index
    %232 = vector.load %arg5[%c0_88, %c0_89] : memref<2x128xf32, #tpu.memory_space<vmem>>, vector<2x128xf32>
    tpu.vector_store %arg5[%c0_88, %c0_89], %227 {strides = array<i32>} : memref<2x128xf32, #tpu.memory_space<vmem>>, vector<2x128xf32>,
    %c0_90 = arith.constant 0 : index
    %c0_91 = arith.constant 0 : index
    %233 = vector.load %arg6[%c0_90, %c0_91] : memref<2x32xf32, #tpu.memory_space<vmem>>, vector<2x32xf32>
    tpu.vector_store %arg6[%c0_90, %c0_91], %224 {strides = array<i32>} : memref<2x32xf32, #tpu.memory_space<vmem>>, vector<2x32xf32>,
    return
  }
  func.func @transform_0(%arg0: i32, %arg1: i32) -> (i32, i32, i32, i32) {
    %c0_i32 = arith.constant 0 : i32
    %c0_i32_0 = arith.constant 0 : i32
    %c0_i32_1 = arith.constant 0 : i32
    return %arg0, %arg1, %c0_i32, %c0_i32_0 : i32, i32, i32, i32
  }
  func.func @transform_1(%arg0: i32, %arg1: i32) -> (i32, i32, i32) {
    %c0_i32 = arith.constant 0 : i32
    %c0_i32_0 = arith.constant 0 : i32
    %c0_i32_1 = arith.constant 0 : i32
    return %arg0, %c0_i32, %c0_i32_0 : i32, i32, i32
  }
  func.func @transform_2(%arg0: i32, %arg1: i32) -> (i32, i32, i32, i32) {
    %c0_i32 = arith.constant 0 : i32
    %c0_i32_0 = arith.constant 0 : i32
    %c0_i32_1 = arith.constant 0 : i32
    return %arg0, %arg1, %c0_i32, %c0_i32_0 : i32, i32, i32, i32
  }
}

module attributes {stable_mosaic.version = 11 : i64} {
  func.func @_linear_kernel(%arg0: i32, %arg1: memref<32x32xf32, #tpu.memory_space<vmem>>, %arg2: memref<32x128xf32, #tpu.memory_space<vmem>>, %arg3: memref<1x128xf32, #tpu.memory_space<vmem>>, %arg4: memref<32x128xf32, #tpu.memory_space<vmem>>) attributes {dimension_semantics = [#tpu.dimension_semantics<parallel>], iteration_bounds = array<i64: 1>, scalar_prefetch = 0 : i64, scratch_operands = 0 : i64, tpu.core_type = #tpu.core_type<tc>, window_params = [{transform_indices = @transform_0, window_bounds = array<i64: 32, 32>}, {pipeline_mode = #tpu.pipeline_mode<synchronous>, transform_indices = @transform_1, window_bounds = array<i64: 32, 128>}, {pipeline_mode = #tpu.pipeline_mode<synchronous>, transform_indices = @transform_2, window_bounds = array<i64: 1, 128>}, {transform_indices = @transform_3, window_bounds = array<i64: 32, 128>}]} {
    %c0 = arith.constant 0 : index
    %c0_0 = arith.constant 0 : index
    %0 = vector.load %arg1[%c0, %c0_0] : memref<32x32xf32, #tpu.memory_space<vmem>>, vector<32x32xf32>
    %c0_1 = arith.constant 0 : index
    %c0_2 = arith.constant 0 : index
    %1 = vector.load %arg2[%c0_1, %c0_2] : memref<32x128xf32, #tpu.memory_space<vmem>>, vector<32x128xf32>
    %cst = arith.constant dense<0.000000e+00> : vector<32x128xf32>
    %2 = tpu.matmul %0, %1, %cst {dimension_numbers = #tpu.dot_dimension_numbers<[1], [0], [0], [1], [0, 0, 1, 1], [], []>} : vector<32x32xf32>, vector<32x128xf32>, vector<32x128xf32> -> vector<32x128xf32>
    %c0_3 = arith.constant 0 : index
    %c0_4 = arith.constant 0 : index
    %3 = vector.load %arg3[%c0_3, %c0_4] : memref<1x128xf32, #tpu.memory_space<vmem>>, vector<1x128xf32>
    %4 = vector.broadcast %3 : vector<1x128xf32> to vector<32x128xf32>
    %5 = arith.addf %2, %4 : vector<32x128xf32>
    %c0_5 = arith.constant 0 : index
    %c0_6 = arith.constant 0 : index
    %6 = vector.load %arg4[%c0_5, %c0_6] : memref<32x128xf32, #tpu.memory_space<vmem>>, vector<32x128xf32>
    tpu.vector_store %arg4[%c0_5, %c0_6], %5 {strides = array<i32>} : memref<32x128xf32, #tpu.memory_space<vmem>>, vector<32x128xf32>,
    return
  }
  func.func @transform_0(%arg0: i32) -> (i32, i32) {
    %c0_i32 = arith.constant 0 : i32
    %c0_i32_0 = arith.constant 0 : i32
    return %arg0, %c0_i32 : i32, i32
  }
  func.func @transform_1(%arg0: i32) -> (i32, i32) {
    %c0_i32 = arith.constant 0 : i32
    %c0_i32_0 = arith.constant 0 : i32
    %c0_i32_1 = arith.constant 0 : i32
    return %c0_i32, %c0_i32_0 : i32, i32
  }
  func.func @transform_2(%arg0: i32) -> (i32, i32) {
    %c0_i32 = arith.constant 0 : i32
    %c0_i32_0 = arith.constant 0 : i32
    %c0_i32_1 = arith.constant 0 : i32
    return %c0_i32, %c0_i32_0 : i32, i32
  }
  func.func @transform_3(%arg0: i32) -> (i32, i32) {
    %c0_i32 = arith.constant 0 : i32
    %c0_i32_0 = arith.constant 0 : i32
    return %arg0, %c0_i32 : i32, i32
  }
}

</mosaic_0001>

<llo_original>
// kernel: _lambda_.7
$region0: #{_lambda_.7}
  #allocation0 [shape = 'u32[]', space=smem, size = 0x4, offset = 0x4, fixed_abs, tag = 'smem constant byte address 0x4 - core index']
  #allocation1 [shape = 'u32[72,128]{1,0:T(1,128)}', space=vmem, size = 0x9000, scoped, tag = 'internal scratch']
  %s0 = inlined_call_operand.vmem [shape: f32[16,64], index: 0, kind: input, shape index: {}]
  %s1 = inlined_call_operand.hbm [shape: f32[64,256], index: 1, kind: input, shape index: {}]
  %s2 = inlined_call_operand.hbm [shape: f32[1,256], index: 2, kind: input, shape index: {}]
  %s3 = inlined_call_operand.vmem [shape: f32[16,256], index: 3, kind: output, shape index: {}]
  %s4 = sld [smem:[#allocation0]]
  $region30: #{_lambda_.7} parent=0
    _
  %s6 = ssub.s32 1, %s4
  %s7 = scalar_select 0, %s6, %s4
  $region1: #{_lambda_.7} parent=0
    #allocation2 [shape = 'u8[65536]{0}', space=vmem, size = 0x10000, scoped, tag = 'input window, operand 1, single buffered']
    #allocation3 [shape = 's32[1]{0}', space=sflag, size = 0x4, scoped, tag = 'scoped memory for _lambda_.7']
    #allocation4 [shape = 'u8[1024]{0}', space=vmem, size = 0x400, scoped, tag = 'input window, operand 2, single buffered']
    #allocation5 [shape = 's32[1]{0}', space=sflag, size = 0x4, scoped, tag = 'scoped memory for _lambda_.7']
    %8 = vsyncpa [#allocation3], 0
    %9 = vsyncpa [#allocation5], 0
    // Predicated region
    $region2: #{_lambda_.7} parent=1 // pred_check
      _
    $region3: #{_lambda_.7} parent=1 // pred_check_branch
      %11 = sbr.rel (0) target = $region5
    $region4: #{_lambda_.7} parent=1 // pred_region
      _
    $region5: #{_lambda_.7} parent=1 // pred_fallthru
      _
    // Predicated region
    $region6: #{_lambda_.7} parent=1 // pred_check
      _
    $region7: #{_lambda_.7} parent=1 // pred_check_branch
      %13 = sbr.rel (0) target = $region9
    $region8: #{_lambda_.7} parent=1 // pred_region
      %15 = vsyncadd [#allocation3], 0
      %s16 = sshll.u32 %s1, 4
      %s17 = int_to_ptr.hbm [resolvable:$true] %s16
      %s18 = sshll.u32 [#allocation2], 4
      %s19 = int_to_ptr.vmem [resolvable:$true] %s18
      %24 = dma.hbm_to_vmem [thread:$0]  %s17, 2048, %s19, [#allocation3], 256, 256, 16
    $region9: #{_lambda_.7} parent=1 // pred_fallthru
      _
    // Predicated region
    $region10: #{_lambda_.7} parent=1 // pred_check
      _
    $region11: #{_lambda_.7} parent=1 // pred_check_branch
      %26 = sbr.rel (0) target = $region13
    $region12: #{_lambda_.7} parent=1 // pred_region
      %28 = vsyncadd [#allocation5], 0
      %s30 = sshll.u32 %s2, 4
      %s31 = int_to_ptr.hbm [resolvable:$true] %s30
      %s32 = sshll.u32 [#allocation4], 4
      %s33 = int_to_ptr.vmem [resolvable:$true] %s32
      %35 = dma.hbm_to_vmem [thread:$0]  %s31, 32, %s33, [#allocation5]
    $region13: #{_lambda_.7} parent=1 // pred_fallthru
      _
    // Predicated region
    $region14: #{_lambda_.7} parent=1 // pred_check
      _
    $region15: #{_lambda_.7} parent=1 // pred_check_branch
      %37 = sbr.rel (0) target = $region17
    $region16: #{_lambda_.7} parent=1 // pred_region
      %39 = dma.done [#allocation3], 2048
    $region17: #{_lambda_.7} parent=1 // pred_fallthru
      _
    // Predicated region
    $region18: #{_lambda_.7} parent=1 // pred_check
      _
    $region19: #{_lambda_.7} parent=1 // pred_check_branch
      %41 = sbr.rel (0) target = $region21
    $region20: #{_lambda_.7} parent=1 // pred_region
      %43 = dma.done [#allocation5], 32
    $region21: #{_lambda_.7} parent=1 // pred_fallthru
      _
    %v44 = vld [vmem:[%s0] sm:$0xff]
    %v45 = vld [vmem:[%s0 + $0x8] sm:$0xff]
    %v46 = vld [vmem:[#allocation2] sm:$0xff]
    %v47 = vld [vmem:[#allocation2 + $0x8] sm:$0xff]
    %v48 = vld [vmem:[#allocation2 + $0x10] sm:$0xff]
    %v49 = vld [vmem:[#allocation2 + $0x18] sm:$0xff]
    %v50 = vld [vmem:[#allocation2 + $0x20] sm:$0xff]
    %v51 = vld [vmem:[#allocation2 + $0x28] sm:$0xff]
    %v52 = vld [vmem:[#allocation2 + $0x30] sm:$0xff]
    %v53 = vld [vmem:[#allocation2 + $0x38] sm:$0xff]
    %v54 = vld [vmem:[#allocation2 + $0x40] sm:$0xff]
    %v55 = vld [vmem:[#allocation2 + $0x48] sm:$0xff]
    %v56 = vld [vmem:[#allocation2 + $0x50] sm:$0xff]
    %v57 = vld [vmem:[#allocation2 + $0x58] sm:$0xff]
    %v58 = vld [vmem:[#allocation2 + $0x60] sm:$0xff]
    %v59 = vld [vmem:[#allocation2 + $0x68] sm:$0xff]
    %v60 = vld [vmem:[#allocation2 + $0x70] sm:$0xff]
    %v61 = vld [vmem:[#allocation2 + $0x78] sm:$0xff]
    %v62 = vld [vmem:[#allocation4] sm:$0x3]
    %v64 = vperm.slane %v62, 0
    %v65 = vperm.slane %v62, 1
    %vm68 = vcmask 523264
    %v70 = vsel %vm68, %v44, 0
    %v73 = vsel %vm68, %v45, 0
    %75 = vmatpush.msra.mxu0 0.0
    %76 = vmatpush.msra.mxu0 0.0
    %77 = vmatpush.msra.mxu0 0.0
    %78 = vmatpush.msra.mxu0 0.0
    %79 = vmatpush.msra.mxu0 0.0
    %80 = vmatpush.msra.mxu0 0.0
    %81 = vmatpush.msra.mxu0 0.0
    %82 = vmatpush.msra.mxu0 0.0
    %83 = vmatpush.msra.mxu0 %v60
    %84 = vmatpush.msra.mxu0 %v58
    %85 = vmatpush.msra.mxu0 %v56
    %86 = vmatpush.msra.mxu0 %v54
    %87 = vmatpush.msra.mxu0 %v52
    %88 = vmatpush.msra.mxu0 %v50
    %89 = vmatpush.msra.mxu0 %v48
    %90 = vmatpush.msra.mxu0 %v46
    %91 = vmatmul.f32.gmra.mxu0 %v70
    %v92 = vpop.f32.mrf.mxu0
    %v93 = vadd.f32 %v64, %v92
    %94 = vmatmul.f32.gmra.mxu0 %v73
    %v95 = vpop.f32.mrf.mxu0
    %v96 = vadd.f32 %v64, %v95
    %97 = vdwg.mxu0
    %98 = vmatpush.msra.mxu0 0.0
    %99 = vmatpush.msra.mxu0 0.0
    %100 = vmatpush.msra.mxu0 0.0
    %101 = vmatpush.msra.mxu0 0.0
    %102 = vmatpush.msra.mxu0 0.0
    %103 = vmatpush.msra.mxu0 0.0
    %104 = vmatpush.msra.mxu0 0.0
    %105 = vmatpush.msra.mxu0 0.0
    %106 = vmatpush.msra.mxu0 %v61
    %107 = vmatpush.msra.mxu0 %v59
    %108 = vmatpush.msra.mxu0 %v57
    %109 = vmatpush.msra.mxu0 %v55
    %110 = vmatpush.msra.mxu0 %v53
    %111 = vmatpush.msra.mxu0 %v51
    %112 = vmatpush.msra.mxu0 %v49
    %113 = vmatpush.msra.mxu0 %v47
    %114 = vmatmul.f32.gmra.mxu0 %v70
    %v115 = vpop.f32.mrf.mxu0
    %v116 = vadd.f32 %v65, %v115
    %117 = vmatmul.f32.gmra.mxu0 %v73
    %v118 = vpop.f32.mrf.mxu0
    %v119 = vadd.f32 %v65, %v118
    %120 = vdwg.mxu0
    %121 = vst [vmem:[%s3] sm:$0xff] %v93
    %122 = vst [vmem:[%s3 + $0x8] sm:$0xff] %v116
    %123 = vst [vmem:[%s3 + $0x10] sm:$0xff] %v96
    %124 = vst [vmem:[%s3 + $0x18] sm:$0xff] %v119
    // Predicated region
    $region22: #{_lambda_.7} parent=1 // pred_check
      _
    $region23: #{_lambda_.7} parent=1 // pred_check_branch
      %126 = sbr.rel (0) target = $region25
    $region24: #{_lambda_.7} parent=1 // pred_region
      _
    $region25: #{_lambda_.7} parent=1 // pred_fallthru
      _
    // Predicated region
    $region26: #{_lambda_.7} parent=1 // pred_check
      _
    $region27: #{_lambda_.7} parent=1 // pred_check_branch
      %128 = sbr.rel (0) target = $region29
    $region28: #{_lambda_.7} parent=1 // pred_region
      _
    $region29: #{_lambda_.7} parent=1 // pred_fallthru
      _
    %129 = vsyncpa [#allocation3], 1
    %130 = vsyncpa [#allocation5], 1

// kernel: _lambda_.8
$region0: #{_lambda_.8}
  #allocation0 [shape = 'u32[]', space=smem, size = 0x4, offset = 0x4, fixed_abs, tag = 'smem constant byte address 0x4 - core index']
  #allocation1 [shape = 'u32[72,128]{1,0:T(1,128)}', space=vmem, size = 0x9000, scoped, tag = 'internal scratch']
  #allocation2 [shape = 'f32[2,128]{1,0:T(2,128)}', space=vmem, size = 0x400, scoped, tag = 'scratch operand']
  #allocation3 [shape = 'f32[2,32]{1,0:T(2,128)}', space=vmem, size = 0x400, scoped, tag = 'scratch operand']
  %s0 = inlined_call_operand.vmem [shape: f32[2,8,2,128], index: 0, kind: input, shape index: {}]
  %s1 = inlined_call_operand.hbm [shape: f32[2,128,128], index: 1, kind: input, shape index: {}]
  %s2 = inlined_call_operand.vmem [shape: f32[2,8,2,128], index: 2, kind: output, shape index: {}]
  %s3 = sld [smem:[#allocation0]]
  $region49: #{_lambda_.8} parent=0
    _
  %s5 = ssub.s32 1, %s3
  %s6 = scalar_select 0, %s5, %s3
  $region1: #{_lambda_.8} parent=0
    #allocation4 [shape = 'u8[131072]{0}', space=vmem, size = 0x20000, scoped, tag = 'input window, operand 1']
    #allocation5 [shape = 's32[2]{0}', space=sflag, size = 0x8, scoped, tag = 'scoped memory for _lambda_.8']
    %7 = vsyncpa [#allocation5], 0
    %s8 = scalar_lea.sflag [#allocation5], 1
    %9 = vsyncpa %s8, 0
    loop: start=0, step=1, limit=4
    $region2: #{_lambda_.8} parent=1 // loop_pre_header
      _
    $region3: #{_lambda_.8} parent=1 // loop_header
      %s11 = sphi 0, %s15
      %p12 = scmp.ge.s32.totalorder %s11, 4
      %s18 = sphi 0, %s30
      %s19 = sphi 0, %s26
      %s20 = sphi 0, %s18
      %s21 = sphi 0, %s19
      %s22 = sphi 0, %s20
      %s23 = sphi 0, %s21
      %s35 = sphi 0, %s37
      %s38 = sphi 0, %s35
      %s39 = sphi 0, %s38
      %s55 = sphi 0, %s39
      %s61 = sphi 0, %s63
      %s64 = sphi 0, %s61
      %s65 = sphi 0, %s64
      %s81 = sphi 0, %s65
      %s89 = sphi 0, %s91
      %s92 = sphi 0, %s89
      %s93 = sphi 0, %s92
      %s109 = sphi 0, %s93
    $region4: #{_lambda_.8} parent=1 // loop_header_branch
      %14 = sbr.rel (%p12) target = $region8
    $region5: #{_lambda_.8} parent=1 // loop_body
      %s16 = ssub.s32 %s11, 1
      %s17 = ssub.s32 %s11, 2
      %s24 = sadd.s32 1, %s19
      %p25 = scmp.ge.s32.totalorder %s24, 1
      %s26 = scalar_select %p25, 0, %s24
      %s27 = sadd.s32 1, %s18
      %s28 = scalar_select %p25, %s27, %s18
      %p29 = scmp.ge.s32.totalorder %s28, 2
      %s30 = scalar_select %p29, 0, %s28
      %s31 = ssub.s32 %s18, %s30
      %s32 = ssub.s32 %s19, %s26
      %s33 = sor.u32 %s31, %s32
      %p34 = scmp.eq.s32.totalorder %s33, 0
      %s36 = sadd.s32 %s35, 1
      %s37 = scalar_select %p34, %s35, %s36
      %p40 = pneg %p34
      %p41 = scmp.eq.s32.totalorder %s11, 1
      %p42 = por %p40, %p41
      %p43 = scmp.ne.s32.totalorder %s35, %s38
      %p44 = scmp.eq.s32.totalorder %s11, 0
      %p45 = por %p43, %p44
      %p46 = scmp.ne.s32.totalorder %s35, %s38
      %p47 = scmp.eq.s32.totalorder %s16, 1
      %p48 = por %p46, %p47
      %p49 = scmp.ne.s32.totalorder %s38, %s39
      %p50 = scmp.eq.s32.totalorder %s16, 0
      %p51 = por %p49, %p50
      %p52 = scmp.ne.s32.totalorder %s38, %s39
      %p53 = scmp.eq.s32.totalorder %s17, 1
      %p54 = por %p52, %p53
      %p56 = scmp.ne.s32.totalorder %s39, %s55
      %p57 = scmp.eq.s32.totalorder %s17, 0
      %p58 = por %p56, %p57
      %s59 = ssub.s32 %s18, %s30
      %p60 = scmp.eq.s32.totalorder %s59, 0
      %s62 = sadd.s32 %s61, 1
      %s63 = scalar_select %p60, %s61, %s62
      %p66 = pneg %p60
      %p67 = scmp.eq.s32.totalorder %s11, 1
      %p68 = por %p66, %p67
      %p69 = scmp.ne.s32.totalorder %s61, %s64
      %p70 = scmp.eq.s32.totalorder %s11, 0
      %p71 = por %p69, %p70
      %p72 = scmp.ne.s32.totalorder %s61, %s64
      %p73 = scmp.eq.s32.totalorder %s16, 1
      %p74 = por %p72, %p73
      %p75 = scmp.ne.s32.totalorder %s64, %s65
      %p76 = scmp.eq.s32.totalorder %s16, 0
      %p77 = por %p75, %p76
      %p78 = scmp.ne.s32.totalorder %s64, %s65
      %p79 = scmp.eq.s32.totalorder %s17, 1
      %p80 = por %p78, %p79
      %p82 = scmp.ne.s32.totalorder %s65, %s81
      %p83 = scmp.eq.s32.totalorder %s17, 0
      %p84 = por %p82, %p83
      %s85 = ssub.s32 %s18, %s30
      %s86 = ssub.s32 %s19, %s26
      %s87 = sor.u32 %s85, %s86
      %p88 = scmp.eq.s32.totalorder %s87, 0
      %s90 = sadd.s32 %s89, 1
      %s91 = scalar_select %p88, %s89, %s90
      %p94 = pneg %p88
      %p95 = scmp.eq.s32.totalorder %s11, 1
      %p96 = por %p94, %p95
      %p97 = scmp.ne.s32.totalorder %s89, %s92
      %p98 = scmp.eq.s32.totalorder %s11, 0
      %p99 = por %p97, %p98
      %p100 = scmp.ne.s32.totalorder %s89, %s92
      %p101 = scmp.eq.s32.totalorder %s16, 1
      %p102 = por %p100, %p101
      %p103 = scmp.ne.s32.totalorder %s92, %s93
      %p104 = scmp.eq.s32.totalorder %s16, 0
      %p105 = por %p103, %p104
      %p106 = scmp.ne.s32.totalorder %s92, %s93
      %p107 = scmp.eq.s32.totalorder %s17, 1
      %p108 = por %p106, %p107
      %p110 = scmp.ne.s32.totalorder %s93, %s109
      %p111 = scmp.eq.s32.totalorder %s17, 0
      %p112 = por %p110, %p111
      %p113 = scmp.le.s32.totalorder 1, %s11
      %p114 = scmp.lt.s32.totalorder %s11, 3
      %p115 = pnand %p113, %p114
      %p116 = pneg %p115
      // Predicated region
      $region9: #{_lambda_.8} parent=5 // pred_check
        _
      $region10: #{_lambda_.8} parent=5 // pred_check_branch
        %118 = sbr.rel (%p115) target = $region12
      $region11: #{_lambda_.8} parent=5 // pred_region
        %s119 = ssub.s32 %s11, 1
      $region12: #{_lambda_.8} parent=5 // pred_fallthru
        _
      %p120 = scmp.lt.s32.totalorder %s11, 2
      // Predicated region
      $region13: #{_lambda_.8} parent=5 // pred_check
        %p121 = pneg %p120
      $region14: #{_lambda_.8} parent=5 // pred_check_branch
        %123 = sbr.rel (%p121) target = $region16
      $region15: #{_lambda_.8} parent=5 // pred_region
        // Predicated region
        $region17: #{_lambda_.8} parent=15 // pred_check
          %p124 = pneg %p45
        $region18: #{_lambda_.8} parent=15 // pred_check_branch
          %126 = sbr.rel (%p124) target = $region20
        $region19: #{_lambda_.8} parent=15 // pred_region
          %s127 = smul.u32 8, %s19
          %p128 = scmp.lt.s32.totalorder %s18, 1
          %s129 = scalar_select %p128, %s18, 1
          %p130 = scmp.lt.s32.totalorder %s127, 7
          %s131 = scalar_select %p130, %s127, 7
          %s132 = smul.addr %s129, 8
          %s133 = sadd.s32 %s131, %s132
          %s134 = smul.addr %s133, 2
          %s135 = scalar_lea.vmem %s0, %s134
          %s136 = smul.u32 8, %s19
        $region20: #{_lambda_.8} parent=15 // pred_fallthru
          _
        // Predicated region
        $region21: #{_lambda_.8} parent=15 // pred_check
          %p137 = pneg %p71
        $region22: #{_lambda_.8} parent=15 // pred_check_branch
          %139 = sbr.rel (%p137) target = $region24
        $region23: #{_lambda_.8} parent=15 // pred_region
          %s140 = sand.u32 %s61, 1
          %s141 = scalar_lea.sflag [#allocation5], %s140
          %s142 = sand.u32 %s61, 1
          %s143 = smul.addr %s142, 128
          %s144 = scalar_lea.vmem [#allocation4], %s143
          %146 = vsyncadd %s141, 0
          %s147 = smul.addr %s18, 16
          %s148 = smul.addr %s147, 8
          %s149 = scalar_lea.hbm %s1, %s148
          %s150 = sshll.u32 %s149, 4
          %s151 = int_to_ptr.hbm [resolvable:$true] %s150
          %s152 = sshll.u32 %s144, 4
          %s153 = int_to_ptr.vmem [resolvable:$true] %s152
          %158 = dma.hbm_to_vmem [thread:$0]  %s151, 2048, %s153, %s141, 128, 128, 8
        $region24: #{_lambda_.8} parent=15 // pred_fallthru
          _
      $region16: #{_lambda_.8} parent=5 // pred_fallthru
        _
      %p159 = scmp.le.s32.totalorder 1, %s11
      %p160 = scmp.lt.s32.totalorder %s11, 3
      %p161 = pnand %p159, %p160
      %p162 = pneg %p161
      // Predicated region
      $region25: #{_lambda_.8} parent=5 // pred_check
        _
      $region26: #{_lambda_.8} parent=5 // pred_check_branch
        %164 = sbr.rel (%p161) target = $region28
      $region27: #{_lambda_.8} parent=5 // pred_region
        %s165 = ssub.s32 %s11, 1
        %s166 = sand.u32 %s64, 1
        %s167 = scalar_lea.sflag [#allocation5], %s166
        %s168 = sand.u32 %s64, 1
        %s169 = smul.addr %s168, 128
        %s170 = scalar_lea.vmem [#allocation4], %s169
        // Predicated region
        $region29: #{_lambda_.8} parent=27 // pred_check
          %p171 = pneg %p77
        $region30: #{_lambda_.8} parent=27 // pred_check_branch
          %173 = sbr.rel (%p171) target = $region32
        $region31: #{_lambda_.8} parent=27 // pred_region
          %175 = dma.done %s167, 2048
        $region32: #{_lambda_.8} parent=27 // pred_fallthru
          _
        %s176 = smul.u32 8, %s21
        %p177 = scmp.lt.s32.totalorder %s20, 1
        %s178 = scalar_select %p177, %s20, 1
        %p179 = scmp.lt.s32.totalorder %s176, 7
        %s180 = scalar_select %p179, %s176, 7
        %s181 = smul.addr %s178, 8
        %s182 = sadd.s32 %s180, %s181
        %s183 = smul.addr %s182, 2
        %s184 = scalar_lea.vmem %s0, %s183
        %p185 = pneg %p51
        %p186 = pneg %p48
        %s187 = sand.u32 %s64, 1
        %s188 = scalar_lea.sflag [#allocation5], %s187
        %s189 = sand.u32 %s64, 1
        %s190 = smul.addr %s189, 128
        %s191 = scalar_lea.vmem [#allocation4], %s190
        %p192 = pneg %p77
        %p193 = pneg %p74
        %p194 = pneg %p105
        %p195 = pneg %p102
        %s196 = smul.u32 8, %s21
        %p197 = scmp.lt.s32.totalorder %s20, 1
        %s198 = scalar_select %p197, %s20, 1
        %p199 = scmp.lt.s32.totalorder %s196, 7
        %s200 = scalar_select %p199, %s196, 7
        %s201 = smul.addr %s198, 8
        %s202 = sadd.s32 %s200, %s201
        %s203 = smul.addr %s202, 2
        %s204 = scalar_lea.vmem %s2, %s203
        %s205 = smul.u32 8, %s21
        %p206 = scmp.lt.s32.totalorder %s20, 1
        %s207 = scalar_select %p206, %s20, 1
        %p208 = scmp.lt.s32.totalorder %s205, 7
        %s209 = scalar_select %p208, %s205, 7
        %s210 = smul.addr %s207, 8
        %s211 = sadd.s32 %s209, %s210
        %s212 = smul.addr %s211, 2
        %s213 = scalar_lea.vmem %s0, %s212
        %s214 = smul.u32 8, %s21
        %s215 = smul.u32 8, %s21
        %p216 = scmp.lt.s32.totalorder %s20, 1
        %s217 = scalar_select %p216, %s20, 1
        %p218 = scmp.lt.s32.totalorder %s215, 7
        %s219 = scalar_select %p218, %s215, 7
        %s220 = smul.addr %s217, 8
        %s221 = sadd.s32 %s219, %s220
        %s222 = smul.addr %s221, 2
        %s223 = scalar_lea.vmem %s2, %s222
        %s224 = smul.u32 8, %s21
        %p225 = scmp.eq.s32.totalorder %s21, 0
        // Predicated region
        $region33: #{_lambda_.8} parent=27 // pred_check
          %p226 = pneg %p225
        $region34: #{_lambda_.8} parent=27 // pred_check_branch
          %228 = sbr.rel (%p226) target = $region36
        $region35: #{_lambda_.8} parent=27 // pred_region
          %229 = vst [vmem:[#allocation2] sm:$0x3] 0.0
          %vm230 = vcmask 254976
          %231 = vst.msk [vmem:[#allocation3] sm:$0x3] %vm230, 0.0
        $region36: #{_lambda_.8} parent=27 // pred_fallthru
          _
        %v232 = vld [vmem:[%s170] sm:$0xff]
        %v233 = vld [vmem:[%s170 + $0x8] sm:$0xff]
        %v234 = vld [vmem:[%s170 + $0x10] sm:$0xff]
        %v235 = vld [vmem:[%s170 + $0x18] sm:$0xff]
        %v236 = vld [vmem:[%s170 + $0x20] sm:$0xff]
        %v237 = vld [vmem:[%s170 + $0x28] sm:$0xff]
        %v238 = vld [vmem:[%s170 + $0x30] sm:$0xff]
        %v239 = vld [vmem:[%s170 + $0x38] sm:$0xff]
        %v240 = vld [vmem:[%s170 + $0x40] sm:$0xff]
        %v241 = vld [vmem:[%s170 + $0x48] sm:$0xff]
        %v242 = vld [vmem:[%s170 + $0x50] sm:$0xff]
        %v243 = vld [vmem:[%s170 + $0x58] sm:$0xff]
        %v244 = vld [vmem:[%s170 + $0x60] sm:$0xff]
        %v245 = vld [vmem:[%s170 + $0x68] sm:$0xff]
        %v246 = vld [vmem:[%s170 + $0x70] sm:$0xff]
        %v247 = vld [vmem:[%s170 + $0x78] sm:$0xff]
        %v248 = vld [vmem:[#allocation2] sm:$0x3]
        %v249 = vld [vmem:[#allocation3] sm:$0x3]
        %v250 = vld [vmem:[%s213] sm:$0x3]
        %251 = vmatpush.msra.mxu0 %v247
        %252 = vmatpush.msra.mxu0 %v246
        %253 = vmatpush.msra.mxu0 %v245
        %254 = vmatpush.msra.mxu0 %v244
        %255 = vmatpush.msra.mxu0 %v243
        %256 = vmatpush.msra.mxu0 %v242
        %257 = vmatpush.msra.mxu0 %v241
        %258 = vmatpush.msra.mxu0 %v240
        %259 = vmatpush.msra.mxu0 %v239
        %260 = vmatpush.msra.mxu0 %v238
        %261 = vmatpush.msra.mxu0 %v237
        %262 = vmatpush.msra.mxu0 %v236
        %263 = vmatpush.msra.mxu0 %v235
        %264 = vmatpush.msra.mxu0 %v234
        %265 = vmatpush.msra.mxu0 %v233
        %266 = vmatpush.msra.mxu0 %v232
        %267 = vmatmul.f32.gmra.mxu0 %v248
        %v268 = vpop.f32.mrf.mxu0
        %v269 = vadd.f32 0.0, %v268
        %270 = vdwg.mxu0
        %v271 = vadd.f32 %v250, %v269
        %v272 = vsub.f32 0.0, %v271
        %v273 = vmul.f32 %v272, 1.442695
        %v274 = vpow.pop %v273
        %v275 = vadd.f32 %v274, 1.0
        %v276 = vrcp.pop %v275
        %v277 = vmul.f32 %v275, %v276
        %v278 = vsub.f32 1.0, %v277
        %v279 = vmul.f32 %v276, %v278
        %v280 = vadd.f32 %v276, %v279
        %vm281 = vweird.f32 %v275
        %vm282 = vweird.f32 %v276
        %vm283 = vmor %vm281, %vm282
        %v284 = vsel %vm283, %v276, %v280
        %v285 = vand.u32 2147483647, %v275
        %vm286 = vcmp.eq.f32.partialorder %v285, 8.507059e+37
        %v287 = vand.u32 %v275, 2147483648
        %v288 = vor.u32 1.1754944e-38, %v287
        %v289 = vsel %vm286, %v288, %v284
        %v290 = vmul.f32 1.0, %v289
        %v291 = vtanh.pop %v271
        %293 = vrot.lane.b32.xlu0 %v249, 32
        %v294 = vpop.permute.xlu0 %293
        %v296 = vmul.f32 %v290, %v294
        %298 = vrot.lane.b32.xlu0 %v291, 32
        %v299 = vpop.permute.xlu0 %298
        %v301 = vmul.f32 %v290, %v299
        %303 = vrot.lane.b32.xlu0 %v301, 32
        %v304 = vpop.permute.xlu0 %303
        %v306 = vadd.f32 %v296, %v304
        %v307 = vtanh.pop %v306
        %309 = vrot.lane.b32.xlu0 %v307, 32
        %v310 = vpop.permute.xlu0 %309
        %v312 = vmul.f32 %v290, %v310
        %314 = vrot.lane.b32.xlu0 %v312, 64
        %v315 = vpop.permute.xlu0 %314
        %vm317 = vcmask 261120
        %v318 = vsel %vm317, %v315, 0.0
        %319 = vst [vmem:[%s223] sm:$0x3] %v318
        %s320 = scalar_lea.vmem %s213, 2
        %v321 = vld [vmem:[%s320] sm:$0x3]
        %322 = vmatpush.msra.mxu0 %v247
        %323 = vmatpush.msra.mxu0 %v246
        %324 = vmatpush.msra.mxu0 %v245
        %325 = vmatpush.msra.mxu0 %v244
        %326 = vmatpush.msra.mxu0 %v243
        %327 = vmatpush.msra.mxu0 %v242
        %328 = vmatpush.msra.mxu0 %v241
        %329 = vmatpush.msra.mxu0 %v240
        %330 = vmatpush.msra.mxu0 %v239
        %331 = vmatpush.msra.mxu0 %v238
        %332 = vmatpush.msra.mxu0 %v237
        %333 = vmatpush.msra.mxu0 %v236
        %334 = vmatpush.msra.mxu0 %v235
        %335 = vmatpush.msra.mxu0 %v234
        %336 = vmatpush.msra.mxu0 %v233
        %337 = vmatpush.msra.mxu0 %v232
        %338 = vmatmul.f32.gmra.mxu0 %v318
        %v339 = vpop.f32.mrf.mxu0
        %v340 = vadd.f32 0.0, %v339
        %341 = vdwg.mxu0
        %v342 = vadd.f32 %v321, %v340
        %v343 = vsub.f32 0.0, %v342
        %v344 = vmul.f32 %v343, 1.442695
        %v345 = vpow.pop %v344
        %v346 = vadd.f32 %v345, 1.0
        %v347 = vrcp.pop %v346
        %v348 = vmul.f32 %v346, %v347
        %v349 = vsub.f32 1.0, %v348
        %v350 = vmul.f32 %v347, %v349
        %v351 = vadd.f32 %v347, %v350
        %vm352 = vweird.f32 %v346
        %vm353 = vweird.f32 %v347
        %vm354 = vmor %vm352, %vm353
        %v355 = vsel %vm354, %v347, %v351
        %v356 = vand.u32 2147483647, %v346
        %vm357 = vcmp.eq.f32.partialorder %v356, 8.507059e+37
        %v358 = vand.u32 %v346, 2147483648
        %v359 = vor.u32 1.1754944e-38, %v358
        %v360 = vsel %vm357, %v359, %v355
        %v361 = vmul.f32 1.0, %v360
        %v362 = vtanh.pop %v342
        %v363 = vmul.f32 %v361, %v306
        %365 = vrot.lane.b32.xlu0 %v362, 32
        %v366 = vpop.permute.xlu0 %365
        %v368 = vmul.f32 %v361, %v366
        %370 = vrot.lane.b32.xlu0 %v368, 32
        %v371 = vpop.permute.xlu0 %370
        %v373 = vadd.f32 %v363, %v371
        %v374 = vtanh.pop %v373
        %376 = vrot.lane.b32.xlu0 %v374, 32
        %v377 = vpop.permute.xlu0 %376
        %v379 = vmul.f32 %v361, %v377
        %381 = vrot.lane.b32.xlu0 %v379, 64
        %v382 = vpop.permute.xlu0 %381
        %v384 = vsel %vm317, %v382, 0.0
        %s385 = scalar_lea.vmem %s223, 2
        %386 = vst [vmem:[%s385] sm:$0x3] %v384
        %s387 = scalar_lea.vmem %s213, 4
        %v388 = vld [vmem:[%s387] sm:$0x3]
        %389 = vmatpush.msra.mxu0 %v247
        %390 = vmatpush.msra.mxu0 %v246
        %391 = vmatpush.msra.mxu0 %v245
        %392 = vmatpush.msra.mxu0 %v244
        %393 = vmatpush.msra.mxu0 %v243
        %394 = vmatpush.msra.mxu0 %v242
        %395 = vmatpush.msra.mxu0 %v241
        %396 = vmatpush.msra.mxu0 %v240
        %397 = vmatpush.msra.mxu0 %v239
        %398 = vmatpush.msra.mxu0 %v238
        %399 = vmatpush.msra.mxu0 %v237
        %400 = vmatpush.msra.mxu0 %v236
        %401 = vmatpush.msra.mxu0 %v235
        %402 = vmatpush.msra.mxu0 %v234
        %403 = vmatpush.msra.mxu0 %v233
        %404 = vmatpush.msra.mxu0 %v232
        %405 = vmatmul.f32.gmra.mxu0 %v384
        %v406 = vpop.f32.mrf.mxu0
        %v407 = vadd.f32 0.0, %v406
        %408 = vdwg.mxu0
        %v409 = vadd.f32 %v388, %v407
        %v410 = vsub.f32 0.0, %v409
        %v411 = vmul.f32 %v410, 1.442695
        %v412 = vpow.pop %v411
        %v413 = vadd.f32 %v412, 1.0
        %v414 = vrcp.pop %v413
        %v415 = vmul.f32 %v413, %v414
        %v416 = vsub.f32 1.0, %v415
        %v417 = vmul.f32 %v414, %v416
        %v418 = vadd.f32 %v414, %v417
        %vm419 = vweird.f32 %v413
        %vm420 = vweird.f32 %v414
        %vm421 = vmor %vm419, %vm420
        %v422 = vsel %vm421, %v414, %v418
        %v423 = vand.u32 2147483647, %v413
        %vm424 = vcmp.eq.f32.partialorder %v423, 8.507059e+37
        %v425 = vand.u32 %v413, 2147483648
        %v426 = vor.u32 1.1754944e-38, %v425
        %v427 = vsel %vm424, %v426, %v422
        %v428 = vmul.f32 1.0, %v427
        %v429 = vtanh.pop %v409
        %v430 = vmul.f32 %v428, %v373
        %432 = vrot.lane.b32.xlu0 %v429, 32
        %v433 = vpop.permute.xlu0 %432
        %v435 = vmul.f32 %v428, %v433
        %437 = vrot.lane.b32.xlu0 %v435, 32
        %v438 = vpop.permute.xlu0 %437
        %v440 = vadd.f32 %v430, %v438
        %v441 = vtanh.pop %v440
        %443 = vrot.lane.b32.xlu0 %v441, 32
        %v444 = vpop.permute.xlu0 %443
        %v446 = vmul.f32 %v428, %v444
        %448 = vrot.lane.b32.xlu0 %v446, 64
        %v449 = vpop.permute.xlu0 %448
        %v451 = vsel %vm317, %v449, 0.0
        %s452 = scalar_lea.vmem %s223, 4
        %453 = vst [vmem:[%s452] sm:$0x3] %v451
        %s454 = scalar_lea.vmem %s213, 6
        %v455 = vld [vmem:[%s454] sm:$0x3]
        %456 = vmatpush.msra.mxu0 %v247
        %457 = vmatpush.msra.mxu0 %v246
        %458 = vmatpush.msra.mxu0 %v245
        %459 = vmatpush.msra.mxu0 %v244
        %460 = vmatpush.msra.mxu0 %v243
        %461 = vmatpush.msra.mxu0 %v242
        %462 = vmatpush.msra.mxu0 %v241
        %463 = vmatpush.msra.mxu0 %v240
        %464 = vmatpush.msra.mxu0 %v239
        %465 = vmatpush.msra.mxu0 %v238
        %466 = vmatpush.msra.mxu0 %v237
        %467 = vmatpush.msra.mxu0 %v236
        %468 = vmatpush.msra.mxu0 %v235
        %469 = vmatpush.msra.mxu0 %v234
        %470 = vmatpush.msra.mxu0 %v233
        %471 = vmatpush.msra.mxu0 %v232
        %472 = vmatmul.f32.gmra.mxu0 %v451
        %v473 = vpop.f32.mrf.mxu0
        %v474 = vadd.f32 0.0, %v473
        %475 = vdwg.mxu0
        %v476 = vadd.f32 %v455, %v474
        %v477 = vsub.f32 0.0, %v476
        %v478 = vmul.f32 %v477, 1.442695
        %v479 = vpow.pop %v478
        %v480 = vadd.f32 %v479, 1.0
        %v481 = vrcp.pop %v480
        %v482 = vmul.f32 %v480, %v481
        %v483 = vsub.f32 1.0, %v482
        %v484 = vmul.f32 %v481, %v483
        %v485 = vadd.f32 %v481, %v484
        %vm486 = vweird.f32 %v480
        %vm487 = vweird.f32 %v481
        %vm488 = vmor %vm486, %vm487
        %v489 = vsel %vm488, %v481, %v485
        %v490 = vand.u32 2147483647, %v480
        %vm491 = vcmp.eq.f32.partialorder %v490, 8.507059e+37
        %v492 = vand.u32 %v480, 2147483648
        %v493 = vor.u32 1.1754944e-38, %v492
        %v494 = vsel %vm491, %v493, %v489
        %v495 = vmul.f32 1.0, %v494
        %v496 = vtanh.pop %v476
        %v497 = vmul.f32 %v495, %v440
        %499 = vrot.lane.b32.xlu0 %v496, 32
        %v500 = vpop.permute.xlu0 %499
        %v502 = vmul.f32 %v495, %v500
        %504 = vrot.lane.b32.xlu0 %v502, 32
        %v505 = vpop.permute.xlu0 %504
        %v507 = vadd.f32 %v497, %v505
        %v508 = vtanh.pop %v507
        %510 = vrot.lane.b32.xlu0 %v508, 32
        %v511 = vpop.permute.xlu0 %510
        %v513 = vmul.f32 %v495, %v511
        %515 = vrot.lane.b32.xlu0 %v513, 64
        %v516 = vpop.permute.xlu0 %515
        %v518 = vsel %vm317, %v516, 0.0
        %s519 = scalar_lea.vmem %s223, 6
        %520 = vst [vmem:[%s519] sm:$0x3] %v518
        %s521 = scalar_lea.vmem %s213, 8
        %v522 = vld [vmem:[%s521] sm:$0x3]
        %523 = vmatpush.msra.mxu0 %v247
        %524 = vmatpush.msra.mxu0 %v246
        %525 = vmatpush.msra.mxu0 %v245
        %526 = vmatpush.msra.mxu0 %v244
        %527 = vmatpush.msra.mxu0 %v243
        %528 = vmatpush.msra.mxu0 %v242
        %529 = vmatpush.msra.mxu0 %v241
        %530 = vmatpush.msra.mxu0 %v240
        %531 = vmatpush.msra.mxu0 %v239
        %532 = vmatpush.msra.mxu0 %v238
        %533 = vmatpush.msra.mxu0 %v237
        %534 = vmatpush.msra.mxu0 %v236
        %535 = vmatpush.msra.mxu0 %v235
        %536 = vmatpush.msra.mxu0 %v234
        %537 = vmatpush.msra.mxu0 %v233
        %538 = vmatpush.msra.mxu0 %v232
        %539 = vmatmul.f32.gmra.mxu0 %v518
        %v540 = vpop.f32.mrf.mxu0
        %v541 = vadd.f32 0.0, %v540
        %542 = vdwg.mxu0
        %v543 = vadd.f32 %v522, %v541
        %v544 = vsub.f32 0.0, %v543
        %v545 = vmul.f32 %v544, 1.442695
        %v546 = vpow.pop %v545
        %v547 = vadd.f32 %v546, 1.0
        %v548 = vrcp.pop %v547
        %v549 = vmul.f32 %v547, %v548
        %v550 = vsub.f32 1.0, %v549
        %v551 = vmul.f32 %v548, %v550
        %v552 = vadd.f32 %v548, %v551
        %vm553 = vweird.f32 %v547
        %vm554 = vweird.f32 %v548
        %vm555 = vmor %vm553, %vm554
        %v556 = vsel %vm555, %v548, %v552
        %v557 = vand.u32 2147483647, %v547
        %vm558 = vcmp.eq.f32.partialorder %v557, 8.507059e+37
        %v559 = vand.u32 %v547, 2147483648
        %v560 = vor.u32 1.1754944e-38, %v559
        %v561 = vsel %vm558, %v560, %v556
        %v562 = vmul.f32 1.0, %v561
        %v563 = vtanh.pop %v543
        %v564 = vmul.f32 %v562, %v507
        %566 = vrot.lane.b32.xlu0 %v563, 32
        %v567 = vpop.permute.xlu0 %566
        %v569 = vmul.f32 %v562, %v567
        %571 = vrot.lane.b32.xlu0 %v569, 32
        %v572 = vpop.permute.xlu0 %571
        %v574 = vadd.f32 %v564, %v572
        %v575 = vtanh.pop %v574
        %577 = vrot.lane.b32.xlu0 %v575, 32
        %v578 = vpop.permute.xlu0 %577
        %v580 = vmul.f32 %v562, %v578
        %582 = vrot.lane.b32.xlu0 %v580, 64
        %v583 = vpop.permute.xlu0 %582
        %v585 = vsel %vm317, %v583, 0.0
        %s586 = scalar_lea.vmem %s223, 8
        %587 = vst [vmem:[%s586] sm:$0x3] %v585
        %s588 = scalar_lea.vmem %s213, 10
        %v589 = vld [vmem:[%s588] sm:$0x3]
        %590 = vmatpush.msra.mxu0 %v247
        %591 = vmatpush.msra.mxu0 %v246
        %592 = vmatpush.msra.mxu0 %v245
        %593 = vmatpush.msra.mxu0 %v244
        %594 = vmatpush.msra.mxu0 %v243
        %595 = vmatpush.msra.mxu0 %v242
        %596 = vmatpush.msra.mxu0 %v241
        %597 = vmatpush.msra.mxu0 %v240
        %598 = vmatpush.msra.mxu0 %v239
        %599 = vmatpush.msra.mxu0 %v238
        %600 = vmatpush.msra.mxu0 %v237
        %601 = vmatpush.msra.mxu0 %v236
        %602 = vmatpush.msra.mxu0 %v235
        %603 = vmatpush.msra.mxu0 %v234
        %604 = vmatpush.msra.mxu0 %v233
        %605 = vmatpush.msra.mxu0 %v232
        %606 = vmatmul.f32.gmra.mxu0 %v585
        %v607 = vpop.f32.mrf.mxu0
        %v608 = vadd.f32 0.0, %v607
        %609 = vdwg.mxu0
        %v610 = vadd.f32 %v589, %v608
        %v611 = vsub.f32 0.0, %v610
        %v612 = vmul.f32 %v611, 1.442695
        %v613 = vpow.pop %v612
        %v614 = vadd.f32 %v613, 1.0
        %v615 = vrcp.pop %v614
        %v616 = vmul.f32 %v614, %v615
        %v617 = vsub.f32 1.0, %v616
        %v618 = vmul.f32 %v615, %v617
        %v619 = vadd.f32 %v615, %v618
        %vm620 = vweird.f32 %v614
        %vm621 = vweird.f32 %v615
        %vm622 = vmor %vm620, %vm621
        %v623 = vsel %vm622, %v615, %v619
        %v624 = vand.u32 2147483647, %v614
        %vm625 = vcmp.eq.f32.partialorder %v624, 8.507059e+37
        %v626 = vand.u32 %v614, 2147483648
        %v627 = vor.u32 1.1754944e-38, %v626
        %v628 = vsel %vm625, %v627, %v623
        %v629 = vmul.f32 1.0, %v628
        %v630 = vtanh.pop %v610
        %v631 = vmul.f32 %v629, %v574
        %633 = vrot.lane.b32.xlu0 %v630, 32
        %v634 = vpop.permute.xlu0 %633
        %v636 = vmul.f32 %v629, %v634
        %638 = vrot.lane.b32.xlu0 %v636, 32
        %v639 = vpop.permute.xlu0 %638
        %v641 = vadd.f32 %v631, %v639
        %v642 = vtanh.pop %v641
        %644 = vrot.lane.b32.xlu0 %v642, 32
        %v645 = vpop.permute.xlu0 %644
        %v647 = vmul.f32 %v629, %v645
        %649 = vrot.lane.b32.xlu0 %v647, 64
        %v650 = vpop.permute.xlu0 %649
        %v652 = vsel %vm317, %v650, 0.0
        %s653 = scalar_lea.vmem %s223, 10
        %654 = vst [vmem:[%s653] sm:$0x3] %v652
        %s655 = scalar_lea.vmem %s213, 12
        %v656 = vld [vmem:[%s655] sm:$0x3]
        %657 = vmatpush.msra.mxu0 %v247
        %658 = vmatpush.msra.mxu0 %v246
        %659 = vmatpush.msra.mxu0 %v245
        %660 = vmatpush.msra.mxu0 %v244
        %661 = vmatpush.msra.mxu0 %v243
        %662 = vmatpush.msra.mxu0 %v242
        %663 = vmatpush.msra.mxu0 %v241
        %664 = vmatpush.msra.mxu0 %v240
        %665 = vmatpush.msra.mxu0 %v239
        %666 = vmatpush.msra.mxu0 %v238
        %667 = vmatpush.msra.mxu0 %v237
        %668 = vmatpush.msra.mxu0 %v236
        %669 = vmatpush.msra.mxu0 %v235
        %670 = vmatpush.msra.mxu0 %v234
        %671 = vmatpush.msra.mxu0 %v233
        %672 = vmatpush.msra.mxu0 %v232
        %673 = vmatmul.f32.gmra.mxu0 %v652
        %v674 = vpop.f32.mrf.mxu0
        %v675 = vadd.f32 0.0, %v674
        %676 = vdwg.mxu0
        %v677 = vadd.f32 %v656, %v675
        %v678 = vsub.f32 0.0, %v677
        %v679 = vmul.f32 %v678, 1.442695
        %v680 = vpow.pop %v679
        %v681 = vadd.f32 %v680, 1.0
        %v682 = vrcp.pop %v681
        %v683 = vmul.f32 %v681, %v682
        %v684 = vsub.f32 1.0, %v683
        %v685 = vmul.f32 %v682, %v684
        %v686 = vadd.f32 %v682, %v685
        %vm687 = vweird.f32 %v681
        %vm688 = vweird.f32 %v682
        %vm689 = vmor %vm687, %vm688
        %v690 = vsel %vm689, %v682, %v686
        %v691 = vand.u32 2147483647, %v681
        %vm692 = vcmp.eq.f32.partialorder %v691, 8.507059e+37
        %v693 = vand.u32 %v681, 2147483648
        %v694 = vor.u32 1.1754944e-38, %v693
        %v695 = vsel %vm692, %v694, %v690
        %v696 = vmul.f32 1.0, %v695
        %v697 = vtanh.pop %v677
        %v698 = vmul.f32 %v696, %v641
        %700 = vrot.lane.b32.xlu0 %v697, 32
        %v701 = vpop.permute.xlu0 %700
        %v703 = vmul.f32 %v696, %v701
        %705 = vrot.lane.b32.xlu0 %v703, 32
        %v706 = vpop.permute.xlu0 %705
        %v708 = vadd.f32 %v698, %v706
        %v709 = vtanh.pop %v708
        %711 = vrot.lane.b32.xlu0 %v709, 32
        %v712 = vpop.permute.xlu0 %711
        %v714 = vmul.f32 %v696, %v712
        %716 = vrot.lane.b32.xlu0 %v714, 64
        %v717 = vpop.permute.xlu0 %716
        %v719 = vsel %vm317, %v717, 0.0
        %s720 = scalar_lea.vmem %s223, 12
        %721 = vst [vmem:[%s720] sm:$0x3] %v719
        %s722 = scalar_lea.vmem %s213, 14
        %v723 = vld [vmem:[%s722] sm:$0x3]
        %724 = vmatpush.msra.mxu0 %v247
        %725 = vmatpush.msra.mxu0 %v246
        %726 = vmatpush.msra.mxu0 %v245
        %727 = vmatpush.msra.mxu0 %v244
        %728 = vmatpush.msra.mxu0 %v243
        %729 = vmatpush.msra.mxu0 %v242
        %730 = vmatpush.msra.mxu0 %v241
        %731 = vmatpush.msra.mxu0 %v240
        %732 = vmatpush.msra.mxu0 %v239
        %733 = vmatpush.msra.mxu0 %v238
        %734 = vmatpush.msra.mxu0 %v237
        %735 = vmatpush.msra.mxu0 %v236
        %736 = vmatpush.msra.mxu0 %v235
        %737 = vmatpush.msra.mxu0 %v234
        %738 = vmatpush.msra.mxu0 %v233
        %739 = vmatpush.msra.mxu0 %v232
        %740 = vmatmul.f32.gmra.mxu0 %v719
        %v741 = vpop.f32.mrf.mxu0
        %v742 = vadd.f32 0.0, %v741
        %743 = vdwg.mxu0
        %v744 = vadd.f32 %v723, %v742
        %v745 = vsub.f32 0.0, %v744
        %v746 = vmul.f32 %v745, 1.442695
        %v747 = vpow.pop %v746
        %v748 = vadd.f32 %v747, 1.0
        %v749 = vrcp.pop %v748
        %v750 = vmul.f32 %v748, %v749
        %v751 = vsub.f32 1.0, %v750
        %v752 = vmul.f32 %v749, %v751
        %v753 = vadd.f32 %v749, %v752
        %vm754 = vweird.f32 %v748
        %vm755 = vweird.f32 %v749
        %vm756 = vmor %vm754, %vm755
        %v757 = vsel %vm756, %v749, %v753
        %v758 = vand.u32 2147483647, %v748
        %vm759 = vcmp.eq.f32.partialorder %v758, 8.507059e+37
        %v760 = vand.u32 %v748, 2147483648
        %v761 = vor.u32 1.1754944e-38, %v760
        %v762 = vsel %vm759, %v761, %v757
        %v763 = vmul.f32 1.0, %v762
        %v764 = vtanh.pop %v744
        %v765 = vmul.f32 %v763, %v708
        %767 = vrot.lane.b32.xlu0 %v764, 32
        %v768 = vpop.permute.xlu0 %767
        %v770 = vmul.f32 %v763, %v768
        %772 = vrot.lane.b32.xlu0 %v770, 32
        %v773 = vpop.permute.xlu0 %772
        %v775 = vadd.f32 %v765, %v773
        %v776 = vtanh.pop %v775
        %778 = vrot.lane.b32.xlu0 %v776, 32
        %v779 = vpop.permute.xlu0 %778
        %v781 = vmul.f32 %v763, %v779
        %783 = vrot.lane.b32.xlu0 %v781, 64
        %v784 = vpop.permute.xlu0 %783
        %v786 = vsel %vm317, %v784, 0.0
        %s787 = scalar_lea.vmem %s223, 14
        %788 = vst [vmem:[%s787] sm:$0x3] %v786
        %789 = vst [vmem:[#allocation2] sm:$0x3] %v786
        %791 = vrot.lane.b32.xlu0 %v775, 96
        %v792 = vpop.permute.xlu0 %791
        %vm794 = vcmask 254976
        %795 = vst.msk [vmem:[#allocation3] sm:$0x3] %vm794, %v792
        %s796 = smul.u32 8, %s21
        %p797 = scmp.lt.s32.totalorder %s20, 1
        %s798 = scalar_select %p797, %s20, 1
        %p799 = scmp.lt.s32.totalorder %s796, 7
        %s800 = scalar_select %p799, %s796, 7
        %s801 = smul.addr %s798, 8
        %s802 = sadd.s32 %s800, %s801
        %s803 = smul.addr %s802, 2
        %s804 = scalar_lea.vmem %s2, %s803
        // Predicated region
        $region37: #{_lambda_.8} parent=27 // pred_check
          %p805 = pneg %p102
        $region38: #{_lambda_.8} parent=27 // pred_check_branch
          %807 = sbr.rel (%p805) target = $region40
        $region39: #{_lambda_.8} parent=27 // pred_region
          %s808 = smul.u32 8, %s21
        $region40: #{_lambda_.8} parent=27 // pred_fallthru
          _
      $region28: #{_lambda_.8} parent=5 // pred_fallthru
        _
      %p809 = scmp.le.s32.totalorder 2, %s11
      // Predicated region
      $region41: #{_lambda_.8} parent=5 // pred_check
        %p810 = pneg %p809
      $region42: #{_lambda_.8} parent=5 // pred_check_branch
        %812 = sbr.rel (%p810) target = $region44
      $region43: #{_lambda_.8} parent=5 // pred_region
        %s813 = ssub.s32 %s11, 2
        // Predicated region
        $region45: #{_lambda_.8} parent=43 // pred_check
          %p814 = pneg %p108
        $region46: #{_lambda_.8} parent=43 // pred_check_branch
          %816 = sbr.rel (%p814) target = $region48
        $region47: #{_lambda_.8} parent=43 // pred_region
          %s817 = smul.u32 8, %s23
          %p818 = scmp.lt.s32.totalorder %s22, 1
          %s819 = scalar_select %p818, %s22, 1
          %p820 = scmp.lt.s32.totalorder %s817, 7
          %s821 = scalar_select %p820, %s817, 7
          %s822 = smul.addr %s819, 8
          %s823 = sadd.s32 %s821, %s822
          %s824 = smul.addr %s823, 2
          %s825 = scalar_lea.vmem %s2, %s824
        $region48: #{_lambda_.8} parent=43 // pred_fallthru
          _
      $region44: #{_lambda_.8} parent=5 // pred_fallthru
        _
    $region6: #{_lambda_.8} parent=1 // loop_footer
      %s15 = sadd.s32 1, %s11
    $region7: #{_lambda_.8} parent=1 // loop_footer_branch
      %10 = sbr.rel target = $region3
    $region8: #{_lambda_.8} parent=1 // loop_exit
      _
    %826 = vsyncpa [#allocation5], 1
    %s827 = scalar_lea.sflag [#allocation5], 1
    %828 = vsyncpa %s827, 1

// kernel: _lambda_.11
$region0: #{_lambda_.11}
  #allocation0 [shape = 'u32[]', space=smem, size = 0x4, offset = 0x4, fixed_abs, tag = 'smem constant byte address 0x4 - core index']
  #allocation1 [shape = 'u32[72,128]{1,0:T(1,128)}', space=vmem, size = 0x9000, scoped, tag = 'internal scratch']
  %s0 = inlined_call_operand.vmem [shape: f32[32,32], index: 0, kind: input, shape index: {}]
  %s1 = inlined_call_operand.hbm [shape: f32[32,128], index: 1, kind: input, shape index: {}]
  %s2 = inlined_call_operand.hbm [shape: f32[1,128], index: 2, kind: input, shape index: {}]
  %s3 = inlined_call_operand.vmem [shape: f32[32,128], index: 3, kind: output, shape index: {}]
  %s4 = sld [smem:[#allocation0]]
  $region30: #{_lambda_.11} parent=0
    _
  %s6 = ssub.s32 1, %s4
  %s7 = scalar_select 0, %s6, %s4
  $region1: #{_lambda_.11} parent=0
    #allocation2 [shape = 'u8[16384]{0}', space=vmem, size = 0x4000, scoped, tag = 'input window, operand 1, single buffered']
    #allocation3 [shape = 's32[1]{0}', space=sflag, size = 0x4, scoped, tag = 'scoped memory for _lambda_.11']
    #allocation4 [shape = 'u8[512]{0}', space=vmem, size = 0x400, scoped, tag = 'input window, operand 2, single buffered']
    #allocation5 [shape = 's32[1]{0}', space=sflag, size = 0x4, scoped, tag = 'scoped memory for _lambda_.11']
    %8 = vsyncpa [#allocation3], 0
    %9 = vsyncpa [#allocation5], 0
    // Predicated region
    $region2: #{_lambda_.11} parent=1 // pred_check
      _
    $region3: #{_lambda_.11} parent=1 // pred_check_branch
      %11 = sbr.rel (0) target = $region5
    $region4: #{_lambda_.11} parent=1 // pred_region
      _
    $region5: #{_lambda_.11} parent=1 // pred_fallthru
      _
    // Predicated region
    $region6: #{_lambda_.11} parent=1 // pred_check
      _
    $region7: #{_lambda_.11} parent=1 // pred_check_branch
      %13 = sbr.rel (0) target = $region9
    $region8: #{_lambda_.11} parent=1 // pred_region
      %15 = vsyncadd [#allocation3], 0
      %s16 = sshll.u32 %s1, 4
      %s17 = int_to_ptr.hbm [resolvable:$true] %s16
      %s18 = sshll.u32 [#allocation2], 4
      %s19 = int_to_ptr.vmem [resolvable:$true] %s18
      %24 = dma.hbm_to_vmem [thread:$0]  %s17, 512, %s19, [#allocation3], 128, 128, 8
    $region9: #{_lambda_.11} parent=1 // pred_fallthru
      _
    // Predicated region
    $region10: #{_lambda_.11} parent=1 // pred_check
      _
    $region11: #{_lambda_.11} parent=1 // pred_check_branch
      %26 = sbr.rel (0) target = $region13
    $region12: #{_lambda_.11} parent=1 // pred_region
      %28 = vsyncadd [#allocation5], 0
      %s30 = sshll.u32 %s2, 4
      %s31 = int_to_ptr.hbm [resolvable:$true] %s30
      %s32 = sshll.u32 [#allocation4], 4
      %s33 = int_to_ptr.vmem [resolvable:$true] %s32
      %35 = dma.hbm_to_vmem [thread:$0]  %s31, 16, %s33, [#allocation5]
    $region13: #{_lambda_.11} parent=1 // pred_fallthru
      _
    // Predicated region
    $region14: #{_lambda_.11} parent=1 // pred_check
      _
    $region15: #{_lambda_.11} parent=1 // pred_check_branch
      %37 = sbr.rel (0) target = $region17
    $region16: #{_lambda_.11} parent=1 // pred_region
      %39 = dma.done [#allocation3], 512
    $region17: #{_lambda_.11} parent=1 // pred_fallthru
      _
    // Predicated region
    $region18: #{_lambda_.11} parent=1 // pred_check
      _
    $region19: #{_lambda_.11} parent=1 // pred_check_branch
      %41 = sbr.rel (0) target = $region21
    $region20: #{_lambda_.11} parent=1 // pred_region
      %43 = dma.done [#allocation5], 16
    $region21: #{_lambda_.11} parent=1 // pred_fallthru
      _
    %v44 = vld [vmem:[%s0] sm:$0xff]
    %v45 = vld [vmem:[%s0 + $0x8] sm:$0xff]
    %v46 = vld [vmem:[%s0 + $0x10] sm:$0xff]
    %v47 = vld [vmem:[%s0 + $0x18] sm:$0xff]
    %v48 = vld [vmem:[#allocation2] sm:$0xff]
    %v49 = vld [vmem:[#allocation2 + $0x8] sm:$0xff]
    %v50 = vld [vmem:[#allocation2 + $0x10] sm:$0xff]
    %v51 = vld [vmem:[#allocation2 + $0x18] sm:$0xff]
    %v52 = vld [vmem:[#allocation4] sm:$0x1]
    %v54 = vperm.slane %v52, 0
    %vm56 = vcmask 261120
    %v58 = vsel %vm56, %v44, 0
    %v61 = vsel %vm56, %v45, 0
    %v64 = vsel %vm56, %v46, 0
    %v67 = vsel %vm56, %v47, 0
    %69 = vmatpush.msra.mxu0 0.0
    %70 = vmatpush.msra.mxu0 0.0
    %71 = vmatpush.msra.mxu0 0.0
    %72 = vmatpush.msra.mxu0 0.0
    %73 = vmatpush.msra.mxu0 0.0
    %74 = vmatpush.msra.mxu0 0.0
    %75 = vmatpush.msra.mxu0 0.0
    %76 = vmatpush.msra.mxu0 0.0
    %77 = vmatpush.msra.mxu0 0.0
    %78 = vmatpush.msra.mxu0 0.0
    %79 = vmatpush.msra.mxu0 0.0
    %80 = vmatpush.msra.mxu0 0.0
    %81 = vmatpush.msra.mxu0 %v51
    %82 = vmatpush.msra.mxu0 %v50
    %83 = vmatpush.msra.mxu0 %v49
    %84 = vmatpush.msra.mxu0 %v48
    %85 = vmatmul.f32.gmra.mxu0 %v58
    %v86 = vpop.f32.mrf.mxu0
    %v87 = vadd.f32 %v54, %v86
    %88 = vmatmul.f32.gmra.mxu0 %v61
    %v89 = vpop.f32.mrf.mxu0
    %v90 = vadd.f32 %v54, %v89
    %91 = vmatmul.f32.gmra.mxu0 %v64
    %v92 = vpop.f32.mrf.mxu0
    %v93 = vadd.f32 %v54, %v92
    %94 = vmatmul.f32.gmra.mxu0 %v67
    %v95 = vpop.f32.mrf.mxu0
    %v96 = vadd.f32 %v54, %v95
    %97 = vdwg.mxu0
    %98 = vst [vmem:[%s3] sm:$0xff] %v87
    %99 = vst [vmem:[%s3 + $0x8] sm:$0xff] %v90
    %100 = vst [vmem:[%s3 + $0x10] sm:$0xff] %v93
    %101 = vst [vmem:[%s3 + $0x18] sm:$0xff] %v96
    // Predicated region
    $region22: #{_lambda_.11} parent=1 // pred_check
      _
    $region23: #{_lambda_.11} parent=1 // pred_check_branch
      %103 = sbr.rel (0) target = $region25
    $region24: #{_lambda_.11} parent=1 // pred_region
      _
    $region25: #{_lambda_.11} parent=1 // pred_fallthru
      _
    // Predicated region
    $region26: #{_lambda_.11} parent=1 // pred_check
      _
    $region27: #{_lambda_.11} parent=1 // pred_check_branch
      %105 = sbr.rel (0) target = $region29
    $region28: #{_lambda_.11} parent=1 // pred_region
      _
    $region29: #{_lambda_.11} parent=1 // pred_fallthru
      _
    %106 = vsyncpa [#allocation3], 1
    %107 = vsyncpa [#allocation5], 1

// kernel: _lambda_.6
$region0: #{_lambda_.6}
  #allocation0 [shape = 'u32[]', space=smem, size = 0x4, offset = 0x4, fixed_abs, tag = 'smem constant byte address 0x4 - core index']
  #allocation1 [shape = 'u32[72,128]{1,0:T(1,128)}', space=vmem, size = 0x9000, scoped, tag = 'internal scratch']
  %s0 = inlined_call_operand.hbm [shape: s32[16,16], index: 0, kind: input, shape index: {}]
  %s1 = inlined_call_operand.hbm [shape: f32[800,896], index: 1, kind: input, shape index: {}]
  %s2 = inlined_call_operand.hbm [shape: f32[1,128], index: 2, kind: input, shape index: {}]
  %s3 = inlined_call_operand.vmem [shape: f32[16,128], index: 3, kind: output, shape index: {}]
  %s4 = sld [smem:[#allocation0]]
  $region34: #{_lambda_.6} parent=0
    _
  %s6 = ssub.s32 1, %s4
  %s7 = scalar_select 0, %s6, %s4
  $region1: #{_lambda_.6} parent=0
    #allocation2 [shape = 'u8[8192]{0}', space=vmem, size = 0x2000, scoped, tag = 'input window, operand 0, single buffered']
    #allocation3 [shape = 's32[1]{0}', space=sflag, size = 0x4, scoped, tag = 'scoped memory for _lambda_.6']
    #allocation4 [shape = 'u8[2867200]{0}', space=vmem, size = 0x2bc000, scoped, tag = 'input window, operand 1, single buffered']
    #allocation5 [shape = 's32[1]{0}', space=sflag, size = 0x4, scoped, tag = 'scoped memory for _lambda_.6']
    #allocation6 [shape = 'u8[512]{0}', space=vmem, size = 0x400, scoped, tag = 'input window, operand 2, single buffered']
    %8 = vsyncpa [#allocation3], 0
    %9 = vsyncpa [#allocation5], 0
    // Predicated region
    $region2: #{_lambda_.6} parent=1 // pred_check
      _
    $region3: #{_lambda_.6} parent=1 // pred_check_branch
      %11 = sbr.rel (0) target = $region5
    $region4: #{_lambda_.6} parent=1 // pred_region
      %13 = vsyncadd [#allocation3], 0
      %s14 = sshll.u32 %s0, 4
      %s15 = int_to_ptr.hbm [resolvable:$true] %s14
      %s16 = sshll.u32 [#allocation2], 4
      %s17 = int_to_ptr.vmem [resolvable:$true] %s16
      %22 = dma.hbm_to_vmem [thread:$0]  %s15, 256, %s17, [#allocation3], 128, 128, 8
    $region5: #{_lambda_.6} parent=1 // pred_fallthru
      _
    // Predicated region
    $region6: #{_lambda_.6} parent=1 // pred_check
      _
    $region7: #{_lambda_.6} parent=1 // pred_check_branch
      %24 = sbr.rel (0) target = $region9
    $region8: #{_lambda_.6} parent=1 // pred_region
      %26 = vsyncadd [#allocation5], 0
      %s27 = sshll.u32 %s1, 4
      %s28 = int_to_ptr.hbm [resolvable:$true] %s27
      %s29 = sshll.u32 [#allocation4], 4
      %s30 = int_to_ptr.vmem [resolvable:$true] %s29
      %35 = dma.hbm_to_vmem [thread:$0]  %s28, 89600, %s30, [#allocation5], 896, 896, 56
    $region9: #{_lambda_.6} parent=1 // pred_fallthru
      _
    // Predicated region
    $region10: #{_lambda_.6} parent=1 // pred_check
      _
    $region11: #{_lambda_.6} parent=1 // pred_check_branch
      %37 = sbr.rel (0) target = $region13
    $region12: #{_lambda_.6} parent=1 // pred_region
      %39 = vsyncadd [#allocation5], 0
      %s41 = sshll.u32 %s2, 4
      %s42 = int_to_ptr.hbm [resolvable:$true] %s41
      %s43 = sshll.u32 [#allocation6], 4
      %s44 = int_to_ptr.vmem [resolvable:$true] %s43
      %46 = dma.hbm_to_vmem [thread:$0]  %s42, 16, %s44, [#allocation5]
    $region13: #{_lambda_.6} parent=1 // pred_fallthru
      _
    // Predicated region
    $region14: #{_lambda_.6} parent=1 // pred_check
      _
    $region15: #{_lambda_.6} parent=1 // pred_check_branch
      %48 = sbr.rel (0) target = $region17
    $region16: #{_lambda_.6} parent=1 // pred_region
      %50 = dma.done [#allocation3], 256
    $region17: #{_lambda_.6} parent=1 // pred_fallthru
      _
    // Predicated region
    $region18: #{_lambda_.6} parent=1 // pred_check
      _
    $region19: #{_lambda_.6} parent=1 // pred_check_branch
      %52 = sbr.rel (0) target = $region21
    $region20: #{_lambda_.6} parent=1 // pred_region
      %54 = dma.done [#allocation5], 89600
    $region21: #{_lambda_.6} parent=1 // pred_fallthru
      _
    // Predicated region
    $region22: #{_lambda_.6} parent=1 // pred_check
      _
    $region23: #{_lambda_.6} parent=1 // pred_check_branch
      %56 = sbr.rel (0) target = $region25
    $region24: #{_lambda_.6} parent=1 // pred_region
      %58 = dma.done [#allocation5], 16
    $region25: #{_lambda_.6} parent=1 // pred_fallthru
      _
    %v59 = vld [vmem:[#allocation2] sm:$0xff]
    %v60 = vld [vmem:[#allocation2 + $0x8] sm:$0xff]
    %v61 = vlaneseq
    %v62 = vshrl.u32 %v61, 7
    %v63 = vadd.s32 %v62, 8
    %v64 = vadd.s32 %v62, 16
    %v65 = vadd.s32 %v62, 24
    %v66 = vadd.s32 %v62, 32
    %v67 = vadd.s32 %v62, 40
    %v68 = vadd.s32 %v62, 48
    %v69 = vrot.slane %v59, 1
    %v70 = vrot.slane %v59, 2
    %v71 = vrot.slane %v59, 3
    %v72 = vrot.slane %v59, 4
    %v73 = vrot.slane %v59, 5
    %v74 = vrot.slane %v59, 6
    %v75 = vrot.slane %v59, 7
    %v76 = vrot.slane %v60, 1
    %v77 = vrot.slane %v60, 2
    %v78 = vrot.slane %v60, 3
    %v79 = vrot.slane %v60, 4
    %v80 = vrot.slane %v60, 5
    %v81 = vrot.slane %v60, 6
    %v82 = vrot.slane %v60, 7
    %v83 = vperm.slane %v59, 0
    %v84 = vperm.slane %v69, 0
    %v85 = vperm.slane %v70, 0
    %v86 = vperm.slane %v71, 0
    %v87 = vperm.slane %v72, 0
    %v88 = vperm.slane %v73, 0
    %v89 = vperm.slane %v74, 0
    %v90 = vperm.slane %v75, 0
    %v91 = vperm.slane %v60, 0
    %v92 = vperm.slane %v76, 0
    %v93 = vperm.slane %v77, 0
    %v94 = vperm.slane %v78, 0
    %v95 = vperm.slane %v79, 0
    %v96 = vperm.slane %v80, 0
    %v97 = vperm.slane %v81, 0
    %v98 = vperm.slane %v82, 0
    %vm99 = vcmp.eq.s32.totalorder %v62, %v83
    %vm100 = vcmp.eq.s32.totalorder %v63, %v83
    %vm101 = vcmp.eq.s32.totalorder %v64, %v83
    %vm102 = vcmp.eq.s32.totalorder %v65, %v83
    %vm103 = vcmp.eq.s32.totalorder %v66, %v83
    %vm104 = vcmp.eq.s32.totalorder %v67, %v83
    %vm105 = vcmp.eq.s32.totalorder %v68, %v83
    %vm106 = vcmp.eq.s32.totalorder %v62, %v84
    %vm107 = vcmp.eq.s32.totalorder %v63, %v84
    %vm108 = vcmp.eq.s32.totalorder %v64, %v84
    %vm109 = vcmp.eq.s32.totalorder %v65, %v84
    %vm110 = vcmp.eq.s32.totalorder %v66, %v84
    %vm111 = vcmp.eq.s32.totalorder %v67, %v84
    %vm112 = vcmp.eq.s32.totalorder %v68, %v84
    %vm113 = vcmp.eq.s32.totalorder %v62, %v85
    %vm114 = vcmp.eq.s32.totalorder %v63, %v85
    %vm115 = vcmp.eq.s32.totalorder %v64, %v85
    %vm116 = vcmp.eq.s32.totalorder %v65, %v85
    %vm117 = vcmp.eq.s32.totalorder %v66, %v85
    %vm118 = vcmp.eq.s32.totalorder %v67, %v85
    %vm119 = vcmp.eq.s32.totalorder %v68, %v85
    %vm120 = vcmp.eq.s32.totalorder %v62, %v86
    %vm121 = vcmp.eq.s32.totalorder %v63, %v86
    %vm122 = vcmp.eq.s32.totalorder %v64, %v86
    %vm123 = vcmp.eq.s32.totalorder %v65, %v86
    %vm124 = vcmp.eq.s32.totalorder %v66, %v86
    %vm125 = vcmp.eq.s32.totalorder %v67, %v86
    %vm126 = vcmp.eq.s32.totalorder %v68, %v86
    %vm127 = vcmp.eq.s32.totalorder %v62, %v87
    %vm128 = vcmp.eq.s32.totalorder %v63, %v87
    %vm129 = vcmp.eq.s32.totalorder %v64, %v87
    %vm130 = vcmp.eq.s32.totalorder %v65, %v87
    %vm131 = vcmp.eq.s32.totalorder %v66, %v87
    %vm132 = vcmp.eq.s32.totalorder %v67, %v87
    %vm133 = vcmp.eq.s32.totalorder %v68, %v87
    %vm134 = vcmp.eq.s32.totalorder %v62, %v88
    %vm135 = vcmp.eq.s32.totalorder %v63, %v88
    %vm136 = vcmp.eq.s32.totalorder %v64, %v88
    %vm137 = vcmp.eq.s32.totalorder %v65, %v88
    %vm138 = vcmp.eq.s32.totalorder %v66, %v88
    %vm139 = vcmp.eq.s32.totalorder %v67, %v88
    %vm140 = vcmp.eq.s32.totalorder %v68, %v88
    %vm141 = vcmp.eq.s32.totalorder %v62, %v89
    %vm142 = vcmp.eq.s32.totalorder %v63, %v89
    %vm143 = vcmp.eq.s32.totalorder %v64, %v89
    %vm144 = vcmp.eq.s32.totalorder %v65, %v89
    %vm145 = vcmp.eq.s32.totalorder %v66, %v89
    %vm146 = vcmp.eq.s32.totalorder %v67, %v89
    %vm147 = vcmp.eq.s32.totalorder %v68, %v89
    %vm148 = vcmp.eq.s32.totalorder %v62, %v90
    %vm149 = vcmp.eq.s32.totalorder %v63, %v90
    %vm150 = vcmp.eq.s32.totalorder %v64, %v90
    %vm151 = vcmp.eq.s32.totalorder %v65, %v90
    %vm152 = vcmp.eq.s32.totalorder %v66, %v90
    %vm153 = vcmp.eq.s32.totalorder %v67, %v90
    %vm154 = vcmp.eq.s32.totalorder %v68, %v90
    %vm155 = vcmp.eq.s32.totalorder %v62, %v91
    %vm156 = vcmp.eq.s32.totalorder %v63, %v91
    %vm157 = vcmp.eq.s32.totalorder %v64, %v91
    %vm158 = vcmp.eq.s32.totalorder %v65, %v91
    %vm159 = vcmp.eq.s32.totalorder %v66, %v91
    %vm160 = vcmp.eq.s32.totalorder %v67, %v91
    %vm161 = vcmp.eq.s32.totalorder %v68, %v91
    %vm162 = vcmp.eq.s32.totalorder %v62, %v92
    %vm163 = vcmp.eq.s32.totalorder %v63, %v92
    %vm164 = vcmp.eq.s32.totalorder %v64, %v92
    %vm165 = vcmp.eq.s32.totalorder %v65, %v92
    %vm166 = vcmp.eq.s32.totalorder %v66, %v92
    %vm167 = vcmp.eq.s32.totalorder %v67, %v92
    %vm168 = vcmp.eq.s32.totalorder %v68, %v92
    %vm169 = vcmp.eq.s32.totalorder %v62, %v93
    %vm170 = vcmp.eq.s32.totalorder %v63, %v93
    %vm171 = vcmp.eq.s32.totalorder %v64, %v93
    %vm172 = vcmp.eq.s32.totalorder %v65, %v93
    %vm173 = vcmp.eq.s32.totalorder %v66, %v93
    %vm174 = vcmp.eq.s32.totalorder %v67, %v93
    %vm175 = vcmp.eq.s32.totalorder %v68, %v93
    %vm176 = vcmp.eq.s32.totalorder %v62, %v94
    %vm177 = vcmp.eq.s32.totalorder %v63, %v94
    %vm178 = vcmp.eq.s32.totalorder %v64, %v94
    %vm179 = vcmp.eq.s32.totalorder %v65, %v94
    %vm180 = vcmp.eq.s32.totalorder %v66, %v94
    %vm181 = vcmp.eq.s32.totalorder %v67, %v94
    %vm182 = vcmp.eq.s32.totalorder %v68, %v94
    %vm183 = vcmp.eq.s32.totalorder %v62, %v95
    %vm184 = vcmp.eq.s32.totalorder %v63, %v95
    %vm185 = vcmp.eq.s32.totalorder %v64, %v95
    %vm186 = vcmp.eq.s32.totalorder %v65, %v95
    %vm187 = vcmp.eq.s32.totalorder %v66, %v95
    %vm188 = vcmp.eq.s32.totalorder %v67, %v95
    %vm189 = vcmp.eq.s32.totalorder %v68, %v95
    %vm190 = vcmp.eq.s32.totalorder %v62, %v96
    %vm191 = vcmp.eq.s32.totalorder %v63, %v96
    %vm192 = vcmp.eq.s32.totalorder %v64, %v96
    %vm193 = vcmp.eq.s32.totalorder %v65, %v96
    %vm194 = vcmp.eq.s32.totalorder %v66, %v96
    %vm195 = vcmp.eq.s32.totalorder %v67, %v96
    %vm196 = vcmp.eq.s32.totalorder %v68, %v96
    %vm197 = vcmp.eq.s32.totalorder %v62, %v97
    %vm198 = vcmp.eq.s32.totalorder %v63, %v97
    %vm199 = vcmp.eq.s32.totalorder %v64, %v97
    %vm200 = vcmp.eq.s32.totalorder %v65, %v97
    %vm201 = vcmp.eq.s32.totalorder %v66, %v97
    %vm202 = vcmp.eq.s32.totalorder %v67, %v97
    %vm203 = vcmp.eq.s32.totalorder %v68, %v97
    %vm204 = vcmp.eq.s32.totalorder %v62, %v98
    %vm205 = vcmp.eq.s32.totalorder %v63, %v98
    %vm206 = vcmp.eq.s32.totalorder %v64, %v98
    %vm207 = vcmp.eq.s32.totalorder %v65, %v98
    %vm208 = vcmp.eq.s32.totalorder %v66, %v98
    %vm209 = vcmp.eq.s32.totalorder %v67, %v98
    %vm210 = vcmp.eq.s32.totalorder %v68, %v98
    %v211 = vsel %vm99, 1, 0
    %v212 = vsel %vm100, 1, 0
    %v213 = vsel %vm101, 1, 0
    %v214 = vsel %vm102, 1, 0
    %v215 = vsel %vm103, 1, 0
    %v216 = vsel %vm104, 1, 0
    %v217 = vsel %vm105, 1, 0
    %v218 = vsel %vm106, 1, 0
    %v219 = vsel %vm107, 1, 0
    %v220 = vsel %vm108, 1, 0
    %v221 = vsel %vm109, 1, 0
    %v222 = vsel %vm110, 1, 0
    %v223 = vsel %vm111, 1, 0
    %v224 = vsel %vm112, 1, 0
    %v225 = vsel %vm113, 1, 0
    %v226 = vsel %vm114, 1, 0
    %v227 = vsel %vm115, 1, 0
    %v228 = vsel %vm116, 1, 0
    %v229 = vsel %vm117, 1, 0
    %v230 = vsel %vm118, 1, 0
    %v231 = vsel %vm119, 1, 0
    %v232 = vsel %vm120, 1, 0
    %v233 = vsel %vm121, 1, 0
    %v234 = vsel %vm122, 1, 0
    %v235 = vsel %vm123, 1, 0
    %v236 = vsel %vm124, 1, 0
    %v237 = vsel %vm125, 1, 0
    %v238 = vsel %vm126, 1, 0
    %v239 = vsel %vm127, 1, 0
    %v240 = vsel %vm128, 1, 0
    %v241 = vsel %vm129, 1, 0
    %v242 = vsel %vm130, 1, 0
    %v243 = vsel %vm131, 1, 0
    %v244 = vsel %vm132, 1, 0
    %v245 = vsel %vm133, 1, 0
    %v246 = vsel %vm134, 1, 0
    %v247 = vsel %vm135, 1, 0
    %v248 = vsel %vm136, 1, 0
    %v249 = vsel %vm137, 1, 0
    %v250 = vsel %vm138, 1, 0
    %v251 = vsel %vm139, 1, 0
    %v252 = vsel %vm140, 1, 0
    %v253 = vsel %vm141, 1, 0
    %v254 = vsel %vm142, 1, 0
    %v255 = vsel %vm143, 1, 0
    %v256 = vsel %vm144, 1, 0
    %v257 = vsel %vm145, 1, 0
    %v258 = vsel %vm146, 1, 0
    %v259 = vsel %vm147, 1, 0
    %v260 = vsel %vm148, 1, 0
    %v261 = vsel %vm149, 1, 0
    %v262 = vsel %vm150, 1, 0
    %v263 = vsel %vm151, 1, 0
    %v264 = vsel %vm152, 1, 0
    %v265 = vsel %vm153, 1, 0
    %v266 = vsel %vm154, 1, 0
    %v267 = vsel %vm155, 1, 0
    %v268 = vsel %vm156, 1, 0
    %v269 = vsel %vm157, 1, 0
    %v270 = vsel %vm158, 1, 0
    %v271 = vsel %vm159, 1, 0
    %v272 = vsel %vm160, 1, 0
    %v273 = vsel %vm161, 1, 0
    %v274 = vsel %vm162, 1, 0
    %v275 = vsel %vm163, 1, 0
    %v276 = vsel %vm164, 1, 0
    %v277 = vsel %vm165, 1, 0
    %v278 = vsel %vm166, 1, 0
    %v279 = vsel %vm167, 1, 0
    %v280 = vsel %vm168, 1, 0
    %v281 = vsel %vm169, 1, 0
    %v282 = vsel %vm170, 1, 0
    %v283 = vsel %vm171, 1, 0
    %v284 = vsel %vm172, 1, 0
    %v285 = vsel %vm173, 1, 0
    %v286 = vsel %vm174, 1, 0
    %v287 = vsel %vm175, 1, 0
    %v288 = vsel %vm176, 1, 0
    %v289 = vsel %vm177, 1, 0
    %v290 = vsel %vm178, 1, 0
    %v291 = vsel %vm179, 1, 0
    %v292 = vsel %vm180, 1, 0
    %v293 = vsel %vm181, 1, 0
    %v294 = vsel %vm182, 1, 0
    %v295 = vsel %vm183, 1, 0
    %v296 = vsel %vm184, 1, 0
    %v297 = vsel %vm185, 1, 0
    %v298 = vsel %vm186, 1, 0
    %v299 = vsel %vm187, 1, 0
    %v300 = vsel %vm188, 1, 0
    %v301 = vsel %vm189, 1, 0
    %v302 = vsel %vm190, 1, 0
    %v303 = vsel %vm191, 1, 0
    %v304 = vsel %vm192, 1, 0
    %v305 = vsel %vm193, 1, 0
    %v306 = vsel %vm194, 1, 0
    %v307 = vsel %vm195, 1, 0
    %v308 = vsel %vm196, 1, 0
    %v309 = vsel %vm197, 1, 0
    %v310 = vsel %vm198, 1, 0
    %v311 = vsel %vm199, 1, 0
    %v312 = vsel %vm200, 1, 0
    %v313 = vsel %vm201, 1, 0
    %v314 = vsel %vm202, 1, 0
    %v315 = vsel %vm203, 1, 0
    %v316 = vsel %vm204, 1, 0
    %v317 = vsel %vm205, 1, 0
    %v318 = vsel %vm206, 1, 0
    %v319 = vsel %vm207, 1, 0
    %v320 = vsel %vm208, 1, 0
    %v321 = vsel %vm209, 1, 0
    %v322 = vsel %vm210, 1, 0
    %v323 = vcvt.s32.f32 %v211
    %v324 = vcvt.s32.f32 %v212
    %v325 = vcvt.s32.f32 %v213
    %v326 = vcvt.s32.f32 %v214
    %v327 = vcvt.s32.f32 %v215
    %v328 = vcvt.s32.f32 %v216
    %v329 = vcvt.s32.f32 %v217
    %v330 = vcvt.s32.f32 %v218
    %v331 = vcvt.s32.f32 %v219
    %v332 = vcvt.s32.f32 %v220
    %v333 = vcvt.s32.f32 %v221
    %v334 = vcvt.s32.f32 %v222
    %v335 = vcvt.s32.f32 %v223
    %v336 = vcvt.s32.f32 %v224
    %v337 = vcvt.s32.f32 %v225
    %v338 = vcvt.s32.f32 %v226
    %v339 = vcvt.s32.f32 %v227
    %v340 = vcvt.s32.f32 %v228
    %v341 = vcvt.s32.f32 %v229
    %v342 = vcvt.s32.f32 %v230
    %v343 = vcvt.s32.f32 %v231
    %v344 = vcvt.s32.f32 %v232
    %v345 = vcvt.s32.f32 %v233
    %v346 = vcvt.s32.f32 %v234
    %v347 = vcvt.s32.f32 %v235
    %v348 = vcvt.s32.f32 %v236
    %v349 = vcvt.s32.f32 %v237
    %v350 = vcvt.s32.f32 %v238
    %v351 = vcvt.s32.f32 %v239
    %v352 = vcvt.s32.f32 %v240
    %v353 = vcvt.s32.f32 %v241
    %v354 = vcvt.s32.f32 %v242
    %v355 = vcvt.s32.f32 %v243
    %v356 = vcvt.s32.f32 %v244
    %v357 = vcvt.s32.f32 %v245
    %v358 = vcvt.s32.f32 %v246
    %v359 = vcvt.s32.f32 %v247
    %v360 = vcvt.s32.f32 %v248
    %v361 = vcvt.s32.f32 %v249
    %v362 = vcvt.s32.f32 %v250
    %v363 = vcvt.s32.f32 %v251
    %v364 = vcvt.s32.f32 %v252
    %v365 = vcvt.s32.f32 %v253
    %v366 = vcvt.s32.f32 %v254
    %v367 = vcvt.s32.f32 %v255
    %v368 = vcvt.s32.f32 %v256
    %v369 = vcvt.s32.f32 %v257
    %v370 = vcvt.s32.f32 %v258
    %v371 = vcvt.s32.f32 %v259
    %v372 = vcvt.s32.f32 %v260
    %v373 = vcvt.s32.f32 %v261
    %v374 = vcvt.s32.f32 %v262
    %v375 = vcvt.s32.f32 %v263
    %v376 = vcvt.s32.f32 %v264
    %v377 = vcvt.s32.f32 %v265
    %v378 = vcvt.s32.f32 %v266
    %v379 = vcvt.s32.f32 %v267
    %v380 = vcvt.s32.f32 %v268
    %v381 = vcvt.s32.f32 %v269
    %v382 = vcvt.s32.f32 %v270
    %v383 = vcvt.s32.f32 %v271
    %v384 = vcvt.s32.f32 %v272
    %v385 = vcvt.s32.f32 %v273
    %v386 = vcvt.s32.f32 %v274
    %v387 = vcvt.s32.f32 %v275
    %v388 = vcvt.s32.f32 %v276
    %v389 = vcvt.s32.f32 %v277
    %v390 = vcvt.s32.f32 %v278
    %v391 = vcvt.s32.f32 %v279
    %v392 = vcvt.s32.f32 %v280
    %v393 = vcvt.s32.f32 %v281
    %v394 = vcvt.s32.f32 %v282
    %v395 = vcvt.s32.f32 %v283
    %v396 = vcvt.s32.f32 %v284
    %v397 = vcvt.s32.f32 %v285
    %v398 = vcvt.s32.f32 %v286
    %v399 = vcvt.s32.f32 %v287
    %v400 = vcvt.s32.f32 %v288
    %v401 = vcvt.s32.f32 %v289
    %v402 = vcvt.s32.f32 %v290
    %v403 = vcvt.s32.f32 %v291
    %v404 = vcvt.s32.f32 %v292
    %v405 = vcvt.s32.f32 %v293
    %v406 = vcvt.s32.f32 %v294
    %v407 = vcvt.s32.f32 %v295
    %v408 = vcvt.s32.f32 %v296
    %v409 = vcvt.s32.f32 %v297
    %v410 = vcvt.s32.f32 %v298
    %v411 = vcvt.s32.f32 %v299
    %v412 = vcvt.s32.f32 %v300
    %v413 = vcvt.s32.f32 %v301
    %v414 = vcvt.s32.f32 %v302
    %v415 = vcvt.s32.f32 %v303
    %v416 = vcvt.s32.f32 %v304
    %v417 = vcvt.s32.f32 %v305
    %v418 = vcvt.s32.f32 %v306
    %v419 = vcvt.s32.f32 %v307
    %v420 = vcvt.s32.f32 %v308
    %v421 = vcvt.s32.f32 %v309
    %v422 = vcvt.s32.f32 %v310
    %v423 = vcvt.s32.f32 %v311
    %v424 = vcvt.s32.f32 %v312
    %v425 = vcvt.s32.f32 %v313
    %v426 = vcvt.s32.f32 %v314
    %v427 = vcvt.s32.f32 %v315
    %v428 = vcvt.s32.f32 %v316
    %v429 = vcvt.s32.f32 %v317
    %v430 = vcvt.s32.f32 %v318
    %v431 = vcvt.s32.f32 %v319
    %v432 = vcvt.s32.f32 %v320
    %v433 = vcvt.s32.f32 %v321
    %v434 = vcvt.s32.f32 %v322
    %v435 = vrot.slane %v337, 4
    %vm436 = vcmask 1047556
    %v437 = vsel %vm436, %v435, %v323
    %v438 = vrot.slane %v323, 4
    %v439 = vsel %vm436, %v337, %v438
    %v441 = vunpack.c.l.s4 1983009808
    %v442 = vunpack.c.0.s8 %v441
    %v443 = vperm.slane %v437, %v442
    %v445 = vunpack.c.l.s4 1983009808
    %v446 = vunpack.c.0.s8 %v445
    %v447 = vperm.slane %v439, %v446
    %v448 = vrot.slane %v344, 4
    %v449 = vsel %vm436, %v448, %v330
    %v450 = vrot.slane %v330, 4
    %v451 = vsel %vm436, %v344, %v450
    %v453 = vunpack.c.l.s4 1983009808
    %v454 = vunpack.c.0.s8 %v453
    %v455 = vperm.slane %v449, %v454
    %v457 = vunpack.c.l.s4 1983009808
    %v458 = vunpack.c.0.s8 %v457
    %v459 = vperm.slane %v451, %v458
    %v460 = vrot.slane %v365, 4
    %v461 = vsel %vm436, %v460, %v351
    %v462 = vrot.slane %v351, 4
    %v463 = vsel %vm436, %v365, %v462
    %v465 = vunpack.c.l.s4 1983009808
    %v466 = vunpack.c.0.s8 %v465
    %v467 = vperm.slane %v461, %v466
    %v469 = vunpack.c.l.s4 1983009808
    %v470 = vunpack.c.0.s8 %v469
    %v471 = vperm.slane %v463, %v470
    %v472 = vrot.slane %v372, 4
    %v473 = vsel %vm436, %v472, %v358
    %v474 = vrot.slane %v358, 4
    %v475 = vsel %vm436, %v372, %v474
    %v477 = vunpack.c.l.s4 1983009808
    %v478 = vunpack.c.0.s8 %v477
    %v479 = vperm.slane %v473, %v478
    %v481 = vunpack.c.l.s4 1983009808
    %v482 = vunpack.c.0.s8 %v481
    %v483 = vperm.slane %v475, %v482
    %v484 = vrot.slane %v455, 4
    %v485 = vsel %vm436, %v484, %v443
    %v486 = vrot.slane %v443, 4
    %v487 = vsel %vm436, %v455, %v486
    %v489 = vunpack.c.l.s4 1934713408
    %v490 = vunpack.c.0.s8 %v489
    %v491 = vperm.slane %v485, %v490
    %v493 = vunpack.c.l.s4 1934713408
    %v494 = vunpack.c.0.s8 %v493
    %v495 = vperm.slane %v487, %v494
    %v496 = vrot.slane %v459, 4
    %v497 = vsel %vm436, %v496, %v447
    %v498 = vrot.slane %v447, 4
    %v499 = vsel %vm436, %v459, %v498
    %v501 = vunpack.c.l.s4 1934713408
    %v502 = vunpack.c.0.s8 %v501
    %v503 = vperm.slane %v497, %v502
    %v505 = vunpack.c.l.s4 1934713408
    %v506 = vunpack.c.0.s8 %v505
    %v507 = vperm.slane %v499, %v506
    %v508 = vrot.slane %v479, 4
    %v509 = vsel %vm436, %v508, %v467
    %v510 = vrot.slane %v467, 4
    %v511 = vsel %vm436, %v479, %v510
    %v513 = vunpack.c.l.s4 1934713408
    %v514 = vunpack.c.0.s8 %v513
    %v515 = vperm.slane %v509, %v514
    %v517 = vunpack.c.l.s4 1934713408
    %v518 = vunpack.c.0.s8 %v517
    %v519 = vperm.slane %v511, %v518
    %v520 = vrot.slane %v483, 4
    %v521 = vsel %vm436, %v520, %v471
    %v522 = vrot.slane %v471, 4
    %v523 = vsel %vm436, %v483, %v522
    %v525 = vunpack.c.l.s4 1934713408
    %v526 = vunpack.c.0.s8 %v525
    %v527 = vperm.slane %v521, %v526
    %v529 = vunpack.c.l.s4 1934713408
    %v530 = vunpack.c.0.s8 %v529
    %v531 = vperm.slane %v523, %v530
    %v532 = vrot.slane %v515, 4
    %v533 = vsel %vm436, %v532, %v491
    %v534 = vrot.slane %v491, 4
    %v535 = vsel %vm436, %v515, %v534
    %v536 = vrot.slane %v519, 4
    %v537 = vsel %vm436, %v536, %v495
    %v538 = vrot.slane %v495, 4
    %v539 = vsel %vm436, %v519, %v538
    %v540 = vrot.slane %v527, 4
    %v541 = vsel %vm436, %v540, %v503
    %v542 = vrot.slane %v503, 4
    %v543 = vsel %vm436, %v527, %v542
    %v544 = vrot.slane %v531, 4
    %v545 = vsel %vm436, %v544, %v507
    %v546 = vrot.slane %v507, 4
    %v547 = vsel %vm436, %v531, %v546
    %v548 = vrot.slane %v393, 4
    %v549 = vsel %vm436, %v548, %v379
    %v550 = vrot.slane %v379, 4
    %v551 = vsel %vm436, %v393, %v550
    %v553 = vunpack.c.l.s4 1983009808
    %v554 = vunpack.c.0.s8 %v553
    %v555 = vperm.slane %v549, %v554
    %v557 = vunpack.c.l.s4 1983009808
    %v558 = vunpack.c.0.s8 %v557
    %v559 = vperm.slane %v551, %v558
    %v560 = vrot.slane %v400, 4
    %v561 = vsel %vm436, %v560, %v386
    %v562 = vrot.slane %v386, 4
    %v563 = vsel %vm436, %v400, %v562
    %v565 = vunpack.c.l.s4 1983009808
    %v566 = vunpack.c.0.s8 %v565
    %v567 = vperm.slane %v561, %v566
    %v569 = vunpack.c.l.s4 1983009808
    %v570 = vunpack.c.0.s8 %v569
    %v571 = vperm.slane %v563, %v570
    %v572 = vrot.slane %v421, 4
    %v573 = vsel %vm436, %v572, %v407
    %v574 = vrot.slane %v407, 4
    %v575 = vsel %vm436, %v421, %v574
    %v577 = vunpack.c.l.s4 1983009808
    %v578 = vunpack.c.0.s8 %v577
    %v579 = vperm.slane %v573, %v578
    %v581 = vunpack.c.l.s4 1983009808
    %v582 = vunpack.c.0.s8 %v581
    %v583 = vperm.slane %v575, %v582
    %v584 = vrot.slane %v428, 4
    %v585 = vsel %vm436, %v584, %v414
    %v586 = vrot.slane %v414, 4
    %v587 = vsel %vm436, %v428, %v586
    %v589 = vunpack.c.l.s4 1983009808
    %v590 = vunpack.c.0.s8 %v589
    %v591 = vperm.slane %v585, %v590
    %v593 = vunpack.c.l.s4 1983009808
    %v594 = vunpack.c.0.s8 %v593
    %v595 = vperm.slane %v587, %v594
    %v596 = vrot.slane %v567, 4
    %v597 = vsel %vm436, %v596, %v555
    %v598 = vrot.slane %v555, 4
    %v599 = vsel %vm436, %v567, %v598
    %v601 = vunpack.c.l.s4 1934713408
    %v602 = vunpack.c.0.s8 %v601
    %v603 = vperm.slane %v597, %v602
    %v605 = vunpack.c.l.s4 1934713408
    %v606 = vunpack.c.0.s8 %v605
    %v607 = vperm.slane %v599, %v606
    %v608 = vrot.slane %v571, 4
    %v609 = vsel %vm436, %v608, %v559
    %v610 = vrot.slane %v559, 4
    %v611 = vsel %vm436, %v571, %v610
    %v613 = vunpack.c.l.s4 1934713408
    %v614 = vunpack.c.0.s8 %v613
    %v615 = vperm.slane %v609, %v614
    %v617 = vunpack.c.l.s4 1934713408
    %v618 = vunpack.c.0.s8 %v617
    %v619 = vperm.slane %v611, %v618
    %v620 = vrot.slane %v591, 4
    %v621 = vsel %vm436, %v620, %v579
    %v622 = vrot.slane %v579, 4
    %v623 = vsel %vm436, %v591, %v622
    %v625 = vunpack.c.l.s4 1934713408
    %v626 = vunpack.c.0.s8 %v625
    %v627 = vperm.slane %v621, %v626
    %v629 = vunpack.c.l.s4 1934713408
    %v630 = vunpack.c.0.s8 %v629
    %v631 = vperm.slane %v623, %v630
    %v632 = vrot.slane %v595, 4
    %v633 = vsel %vm436, %v632, %v583
    %v634 = vrot.slane %v583, 4
    %v635 = vsel %vm436, %v595, %v634
    %v637 = vunpack.c.l.s4 1934713408
    %v638 = vunpack.c.0.s8 %v637
    %v639 = vperm.slane %v633, %v638
    %v641 = vunpack.c.l.s4 1934713408
    %v642 = vunpack.c.0.s8 %v641
    %v643 = vperm.slane %v635, %v642
    %v644 = vrot.slane %v627, 4
    %v645 = vsel %vm436, %v644, %v603
    %v646 = vrot.slane %v603, 4
    %v647 = vsel %vm436, %v627, %v646
    %v648 = vrot.slane %v631, 4
    %v649 = vsel %vm436, %v648, %v607
    %v650 = vrot.slane %v607, 4
    %v651 = vsel %vm436, %v631, %v650
    %v652 = vrot.slane %v639, 4
    %v653 = vsel %vm436, %v652, %v615
    %v654 = vrot.slane %v615, 4
    %v655 = vsel %vm436, %v639, %v654
    %v656 = vrot.slane %v643, 4
    %v657 = vsel %vm436, %v656, %v619
    %v658 = vrot.slane %v619, 4
    %v659 = vsel %vm436, %v643, %v658
    %v660 = vrot.slane %v338, 4
    %v661 = vsel %vm436, %v660, %v324
    %v662 = vrot.slane %v324, 4
    %v663 = vsel %vm436, %v338, %v662
    %v665 = vunpack.c.l.s4 1983009808
    %v666 = vunpack.c.0.s8 %v665
    %v667 = vperm.slane %v661, %v666
    %v669 = vunpack.c.l.s4 1983009808
    %v670 = vunpack.c.0.s8 %v669
    %v671 = vperm.slane %v663, %v670
    %v672 = vrot.slane %v345, 4
    %v673 = vsel %vm436, %v672, %v331
    %v674 = vrot.slane %v331, 4
    %v675 = vsel %vm436, %v345, %v674
    %v677 = vunpack.c.l.s4 1983009808
    %v678 = vunpack.c.0.s8 %v677
    %v679 = vperm.slane %v673, %v678
    %v681 = vunpack.c.l.s4 1983009808
    %v682 = vunpack.c.0.s8 %v681
    %v683 = vperm.slane %v675, %v682
    %v684 = vrot.slane %v366, 4
    %v685 = vsel %vm436, %v684, %v352
    %v686 = vrot.slane %v352, 4
    %v687 = vsel %vm436, %v366, %v686
    %v689 = vunpack.c.l.s4 1983009808
    %v690 = vunpack.c.0.s8 %v689
    %v691 = vperm.slane %v685, %v690
    %v693 = vunpack.c.l.s4 1983009808
    %v694 = vunpack.c.0.s8 %v693
    %v695 = vperm.slane %v687, %v694
    %v696 = vrot.slane %v373, 4
    %v697 = vsel %vm436, %v696, %v359
    %v698 = vrot.slane %v359, 4
    %v699 = vsel %vm436, %v373, %v698
    %v701 = vunpack.c.l.s4 1983009808
    %v702 = vunpack.c.0.s8 %v701
    %v703 = vperm.slane %v697, %v702
    %v705 = vunpack.c.l.s4 1983009808
    %v706 = vunpack.c.0.s8 %v705
    %v707 = vperm.slane %v699, %v706
    %v708 = vrot.slane %v679, 4
    %v709 = vsel %vm436, %v708, %v667
    %v710 = vrot.slane %v667, 4
    %v711 = vsel %vm436, %v679, %v710
    %v713 = vunpack.c.l.s4 1934713408
    %v714 = vunpack.c.0.s8 %v713
    %v715 = vperm.slane %v709, %v714
    %v717 = vunpack.c.l.s4 1934713408
    %v718 = vunpack.c.0.s8 %v717
    %v719 = vperm.slane %v711, %v718
    %v720 = vrot.slane %v683, 4
    %v721 = vsel %vm436, %v720, %v671
    %v722 = vrot.slane %v671, 4
    %v723 = vsel %vm436, %v683, %v722
    %v725 = vunpack.c.l.s4 1934713408
    %v726 = vunpack.c.0.s8 %v725
    %v727 = vperm.slane %v721, %v726
    %v729 = vunpack.c.l.s4 1934713408
    %v730 = vunpack.c.0.s8 %v729
    %v731 = vperm.slane %v723, %v730
    %v732 = vrot.slane %v703, 4
    %v733 = vsel %vm436, %v732, %v691
    %v734 = vrot.slane %v691, 4
    %v735 = vsel %vm436, %v703, %v734
    %v737 = vunpack.c.l.s4 1934713408
    %v738 = vunpack.c.0.s8 %v737
    %v739 = vperm.slane %v733, %v738
    %v741 = vunpack.c.l.s4 1934713408
    %v742 = vunpack.c.0.s8 %v741
    %v743 = vperm.slane %v735, %v742
    %v744 = vrot.slane %v707, 4
    %v745 = vsel %vm436, %v744, %v695
    %v746 = vrot.slane %v695, 4
    %v747 = vsel %vm436, %v707, %v746
    %v749 = vunpack.c.l.s4 1934713408
    %v750 = vunpack.c.0.s8 %v749
    %v751 = vperm.slane %v745, %v750
    %v753 = vunpack.c.l.s4 1934713408
    %v754 = vunpack.c.0.s8 %v753
    %v755 = vperm.slane %v747, %v754
    %v756 = vrot.slane %v739, 4
    %v757 = vsel %vm436, %v756, %v715
    %v758 = vrot.slane %v715, 4
    %v759 = vsel %vm436, %v739, %v758
    %v760 = vrot.slane %v743, 4
    %v761 = vsel %vm436, %v760, %v719
    %v762 = vrot.slane %v719, 4
    %v763 = vsel %vm436, %v743, %v762
    %v764 = vrot.slane %v751, 4
    %v765 = vsel %vm436, %v764, %v727
    %v766 = vrot.slane %v727, 4
    %v767 = vsel %vm436, %v751, %v766
    %v768 = vrot.slane %v755, 4
    %v769 = vsel %vm436, %v768, %v731
    %v770 = vrot.slane %v731, 4
    %v771 = vsel %vm436, %v755, %v770
    %v772 = vrot.slane %v394, 4
    %v773 = vsel %vm436, %v772, %v380
    %v774 = vrot.slane %v380, 4
    %v775 = vsel %vm436, %v394, %v774
    %v777 = vunpack.c.l.s4 1983009808
    %v778 = vunpack.c.0.s8 %v777
    %v779 = vperm.slane %v773, %v778
    %v781 = vunpack.c.l.s4 1983009808
    %v782 = vunpack.c.0.s8 %v781
    %v783 = vperm.slane %v775, %v782
    %v784 = vrot.slane %v401, 4
    %v785 = vsel %vm436, %v784, %v387
    %v786 = vrot.slane %v387, 4
    %v787 = vsel %vm436, %v401, %v786
    %v789 = vunpack.c.l.s4 1983009808
    %v790 = vunpack.c.0.s8 %v789
    %v791 = vperm.slane %v785, %v790
    %v793 = vunpack.c.l.s4 1983009808
    %v794 = vunpack.c.0.s8 %v793
    %v795 = vperm.slane %v787, %v794
    %v796 = vrot.slane %v422, 4
    %v797 = vsel %vm436, %v796, %v408
    %v798 = vrot.slane %v408, 4
    %v799 = vsel %vm436, %v422, %v798
    %v801 = vunpack.c.l.s4 1983009808
    %v802 = vunpack.c.0.s8 %v801
    %v803 = vperm.slane %v797, %v802
    %v805 = vunpack.c.l.s4 1983009808
    %v806 = vunpack.c.0.s8 %v805
    %v807 = vperm.slane %v799, %v806
    %v808 = vrot.slane %v429, 4
    %v809 = vsel %vm436, %v808, %v415
    %v810 = vrot.slane %v415, 4
    %v811 = vsel %vm436, %v429, %v810
    %v813 = vunpack.c.l.s4 1983009808
    %v814 = vunpack.c.0.s8 %v813
    %v815 = vperm.slane %v809, %v814
    %v817 = vunpack.c.l.s4 1983009808
    %v818 = vunpack.c.0.s8 %v817
    %v819 = vperm.slane %v811, %v818
    %v820 = vrot.slane %v791, 4
    %v821 = vsel %vm436, %v820, %v779
    %v822 = vrot.slane %v779, 4
    %v823 = vsel %vm436, %v791, %v822
    %v825 = vunpack.c.l.s4 1934713408
    %v826 = vunpack.c.0.s8 %v825
    %v827 = vperm.slane %v821, %v826
    %v829 = vunpack.c.l.s4 1934713408
    %v830 = vunpack.c.0.s8 %v829
    %v831 = vperm.slane %v823, %v830
    %v832 = vrot.slane %v795, 4
    %v833 = vsel %vm436, %v832, %v783
    %v834 = vrot.slane %v783, 4
    %v835 = vsel %vm436, %v795, %v834
    %v837 = vunpack.c.l.s4 1934713408
    %v838 = vunpack.c.0.s8 %v837
    %v839 = vperm.slane %v833, %v838
    %v841 = vunpack.c.l.s4 1934713408
    %v842 = vunpack.c.0.s8 %v841
    %v843 = vperm.slane %v835, %v842
    %v844 = vrot.slane %v815, 4
    %v845 = vsel %vm436, %v844, %v803
    %v846 = vrot.slane %v803, 4
    %v847 = vsel %vm436, %v815, %v846
    %v849 = vunpack.c.l.s4 1934713408
    %v850 = vunpack.c.0.s8 %v849
    %v851 = vperm.slane %v845, %v850
    %v853 = vunpack.c.l.s4 1934713408
    %v854 = vunpack.c.0.s8 %v853
    %v855 = vperm.slane %v847, %v854
    %v856 = vrot.slane %v819, 4
    %v857 = vsel %vm436, %v856, %v807
    %v858 = vrot.slane %v807, 4
    %v859 = vsel %vm436, %v819, %v858
    %v861 = vunpack.c.l.s4 1934713408
    %v862 = vunpack.c.0.s8 %v861
    %v863 = vperm.slane %v857, %v862
    %v865 = vunpack.c.l.s4 1934713408
    %v866 = vunpack.c.0.s8 %v865
    %v867 = vperm.slane %v859, %v866
    %v868 = vrot.slane %v851, 4
    %v869 = vsel %vm436, %v868, %v827
    %v870 = vrot.slane %v827, 4
    %v871 = vsel %vm436, %v851, %v870
    %v872 = vrot.slane %v855, 4
    %v873 = vsel %vm436, %v872, %v831
    %v874 = vrot.slane %v831, 4
    %v875 = vsel %vm436, %v855, %v874
    %v876 = vrot.slane %v863, 4
    %v877 = vsel %vm436, %v876, %v839
    %v878 = vrot.slane %v839, 4
    %v879 = vsel %vm436, %v863, %v878
    %v880 = vrot.slane %v867, 4
    %v881 = vsel %vm436, %v880, %v843
    %v882 = vrot.slane %v843, 4
    %v883 = vsel %vm436, %v867, %v882
    %v884 = vrot.slane %v339, 4
    %v885 = vsel %vm436, %v884, %v325
    %v886 = vrot.slane %v325, 4
    %v887 = vsel %vm436, %v339, %v886
    %v889 = vunpack.c.l.s4 1983009808
    %v890 = vunpack.c.0.s8 %v889
    %v891 = vperm.slane %v885, %v890
    %v893 = vunpack.c.l.s4 1983009808
    %v894 = vunpack.c.0.s8 %v893
    %v895 = vperm.slane %v887, %v894
    %v896 = vrot.slane %v346, 4
    %v897 = vsel %vm436, %v896, %v332
    %v898 = vrot.slane %v332, 4
    %v899 = vsel %vm436, %v346, %v898
    %v901 = vunpack.c.l.s4 1983009808
    %v902 = vunpack.c.0.s8 %v901
    %v903 = vperm.slane %v897, %v902
    %v905 = vunpack.c.l.s4 1983009808
    %v906 = vunpack.c.0.s8 %v905
    %v907 = vperm.slane %v899, %v906
    %v908 = vrot.slane %v367, 4
    %v909 = vsel %vm436, %v908, %v353
    %v910 = vrot.slane %v353, 4
    %v911 = vsel %vm436, %v367, %v910
    %v913 = vunpack.c.l.s4 1983009808
    %v914 = vunpack.c.0.s8 %v913
    %v915 = vperm.slane %v909, %v914
    %v917 = vunpack.c.l.s4 1983009808
    %v918 = vunpack.c.0.s8 %v917
    %v919 = vperm.slane %v911, %v918
    %v920 = vrot.slane %v374, 4
    %v921 = vsel %vm436, %v920, %v360
    %v922 = vrot.slane %v360, 4
    %v923 = vsel %vm436, %v374, %v922
    %v925 = vunpack.c.l.s4 1983009808
    %v926 = vunpack.c.0.s8 %v925
    %v927 = vperm.slane %v921, %v926
    %v929 = vunpack.c.l.s4 1983009808
    %v930 = vunpack.c.0.s8 %v929
    %v931 = vperm.slane %v923, %v930
    %v932 = vrot.slane %v903, 4
    %v933 = vsel %vm436, %v932, %v891
    %v934 = vrot.slane %v891, 4
    %v935 = vsel %vm436, %v903, %v934
    %v937 = vunpack.c.l.s4 1934713408
    %v938 = vunpack.c.0.s8 %v937
    %v939 = vperm.slane %v933, %v938
    %v941 = vunpack.c.l.s4 1934713408
    %v942 = vunpack.c.0.s8 %v941
    %v943 = vperm.slane %v935, %v942
    %v944 = vrot.slane %v907, 4
    %v945 = vsel %vm436, %v944, %v895
    %v946 = vrot.slane %v895, 4
    %v947 = vsel %vm436, %v907, %v946
    %v949 = vunpack.c.l.s4 1934713408
    %v950 = vunpack.c.0.s8 %v949
    %v951 = vperm.slane %v945, %v950
    %v953 = vunpack.c.l.s4 1934713408
    %v954 = vunpack.c.0.s8 %v953
    %v955 = vperm.slane %v947, %v954
    %v956 = vrot.slane %v927, 4
    %v957 = vsel %vm436, %v956, %v915
    %v958 = vrot.slane %v915, 4
    %v959 = vsel %vm436, %v927, %v958
    %v961 = vunpack.c.l.s4 1934713408
    %v962 = vunpack.c.0.s8 %v961
    %v963 = vperm.slane %v957, %v962
    %v965 = vunpack.c.l.s4 1934713408
    %v966 = vunpack.c.0.s8 %v965
    %v967 = vperm.slane %v959, %v966
    %v968 = vrot.slane %v931, 4
    %v969 = vsel %vm436, %v968, %v919
    %v970 = vrot.slane %v919, 4
    %v971 = vsel %vm436, %v931, %v970
    %v973 = vunpack.c.l.s4 1934713408
    %v974 = vunpack.c.0.s8 %v973
    %v975 = vperm.slane %v969, %v974
    %v977 = vunpack.c.l.s4 1934713408
    %v978 = vunpack.c.0.s8 %v977
    %v979 = vperm.slane %v971, %v978
    %v980 = vrot.slane %v963, 4
    %v981 = vsel %vm436, %v980, %v939
    %v982 = vrot.slane %v939, 4
    %v983 = vsel %vm436, %v963, %v982
    %v984 = vrot.slane %v967, 4
    %v985 = vsel %vm436, %v984, %v943
    %v986 = vrot.slane %v943, 4
    %v987 = vsel %vm436, %v967, %v986
    %v988 = vrot.slane %v975, 4
    %v989 = vsel %vm436, %v988, %v951
    %v990 = vrot.slane %v951, 4
    %v991 = vsel %vm436, %v975, %v990
    %v992 = vrot.slane %v979, 4
    %v993 = vsel %vm436, %v992, %v955
    %v994 = vrot.slane %v955, 4
    %v995 = vsel %vm436, %v979, %v994
    %v996 = vrot.slane %v395, 4
    %v997 = vsel %vm436, %v996, %v381
    %v998 = vrot.slane %v381, 4
    %v999 = vsel %vm436, %v395, %v998
    %v1001 = vunpack.c.l.s4 1983009808
    %v1002 = vunpack.c.0.s8 %v1001
    %v1003 = vperm.slane %v997, %v1002
    %v1005 = vunpack.c.l.s4 1983009808
    %v1006 = vunpack.c.0.s8 %v1005
    %v1007 = vperm.slane %v999, %v1006
    %v1008 = vrot.slane %v402, 4
    %v1009 = vsel %vm436, %v1008, %v388
    %v1010 = vrot.slane %v388, 4
    %v1011 = vsel %vm436, %v402, %v1010
    %v1013 = vunpack.c.l.s4 1983009808
    %v1014 = vunpack.c.0.s8 %v1013
    %v1015 = vperm.slane %v1009, %v1014
    %v1017 = vunpack.c.l.s4 1983009808
    %v1018 = vunpack.c.0.s8 %v1017
    %v1019 = vperm.slane %v1011, %v1018
    %v1020 = vrot.slane %v423, 4
    %v1021 = vsel %vm436, %v1020, %v409
    %v1022 = vrot.slane %v409, 4
    %v1023 = vsel %vm436, %v423, %v1022
    %v1025 = vunpack.c.l.s4 1983009808
    %v1026 = vunpack.c.0.s8 %v1025
    %v1027 = vperm.slane %v1021, %v1026
    %v1029 = vunpack.c.l.s4 1983009808
    %v1030 = vunpack.c.0.s8 %v1029
    %v1031 = vperm.slane %v1023, %v1030
    %v1032 = vrot.slane %v430, 4
    %v1033 = vsel %vm436, %v1032, %v416
    %v1034 = vrot.slane %v416, 4
    %v1035 = vsel %vm436, %v430, %v1034
    %v1037 = vunpack.c.l.s4 1983009808
    %v1038 = vunpack.c.0.s8 %v1037
    %v1039 = vperm.slane %v1033, %v1038
    %v1041 = vunpack.c.l.s4 1983009808
    %v1042 = vunpack.c.0.s8 %v1041
    %v1043 = vperm.slane %v1035, %v1042
    %v1044 = vrot.slane %v1015, 4
    %v1045 = vsel %vm436, %v1044, %v1003
    %v1046 = vrot.slane %v1003, 4
    %v1047 = vsel %vm436, %v1015, %v1046
    %v1049 = vunpack.c.l.s4 1934713408
    %v1050 = vunpack.c.0.s8 %v1049
    %v1051 = vperm.slane %v1045, %v1050
    %v1053 = vunpack.c.l.s4 1934713408
    %v1054 = vunpack.c.0.s8 %v1053
    %v1055 = vperm.slane %v1047, %v1054
    %v1056 = vrot.slane %v1019, 4
    %v1057 = vsel %vm436, %v1056, %v1007
    %v1058 = vrot.slane %v1007, 4
    %v1059 = vsel %vm436, %v1019, %v1058
    %v1061 = vunpack.c.l.s4 1934713408
    %v1062 = vunpack.c.0.s8 %v1061
    %v1063 = vperm.slane %v1057, %v1062
    %v1065 = vunpack.c.l.s4 1934713408
    %v1066 = vunpack.c.0.s8 %v1065
    %v1067 = vperm.slane %v1059, %v1066
    %v1068 = vrot.slane %v1039, 4
    %v1069 = vsel %vm436, %v1068, %v1027
    %v1070 = vrot.slane %v1027, 4
    %v1071 = vsel %vm436, %v1039, %v1070
    %v1073 = vunpack.c.l.s4 1934713408
    %v1074 = vunpack.c.0.s8 %v1073
    %v1075 = vperm.slane %v1069, %v1074
    %v1077 = vunpack.c.l.s4 1934713408
    %v1078 = vunpack.c.0.s8 %v1077
    %v1079 = vperm.slane %v1071, %v1078
    %v1080 = vrot.slane %v1043, 4
    %v1081 = vsel %vm436, %v1080, %v1031
    %v1082 = vrot.slane %v1031, 4
    %v1083 = vsel %vm436, %v1043, %v1082
    %v1085 = vunpack.c.l.s4 1934713408
    %v1086 = vunpack.c.0.s8 %v1085
    %v1087 = vperm.slane %v1081, %v1086
    %v1089 = vunpack.c.l.s4 1934713408
    %v1090 = vunpack.c.0.s8 %v1089
    %v1091 = vperm.slane %v1083, %v1090
    %v1092 = vrot.slane %v1075, 4
    %v1093 = vsel %vm436, %v1092, %v1051
    %v1094 = vrot.slane %v1051, 4
    %v1095 = vsel %vm436, %v1075, %v1094
    %v1096 = vrot.slane %v1079, 4
    %v1097 = vsel %vm436, %v1096, %v1055
    %v1098 = vrot.slane %v1055, 4
    %v1099 = vsel %vm436, %v1079, %v1098
    %v1100 = vrot.slane %v1087, 4
    %v1101 = vsel %vm436, %v1100, %v1063
    %v1102 = vrot.slane %v1063, 4
    %v1103 = vsel %vm436, %v1087, %v1102
    %v1104 = vrot.slane %v1091, 4
    %v1105 = vsel %vm436, %v1104, %v1067
    %v1106 = vrot.slane %v1067, 4
    %v1107 = vsel %vm436, %v1091, %v1106
    %v1108 = vrot.slane %v340, 4
    %v1109 = vsel %vm436, %v1108, %v326
    %v1110 = vrot.slane %v326, 4
    %v1111 = vsel %vm436, %v340, %v1110
    %v1113 = vunpack.c.l.s4 1983009808
    %v1114 = vunpack.c.0.s8 %v1113
    %v1115 = vperm.slane %v1109, %v1114
    %v1117 = vunpack.c.l.s4 1983009808
    %v1118 = vunpack.c.0.s8 %v1117
    %v1119 = vperm.slane %v1111, %v1118
    %v1120 = vrot.slane %v347, 4
    %v1121 = vsel %vm436, %v1120, %v333
    %v1122 = vrot.slane %v333, 4
    %v1123 = vsel %vm436, %v347, %v1122
    %v1125 = vunpack.c.l.s4 1983009808
    %v1126 = vunpack.c.0.s8 %v1125
    %v1127 = vperm.slane %v1121, %v1126
    %v1129 = vunpack.c.l.s4 1983009808
    %v1130 = vunpack.c.0.s8 %v1129
    %v1131 = vperm.slane %v1123, %v1130
    %v1132 = vrot.slane %v368, 4
    %v1133 = vsel %vm436, %v1132, %v354
    %v1134 = vrot.slane %v354, 4
    %v1135 = vsel %vm436, %v368, %v1134
    %v1137 = vunpack.c.l.s4 1983009808
    %v1138 = vunpack.c.0.s8 %v1137
    %v1139 = vperm.slane %v1133, %v1138
    %v1141 = vunpack.c.l.s4 1983009808
    %v1142 = vunpack.c.0.s8 %v1141
    %v1143 = vperm.slane %v1135, %v1142
    %v1144 = vrot.slane %v375, 4
    %v1145 = vsel %vm436, %v1144, %v361
    %v1146 = vrot.slane %v361, 4
    %v1147 = vsel %vm436, %v375, %v1146
    %v1149 = vunpack.c.l.s4 1983009808
    %v1150 = vunpack.c.0.s8 %v1149
    %v1151 = vperm.slane %v1145, %v1150
    %v1153 = vunpack.c.l.s4 1983009808
    %v1154 = vunpack.c.0.s8 %v1153
    %v1155 = vperm.slane %v1147, %v1154
    %v1156 = vrot.slane %v1127, 4
    %v1157 = vsel %vm436, %v1156, %v1115
    %v1158 = vrot.slane %v1115, 4
    %v1159 = vsel %vm436, %v1127, %v1158
    %v1161 = vunpack.c.l.s4 1934713408
    %v1162 = vunpack.c.0.s8 %v1161
    %v1163 = vperm.slane %v1157, %v1162
    %v1165 = vunpack.c.l.s4 1934713408
    %v1166 = vunpack.c.0.s8 %v1165
    %v1167 = vperm.slane %v1159, %v1166
    %v1168 = vrot.slane %v1131, 4
    %v1169 = vsel %vm436, %v1168, %v1119
    %v1170 = vrot.slane %v1119, 4
    %v1171 = vsel %vm436, %v1131, %v1170
    %v1173 = vunpack.c.l.s4 1934713408
    %v1174 = vunpack.c.0.s8 %v1173
    %v1175 = vperm.slane %v1169, %v1174
    %v1177 = vunpack.c.l.s4 1934713408
    %v1178 = vunpack.c.0.s8 %v1177
    %v1179 = vperm.slane %v1171, %v1178
    %v1180 = vrot.slane %v1151, 4
    %v1181 = vsel %vm436, %v1180, %v1139
    %v1182 = vrot.slane %v1139, 4
    %v1183 = vsel %vm436, %v1151, %v1182
    %v1185 = vunpack.c.l.s4 1934713408
    %v1186 = vunpack.c.0.s8 %v1185
    %v1187 = vperm.slane %v1181, %v1186
    %v1189 = vunpack.c.l.s4 1934713408
    %v1190 = vunpack.c.0.s8 %v1189
    %v1191 = vperm.slane %v1183, %v1190
    %v1192 = vrot.slane %v1155, 4
    %v1193 = vsel %vm436, %v1192, %v1143
    %v1194 = vrot.slane %v1143, 4
    %v1195 = vsel %vm436, %v1155, %v1194
    %v1197 = vunpack.c.l.s4 1934713408
    %v1198 = vunpack.c.0.s8 %v1197
    %v1199 = vperm.slane %v1193, %v1198
    %v1201 = vunpack.c.l.s4 1934713408
    %v1202 = vunpack.c.0.s8 %v1201
    %v1203 = vperm.slane %v1195, %v1202
    %v1204 = vrot.slane %v1187, 4
    %v1205 = vsel %vm436, %v1204, %v1163
    %v1206 = vrot.slane %v1163, 4
    %v1207 = vsel %vm436, %v1187, %v1206
    %v1208 = vrot.slane %v1191, 4
    %v1209 = vsel %vm436, %v1208, %v1167
    %v1210 = vrot.slane %v1167, 4
    %v1211 = vsel %vm436, %v1191, %v1210
    %v1212 = vrot.slane %v1199, 4
    %v1213 = vsel %vm436, %v1212, %v1175
    %v1214 = vrot.slane %v1175, 4
    %v1215 = vsel %vm436, %v1199, %v1214
    %v1216 = vrot.slane %v1203, 4
    %v1217 = vsel %vm436, %v1216, %v1179
    %v1218 = vrot.slane %v1179, 4
    %v1219 = vsel %vm436, %v1203, %v1218
    %v1220 = vrot.slane %v396, 4
    %v1221 = vsel %vm436, %v1220, %v382
    %v1222 = vrot.slane %v382, 4
    %v1223 = vsel %vm436, %v396, %v1222
    %v1225 = vunpack.c.l.s4 1983009808
    %v1226 = vunpack.c.0.s8 %v1225
    %v1227 = vperm.slane %v1221, %v1226
    %v1229 = vunpack.c.l.s4 1983009808
    %v1230 = vunpack.c.0.s8 %v1229
    %v1231 = vperm.slane %v1223, %v1230
    %v1232 = vrot.slane %v403, 4
    %v1233 = vsel %vm436, %v1232, %v389
    %v1234 = vrot.slane %v389, 4
    %v1235 = vsel %vm436, %v403, %v1234
    %v1237 = vunpack.c.l.s4 1983009808
    %v1238 = vunpack.c.0.s8 %v1237
    %v1239 = vperm.slane %v1233, %v1238
    %v1241 = vunpack.c.l.s4 1983009808
    %v1242 = vunpack.c.0.s8 %v1241
    %v1243 = vperm.slane %v1235, %v1242
    %v1244 = vrot.slane %v424, 4
    %v1245 = vsel %vm436, %v1244, %v410
    %v1246 = vrot.slane %v410, 4
    %v1247 = vsel %vm436, %v424, %v1246
    %v1249 = vunpack.c.l.s4 1983009808
    %v1250 = vunpack.c.0.s8 %v1249
    %v1251 = vperm.slane %v1245, %v1250
    %v1253 = vunpack.c.l.s4 1983009808
    %v1254 = vunpack.c.0.s8 %v1253
    %v1255 = vperm.slane %v1247, %v1254
    %v1256 = vrot.slane %v431, 4
    %v1257 = vsel %vm436, %v1256, %v417
    %v1258 = vrot.slane %v417, 4
    %v1259 = vsel %vm436, %v431, %v1258
    %v1261 = vunpack.c.l.s4 1983009808
    %v1262 = vunpack.c.0.s8 %v1261
    %v1263 = vperm.slane %v1257, %v1262
    %v1265 = vunpack.c.l.s4 1983009808
    %v1266 = vunpack.c.0.s8 %v1265
    %v1267 = vperm.slane %v1259, %v1266
    %v1268 = vrot.slane %v1239, 4
    %v1269 = vsel %vm436, %v1268, %v1227
    %v1270 = vrot.slane %v1227, 4
    %v1271 = vsel %vm436, %v1239, %v1270
    %v1273 = vunpack.c.l.s4 1934713408
    %v1274 = vunpack.c.0.s8 %v1273
    %v1275 = vperm.slane %v1269, %v1274
    %v1277 = vunpack.c.l.s4 1934713408
    %v1278 = vunpack.c.0.s8 %v1277
    %v1279 = vperm.slane %v1271, %v1278
    %v1280 = vrot.slane %v1243, 4
    %v1281 = vsel %vm436, %v1280, %v1231
    %v1282 = vrot.slane %v1231, 4
    %v1283 = vsel %vm436, %v1243, %v1282
    %v1285 = vunpack.c.l.s4 1934713408
    %v1286 = vunpack.c.0.s8 %v1285
    %v1287 = vperm.slane %v1281, %v1286
    %v1289 = vunpack.c.l.s4 1934713408
    %v1290 = vunpack.c.0.s8 %v1289
    %v1291 = vperm.slane %v1283, %v1290
    %v1292 = vrot.slane %v1263, 4
    %v1293 = vsel %vm436, %v1292, %v1251
    %v1294 = vrot.slane %v1251, 4
    %v1295 = vsel %vm436, %v1263, %v1294
    %v1297 = vunpack.c.l.s4 1934713408
    %v1298 = vunpack.c.0.s8 %v1297
    %v1299 = vperm.slane %v1293, %v1298
    %v1301 = vunpack.c.l.s4 1934713408
    %v1302 = vunpack.c.0.s8 %v1301
    %v1303 = vperm.slane %v1295, %v1302
    %v1304 = vrot.slane %v1267, 4
    %v1305 = vsel %vm436, %v1304, %v1255
    %v1306 = vrot.slane %v1255, 4
    %v1307 = vsel %vm436, %v1267, %v1306
    %v1309 = vunpack.c.l.s4 1934713408
    %v1310 = vunpack.c.0.s8 %v1309
    %v1311 = vperm.slane %v1305, %v1310
    %v1313 = vunpack.c.l.s4 1934713408
    %v1314 = vunpack.c.0.s8 %v1313
    %v1315 = vperm.slane %v1307, %v1314
    %v1316 = vrot.slane %v1299, 4
    %v1317 = vsel %vm436, %v1316, %v1275
    %v1318 = vrot.slane %v1275, 4
    %v1319 = vsel %vm436, %v1299, %v1318
    %v1320 = vrot.slane %v1303, 4
    %v1321 = vsel %vm436, %v1320, %v1279
    %v1322 = vrot.slane %v1279, 4
    %v1323 = vsel %vm436, %v1303, %v1322
    %v1324 = vrot.slane %v1311, 4
    %v1325 = vsel %vm436, %v1324, %v1287
    %v1326 = vrot.slane %v1287, 4
    %v1327 = vsel %vm436, %v1311, %v1326
    %v1328 = vrot.slane %v1315, 4
    %v1329 = vsel %vm436, %v1328, %v1291
    %v1330 = vrot.slane %v1291, 4
    %v1331 = vsel %vm436, %v1315, %v1330
    %v1332 = vrot.slane %v341, 4
    %v1333 = vsel %vm436, %v1332, %v327
    %v1334 = vrot.slane %v327, 4
    %v1335 = vsel %vm436, %v341, %v1334
    %v1337 = vunpack.c.l.s4 1983009808
    %v1338 = vunpack.c.0.s8 %v1337
    %v1339 = vperm.slane %v1333, %v1338
    %v1341 = vunpack.c.l.s4 1983009808
    %v1342 = vunpack.c.0.s8 %v1341
    %v1343 = vperm.slane %v1335, %v1342
    %v1344 = vrot.slane %v348, 4
    %v1345 = vsel %vm436, %v1344, %v334
    %v1346 = vrot.slane %v334, 4
    %v1347 = vsel %vm436, %v348, %v1346
    %v1349 = vunpack.c.l.s4 1983009808
    %v1350 = vunpack.c.0.s8 %v1349
    %v1351 = vperm.slane %v1345, %v1350
    %v1353 = vunpack.c.l.s4 1983009808
    %v1354 = vunpack.c.0.s8 %v1353
    %v1355 = vperm.slane %v1347, %v1354
    %v1356 = vrot.slane %v369, 4
    %v1357 = vsel %vm436, %v1356, %v355
    %v1358 = vrot.slane %v355, 4
    %v1359 = vsel %vm436, %v369, %v1358
    %v1361 = vunpack.c.l.s4 1983009808
    %v1362 = vunpack.c.0.s8 %v1361
    %v1363 = vperm.slane %v1357, %v1362
    %v1365 = vunpack.c.l.s4 1983009808
    %v1366 = vunpack.c.0.s8 %v1365
    %v1367 = vperm.slane %v1359, %v1366
    %v1368 = vrot.slane %v376, 4
    %v1369 = vsel %vm436, %v1368, %v362
    %v1370 = vrot.slane %v362, 4
    %v1371 = vsel %vm436, %v376, %v1370
    %v1373 = vunpack.c.l.s4 1983009808
    %v1374 = vunpack.c.0.s8 %v1373
    %v1375 = vperm.slane %v1369, %v1374
    %v1377 = vunpack.c.l.s4 1983009808
    %v1378 = vunpack.c.0.s8 %v1377
    %v1379 = vperm.slane %v1371, %v1378
    %v1380 = vrot.slane %v1351, 4
    %v1381 = vsel %vm436, %v1380, %v1339
    %v1382 = vrot.slane %v1339, 4
    %v1383 = vsel %vm436, %v1351, %v1382
    %v1385 = vunpack.c.l.s4 1934713408
    %v1386 = vunpack.c.0.s8 %v1385
    %v1387 = vperm.slane %v1381, %v1386
    %v1389 = vunpack.c.l.s4 1934713408
    %v1390 = vunpack.c.0.s8 %v1389
    %v1391 = vperm.slane %v1383, %v1390
    %v1392 = vrot.slane %v1355, 4
    %v1393 = vsel %vm436, %v1392, %v1343
    %v1394 = vrot.slane %v1343, 4
    %v1395 = vsel %vm436, %v1355, %v1394
    %v1397 = vunpack.c.l.s4 1934713408
    %v1398 = vunpack.c.0.s8 %v1397
    %v1399 = vperm.slane %v1393, %v1398
    %v1401 = vunpack.c.l.s4 1934713408
    %v1402 = vunpack.c.0.s8 %v1401
    %v1403 = vperm.slane %v1395, %v1402
    %v1404 = vrot.slane %v1375, 4
    %v1405 = vsel %vm436, %v1404, %v1363
    %v1406 = vrot.slane %v1363, 4
    %v1407 = vsel %vm436, %v1375, %v1406
    %v1409 = vunpack.c.l.s4 1934713408
    %v1410 = vunpack.c.0.s8 %v1409
    %v1411 = vperm.slane %v1405, %v1410
    %v1413 = vunpack.c.l.s4 1934713408
    %v1414 = vunpack.c.0.s8 %v1413
    %v1415 = vperm.slane %v1407, %v1414
    %v1416 = vrot.slane %v1379, 4
    %v1417 = vsel %vm436, %v1416, %v1367
    %v1418 = vrot.slane %v1367, 4
    %v1419 = vsel %vm436, %v1379, %v1418
    %v1421 = vunpack.c.l.s4 1934713408
    %v1422 = vunpack.c.0.s8 %v1421
    %v1423 = vperm.slane %v1417, %v1422
    %v1425 = vunpack.c.l.s4 1934713408
    %v1426 = vunpack.c.0.s8 %v1425
    %v1427 = vperm.slane %v1419, %v1426
    %v1428 = vrot.slane %v1411, 4
    %v1429 = vsel %vm436, %v1428, %v1387
    %v1430 = vrot.slane %v1387, 4
    %v1431 = vsel %vm436, %v1411, %v1430
    %v1432 = vrot.slane %v1415, 4
    %v1433 = vsel %vm436, %v1432, %v1391
    %v1434 = vrot.slane %v1391, 4
    %v1435 = vsel %vm436, %v1415, %v1434
    %v1436 = vrot.slane %v1423, 4
    %v1437 = vsel %vm436, %v1436, %v1399
    %v1438 = vrot.slane %v1399, 4
    %v1439 = vsel %vm436, %v1423, %v1438
    %v1440 = vrot.slane %v1427, 4
    %v1441 = vsel %vm436, %v1440, %v1403
    %v1442 = vrot.slane %v1403, 4
    %v1443 = vsel %vm436, %v1427, %v1442
    %v1444 = vrot.slane %v397, 4
    %v1445 = vsel %vm436, %v1444, %v383
    %v1446 = vrot.slane %v383, 4
    %v1447 = vsel %vm436, %v397, %v1446
    %v1449 = vunpack.c.l.s4 1983009808
    %v1450 = vunpack.c.0.s8 %v1449
    %v1451 = vperm.slane %v1445, %v1450
    %v1453 = vunpack.c.l.s4 1983009808
    %v1454 = vunpack.c.0.s8 %v1453
    %v1455 = vperm.slane %v1447, %v1454
    %v1456 = vrot.slane %v404, 4
    %v1457 = vsel %vm436, %v1456, %v390
    %v1458 = vrot.slane %v390, 4
    %v1459 = vsel %vm436, %v404, %v1458
    %v1461 = vunpack.c.l.s4 1983009808
    %v1462 = vunpack.c.0.s8 %v1461
    %v1463 = vperm.slane %v1457, %v1462
    %v1465 = vunpack.c.l.s4 1983009808
    %v1466 = vunpack.c.0.s8 %v1465
    %v1467 = vperm.slane %v1459, %v1466
    %v1468 = vrot.slane %v425, 4
    %v1469 = vsel %vm436, %v1468, %v411
    %v1470 = vrot.slane %v411, 4
    %v1471 = vsel %vm436, %v425, %v1470
    %v1473 = vunpack.c.l.s4 1983009808
    %v1474 = vunpack.c.0.s8 %v1473
    %v1475 = vperm.slane %v1469, %v1474
    %v1477 = vunpack.c.l.s4 1983009808
    %v1478 = vunpack.c.0.s8 %v1477
    %v1479 = vperm.slane %v1471, %v1478
    %v1480 = vrot.slane %v432, 4
    %v1481 = vsel %vm436, %v1480, %v418
    %v1482 = vrot.slane %v418, 4
    %v1483 = vsel %vm436, %v432, %v1482
    %v1485 = vunpack.c.l.s4 1983009808
    %v1486 = vunpack.c.0.s8 %v1485
    %v1487 = vperm.slane %v1481, %v1486
    %v1489 = vunpack.c.l.s4 1983009808
    %v1490 = vunpack.c.0.s8 %v1489
    %v1491 = vperm.slane %v1483, %v1490
    %v1492 = vrot.slane %v1463, 4
    %v1493 = vsel %vm436, %v1492, %v1451
    %v1494 = vrot.slane %v1451, 4
    %v1495 = vsel %vm436, %v1463, %v1494
    %v1497 = vunpack.c.l.s4 1934713408
    %v1498 = vunpack.c.0.s8 %v1497
    %v1499 = vperm.slane %v1493, %v1498
    %v1501 = vunpack.c.l.s4 1934713408
    %v1502 = vunpack.c.0.s8 %v1501
    %v1503 = vperm.slane %v1495, %v1502
    %v1504 = vrot.slane %v1467, 4
    %v1505 = vsel %vm436, %v1504, %v1455
    %v1506 = vrot.slane %v1455, 4
    %v1507 = vsel %vm436, %v1467, %v1506
    %v1509 = vunpack.c.l.s4 1934713408
    %v1510 = vunpack.c.0.s8 %v1509
    %v1511 = vperm.slane %v1505, %v1510
    %v1513 = vunpack.c.l.s4 1934713408
    %v1514 = vunpack.c.0.s8 %v1513
    %v1515 = vperm.slane %v1507, %v1514
    %v1516 = vrot.slane %v1487, 4
    %v1517 = vsel %vm436, %v1516, %v1475
    %v1518 = vrot.slane %v1475, 4
    %v1519 = vsel %vm436, %v1487, %v1518
    %v1521 = vunpack.c.l.s4 1934713408
    %v1522 = vunpack.c.0.s8 %v1521
    %v1523 = vperm.slane %v1517, %v1522
    %v1525 = vunpack.c.l.s4 1934713408
    %v1526 = vunpack.c.0.s8 %v1525
    %v1527 = vperm.slane %v1519, %v1526
    %v1528 = vrot.slane %v1491, 4
    %v1529 = vsel %vm436, %v1528, %v1479
    %v1530 = vrot.slane %v1479, 4
    %v1531 = vsel %vm436, %v1491, %v1530
    %v1533 = vunpack.c.l.s4 1934713408
    %v1534 = vunpack.c.0.s8 %v1533
    %v1535 = vperm.slane %v1529, %v1534
    %v1537 = vunpack.c.l.s4 1934713408
    %v1538 = vunpack.c.0.s8 %v1537
    %v1539 = vperm.slane %v1531, %v1538
    %v1540 = vrot.slane %v1523, 4
    %v1541 = vsel %vm436, %v1540, %v1499
    %v1542 = vrot.slane %v1499, 4
    %v1543 = vsel %vm436, %v1523, %v1542
    %v1544 = vrot.slane %v1527, 4
    %v1545 = vsel %vm436, %v1544, %v1503
    %v1546 = vrot.slane %v1503, 4
    %v1547 = vsel %vm436, %v1527, %v1546
    %v1548 = vrot.slane %v1535, 4
    %v1549 = vsel %vm436, %v1548, %v1511
    %v1550 = vrot.slane %v1511, 4
    %v1551 = vsel %vm436, %v1535, %v1550
    %v1552 = vrot.slane %v1539, 4
    %v1553 = vsel %vm436, %v1552, %v1515
    %v1554 = vrot.slane %v1515, 4
    %v1555 = vsel %vm436, %v1539, %v1554
    %v1556 = vrot.slane %v342, 4
    %v1557 = vsel %vm436, %v1556, %v328
    %v1558 = vrot.slane %v328, 4
    %v1559 = vsel %vm436, %v342, %v1558
    %v1561 = vunpack.c.l.s4 1983009808
    %v1562 = vunpack.c.0.s8 %v1561
    %v1563 = vperm.slane %v1557, %v1562
    %v1565 = vunpack.c.l.s4 1983009808
    %v1566 = vunpack.c.0.s8 %v1565
    %v1567 = vperm.slane %v1559, %v1566
    %v1568 = vrot.slane %v349, 4
    %v1569 = vsel %vm436, %v1568, %v335
    %v1570 = vrot.slane %v335, 4
    %v1571 = vsel %vm436, %v349, %v1570
    %v1573 = vunpack.c.l.s4 1983009808
    %v1574 = vunpack.c.0.s8 %v1573
    %v1575 = vperm.slane %v1569, %v1574
    %v1577 = vunpack.c.l.s4 1983009808
    %v1578 = vunpack.c.0.s8 %v1577
    %v1579 = vperm.slane %v1571, %v1578
    %v1580 = vrot.slane %v370, 4
    %v1581 = vsel %vm436, %v1580, %v356
    %v1582 = vrot.slane %v356, 4
    %v1583 = vsel %vm436, %v370, %v1582
    %v1585 = vunpack.c.l.s4 1983009808
    %v1586 = vunpack.c.0.s8 %v1585
    %v1587 = vperm.slane %v1581, %v1586
    %v1589 = vunpack.c.l.s4 1983009808
    %v1590 = vunpack.c.0.s8 %v1589
    %v1591 = vperm.slane %v1583, %v1590
    %v1592 = vrot.slane %v377, 4
    %v1593 = vsel %vm436, %v1592, %v363
    %v1594 = vrot.slane %v363, 4
    %v1595 = vsel %vm436, %v377, %v1594
    %v1597 = vunpack.c.l.s4 1983009808
    %v1598 = vunpack.c.0.s8 %v1597
    %v1599 = vperm.slane %v1593, %v1598
    %v1601 = vunpack.c.l.s4 1983009808
    %v1602 = vunpack.c.0.s8 %v1601
    %v1603 = vperm.slane %v1595, %v1602
    %v1604 = vrot.slane %v1575, 4
    %v1605 = vsel %vm436, %v1604, %v1563
    %v1606 = vrot.slane %v1563, 4
    %v1607 = vsel %vm436, %v1575, %v1606
    %v1609 = vunpack.c.l.s4 1934713408
    %v1610 = vunpack.c.0.s8 %v1609
    %v1611 = vperm.slane %v1605, %v1610
    %v1613 = vunpack.c.l.s4 1934713408
    %v1614 = vunpack.c.0.s8 %v1613
    %v1615 = vperm.slane %v1607, %v1614
    %v1616 = vrot.slane %v1579, 4
    %v1617 = vsel %vm436, %v1616, %v1567
    %v1618 = vrot.slane %v1567, 4
    %v1619 = vsel %vm436, %v1579, %v1618
    %v1621 = vunpack.c.l.s4 1934713408
    %v1622 = vunpack.c.0.s8 %v1621
    %v1623 = vperm.slane %v1617, %v1622
    %v1625 = vunpack.c.l.s4 1934713408
    %v1626 = vunpack.c.0.s8 %v1625
    %v1627 = vperm.slane %v1619, %v1626
    %v1628 = vrot.slane %v1599, 4
    %v1629 = vsel %vm436, %v1628, %v1587
    %v1630 = vrot.slane %v1587, 4
    %v1631 = vsel %vm436, %v1599, %v1630
    %v1633 = vunpack.c.l.s4 1934713408
    %v1634 = vunpack.c.0.s8 %v1633
    %v1635 = vperm.slane %v1629, %v1634
    %v1637 = vunpack.c.l.s4 1934713408
    %v1638 = vunpack.c.0.s8 %v1637
    %v1639 = vperm.slane %v1631, %v1638
    %v1640 = vrot.slane %v1603, 4
    %v1641 = vsel %vm436, %v1640, %v1591
    %v1642 = vrot.slane %v1591, 4
    %v1643 = vsel %vm436, %v1603, %v1642
    %v1645 = vunpack.c.l.s4 1934713408
    %v1646 = vunpack.c.0.s8 %v1645
    %v1647 = vperm.slane %v1641, %v1646
    %v1649 = vunpack.c.l.s4 1934713408
    %v1650 = vunpack.c.0.s8 %v1649
    %v1651 = vperm.slane %v1643, %v1650
    %v1652 = vrot.slane %v1635, 4
    %v1653 = vsel %vm436, %v1652, %v1611
    %v1654 = vrot.slane %v1611, 4
    %v1655 = vsel %vm436, %v1635, %v1654
    %v1656 = vrot.slane %v1639, 4
    %v1657 = vsel %vm436, %v1656, %v1615
    %v1658 = vrot.slane %v1615, 4
    %v1659 = vsel %vm436, %v1639, %v1658
    %v1660 = vrot.slane %v1647, 4
    %v1661 = vsel %vm436, %v1660, %v1623
    %v1662 = vrot.slane %v1623, 4
    %v1663 = vsel %vm436, %v1647, %v1662
    %v1664 = vrot.slane %v1651, 4
    %v1665 = vsel %vm436, %v1664, %v1627
    %v1666 = vrot.slane %v1627, 4
    %v1667 = vsel %vm436, %v1651, %v1666
    %v1668 = vrot.slane %v398, 4
    %v1669 = vsel %vm436, %v1668, %v384
    %v1670 = vrot.slane %v384, 4
    %v1671 = vsel %vm436, %v398, %v1670
    %v1673 = vunpack.c.l.s4 1983009808
    %v1674 = vunpack.c.0.s8 %v1673
    %v1675 = vperm.slane %v1669, %v1674
    %v1677 = vunpack.c.l.s4 1983009808
    %v1678 = vunpack.c.0.s8 %v1677
    %v1679 = vperm.slane %v1671, %v1678
    %v1680 = vrot.slane %v405, 4
    %v1681 = vsel %vm436, %v1680, %v391
    %v1682 = vrot.slane %v391, 4
    %v1683 = vsel %vm436, %v405, %v1682
    %v1685 = vunpack.c.l.s4 1983009808
    %v1686 = vunpack.c.0.s8 %v1685
    %v1687 = vperm.slane %v1681, %v1686
    %v1689 = vunpack.c.l.s4 1983009808
    %v1690 = vunpack.c.0.s8 %v1689
    %v1691 = vperm.slane %v1683, %v1690
    %v1692 = vrot.slane %v426, 4
    %v1693 = vsel %vm436, %v1692, %v412
    %v1694 = vrot.slane %v412, 4
    %v1695 = vsel %vm436, %v426, %v1694
    %v1697 = vunpack.c.l.s4 1983009808
    %v1698 = vunpack.c.0.s8 %v1697
    %v1699 = vperm.slane %v1693, %v1698
    %v1701 = vunpack.c.l.s4 1983009808
    %v1702 = vunpack.c.0.s8 %v1701
    %v1703 = vperm.slane %v1695, %v1702
    %v1704 = vrot.slane %v433, 4
    %v1705 = vsel %vm436, %v1704, %v419
    %v1706 = vrot.slane %v419, 4
    %v1707 = vsel %vm436, %v433, %v1706
    %v1709 = vunpack.c.l.s4 1983009808
    %v1710 = vunpack.c.0.s8 %v1709
    %v1711 = vperm.slane %v1705, %v1710
    %v1713 = vunpack.c.l.s4 1983009808
    %v1714 = vunpack.c.0.s8 %v1713
    %v1715 = vperm.slane %v1707, %v1714
    %v1716 = vrot.slane %v1687, 4
    %v1717 = vsel %vm436, %v1716, %v1675
    %v1718 = vrot.slane %v1675, 4
    %v1719 = vsel %vm436, %v1687, %v1718
    %v1721 = vunpack.c.l.s4 1934713408
    %v1722 = vunpack.c.0.s8 %v1721
    %v1723 = vperm.slane %v1717, %v1722
    %v1725 = vunpack.c.l.s4 1934713408
    %v1726 = vunpack.c.0.s8 %v1725
    %v1727 = vperm.slane %v1719, %v1726
    %v1728 = vrot.slane %v1691, 4
    %v1729 = vsel %vm436, %v1728, %v1679
    %v1730 = vrot.slane %v1679, 4
    %v1731 = vsel %vm436, %v1691, %v1730
    %v1733 = vunpack.c.l.s4 1934713408
    %v1734 = vunpack.c.0.s8 %v1733
    %v1735 = vperm.slane %v1729, %v1734
    %v1737 = vunpack.c.l.s4 1934713408
    %v1738 = vunpack.c.0.s8 %v1737
    %v1739 = vperm.slane %v1731, %v1738
    %v1740 = vrot.slane %v1711, 4
    %v1741 = vsel %vm436, %v1740, %v1699
    %v1742 = vrot.slane %v1699, 4
    %v1743 = vsel %vm436, %v1711, %v1742
    %v1745 = vunpack.c.l.s4 1934713408
    %v1746 = vunpack.c.0.s8 %v1745
    %v1747 = vperm.slane %v1741, %v1746
    %v1749 = vunpack.c.l.s4 1934713408
    %v1750 = vunpack.c.0.s8 %v1749
    %v1751 = vperm.slane %v1743, %v1750
    %v1752 = vrot.slane %v1715, 4
    %v1753 = vsel %vm436, %v1752, %v1703
    %v1754 = vrot.slane %v1703, 4
    %v1755 = vsel %vm436, %v1715, %v1754
    %v1757 = vunpack.c.l.s4 1934713408
    %v1758 = vunpack.c.0.s8 %v1757
    %v1759 = vperm.slane %v1753, %v1758
    %v1761 = vunpack.c.l.s4 1934713408
    %v1762 = vunpack.c.0.s8 %v1761
    %v1763 = vperm.slane %v1755, %v1762
    %v1764 = vrot.slane %v1747, 4
    %v1765 = vsel %vm436, %v1764, %v1723
    %v1766 = vrot.slane %v1723, 4
    %v1767 = vsel %vm436, %v1747, %v1766
    %v1768 = vrot.slane %v1751, 4
    %v1769 = vsel %vm436, %v1768, %v1727
    %v1770 = vrot.slane %v1727, 4
    %v1771 = vsel %vm436, %v1751, %v1770
    %v1772 = vrot.slane %v1759, 4
    %v1773 = vsel %vm436, %v1772, %v1735
    %v1774 = vrot.slane %v1735, 4
    %v1775 = vsel %vm436, %v1759, %v1774
    %v1776 = vrot.slane %v1763, 4
    %v1777 = vsel %vm436, %v1776, %v1739
    %v1778 = vrot.slane %v1739, 4
    %v1779 = vsel %vm436, %v1763, %v1778
    %v1780 = vrot.slane %v343, 4
    %v1781 = vsel %vm436, %v1780, %v329
    %v1783 = vunpack.c.l.s4 1983009808
    %v1784 = vunpack.c.0.s8 %v1783
    %v1785 = vperm.slane %v1781, %v1784
    %v1786 = vrot.slane %v350, 4
    %v1787 = vsel %vm436, %v1786, %v336
    %v1789 = vunpack.c.l.s4 1983009808
    %v1790 = vunpack.c.0.s8 %v1789
    %v1791 = vperm.slane %v1787, %v1790
    %v1792 = vrot.slane %v371, 4
    %v1793 = vsel %vm436, %v1792, %v357
    %v1795 = vunpack.c.l.s4 1983009808
    %v1796 = vunpack.c.0.s8 %v1795
    %v1797 = vperm.slane %v1793, %v1796
    %v1798 = vrot.slane %v378, 4
    %v1799 = vsel %vm436, %v1798, %v364
    %v1801 = vunpack.c.l.s4 1983009808
    %v1802 = vunpack.c.0.s8 %v1801
    %v1803 = vperm.slane %v1799, %v1802
    %v1804 = vrot.slane %v1791, 4
    %v1805 = vsel %vm436, %v1804, %v1785
    %v1807 = vunpack.c.l.s4 1934713408
    %v1808 = vunpack.c.0.s8 %v1807
    %v1809 = vperm.slane %v1805, %v1808
    %v1810 = vrot.slane %v1803, 4
    %v1811 = vsel %vm436, %v1810, %v1797
    %v1813 = vunpack.c.l.s4 1934713408
    %v1814 = vunpack.c.0.s8 %v1813
    %v1815 = vperm.slane %v1811, %v1814
    %v1816 = vrot.slane %v1815, 4
    %v1817 = vsel %vm436, %v1816, %v1809
    %v1818 = vrot.slane %v1809, 4
    %v1819 = vsel %vm436, %v1815, %v1818
    %v1820 = vrot.slane %v399, 4
    %v1821 = vsel %vm436, %v1820, %v385
    %v1823 = vunpack.c.l.s4 1983009808
    %v1824 = vunpack.c.0.s8 %v1823
    %v1825 = vperm.slane %v1821, %v1824
    %v1826 = vrot.slane %v406, 4
    %v1827 = vsel %vm436, %v1826, %v392
    %v1829 = vunpack.c.l.s4 1983009808
    %v1830 = vunpack.c.0.s8 %v1829
    %v1831 = vperm.slane %v1827, %v1830
    %v1832 = vrot.slane %v427, 4
    %v1833 = vsel %vm436, %v1832, %v413
    %v1835 = vunpack.c.l.s4 1983009808
    %v1836 = vunpack.c.0.s8 %v1835
    %v1837 = vperm.slane %v1833, %v1836
    %v1838 = vrot.slane %v434, 4
    %v1839 = vsel %vm436, %v1838, %v420
    %v1841 = vunpack.c.l.s4 1983009808
    %v1842 = vunpack.c.0.s8 %v1841
    %v1843 = vperm.slane %v1839, %v1842
    %v1844 = vrot.slane %v1831, 4
    %v1845 = vsel %vm436, %v1844, %v1825
    %v1847 = vunpack.c.l.s4 1934713408
    %v1848 = vunpack.c.0.s8 %v1847
    %v1849 = vperm.slane %v1845, %v1848
    %v1850 = vrot.slane %v1843, 4
    %v1851 = vsel %vm436, %v1850, %v1837
    %v1853 = vunpack.c.l.s4 1934713408
    %v1854 = vunpack.c.0.s8 %v1853
    %v1855 = vperm.slane %v1851, %v1854
    %v1856 = vrot.slane %v1855, 4
    %v1857 = vsel %vm436, %v1856, %v1849
    %v1858 = vrot.slane %v1849, 4
    %v1859 = vsel %vm436, %v1855, %v1858
    %1862 = vrot.lane.b32.xlu0 %v535, 16
    %v1863 = vpop.permute.xlu0 %1862
    %1864 = vrot.lane.b32.xlu0 %v647, 16
    %v1865 = vpop.permute.xlu0 %1864
    %1870 = vrot.lane.b32.xlu0 %v537, 32
    %v1871 = vpop.permute.xlu0 %1870
    %1872 = vrot.lane.b32.xlu0 %v649, 32
    %v1873 = vpop.permute.xlu0 %1872
    %1878 = vrot.lane.b32.xlu0 %v539, 48
    %v1879 = vpop.permute.xlu0 %1878
    %1880 = vrot.lane.b32.xlu0 %v651, 48
    %v1881 = vpop.permute.xlu0 %1880
    %1886 = vrot.lane.b32.xlu0 %v541, 64
    %v1887 = vpop.permute.xlu0 %1886
    %1888 = vrot.lane.b32.xlu0 %v653, 64
    %v1889 = vpop.permute.xlu0 %1888
    %1894 = vrot.lane.b32.xlu0 %v543, 80
    %v1895 = vpop.permute.xlu0 %1894
    %1896 = vrot.lane.b32.xlu0 %v655, 80
    %v1897 = vpop.permute.xlu0 %1896
    %1902 = vrot.lane.b32.xlu0 %v545, 96
    %v1903 = vpop.permute.xlu0 %1902
    %1904 = vrot.lane.b32.xlu0 %v657, 96
    %v1905 = vpop.permute.xlu0 %1904
    %1910 = vrot.lane.b32.xlu0 %v547, 112
    %v1911 = vpop.permute.xlu0 %1910
    %1912 = vrot.lane.b32.xlu0 %v659, 112
    %v1913 = vpop.permute.xlu0 %1912
    %1918 = vrot.lane.b32.xlu0 %v759, 16
    %v1919 = vpop.permute.xlu0 %1918
    %1920 = vrot.lane.b32.xlu0 %v871, 16
    %v1921 = vpop.permute.xlu0 %1920
    %1926 = vrot.lane.b32.xlu0 %v761, 32
    %v1927 = vpop.permute.xlu0 %1926
    %1928 = vrot.lane.b32.xlu0 %v873, 32
    %v1929 = vpop.permute.xlu0 %1928
    %1934 = vrot.lane.b32.xlu0 %v763, 48
    %v1935 = vpop.permute.xlu0 %1934
    %1936 = vrot.lane.b32.xlu0 %v875, 48
    %v1937 = vpop.permute.xlu0 %1936
    %1942 = vrot.lane.b32.xlu0 %v765, 64
    %v1943 = vpop.permute.xlu0 %1942
    %1944 = vrot.lane.b32.xlu0 %v877, 64
    %v1945 = vpop.permute.xlu0 %1944
    %1950 = vrot.lane.b32.xlu0 %v767, 80
    %v1951 = vpop.permute.xlu0 %1950
    %1952 = vrot.lane.b32.xlu0 %v879, 80
    %v1953 = vpop.permute.xlu0 %1952
    %1958 = vrot.lane.b32.xlu0 %v769, 96
    %v1959 = vpop.permute.xlu0 %1958
    %1960 = vrot.lane.b32.xlu0 %v881, 96
    %v1961 = vpop.permute.xlu0 %1960
    %1966 = vrot.lane.b32.xlu0 %v771, 112
    %v1967 = vpop.permute.xlu0 %1966
    %1968 = vrot.lane.b32.xlu0 %v883, 112
    %v1969 = vpop.permute.xlu0 %1968
    %1974 = vrot.lane.b32.xlu0 %v983, 16
    %v1975 = vpop.permute.xlu0 %1974
    %1976 = vrot.lane.b32.xlu0 %v1095, 16
    %v1977 = vpop.permute.xlu0 %1976
    %1982 = vrot.lane.b32.xlu0 %v985, 32
    %v1983 = vpop.permute.xlu0 %1982
    %1984 = vrot.lane.b32.xlu0 %v1097, 32
    %v1985 = vpop.permute.xlu0 %1984
    %1990 = vrot.lane.b32.xlu0 %v987, 48
    %v1991 = vpop.permute.xlu0 %1990
    %1992 = vrot.lane.b32.xlu0 %v1099, 48
    %v1993 = vpop.permute.xlu0 %1992
    %1998 = vrot.lane.b32.xlu0 %v989, 64
    %v1999 = vpop.permute.xlu0 %1998
    %2000 = vrot.lane.b32.xlu0 %v1101, 64
    %v2001 = vpop.permute.xlu0 %2000
    %2006 = vrot.lane.b32.xlu0 %v991, 80
    %v2007 = vpop.permute.xlu0 %2006
    %2008 = vrot.lane.b32.xlu0 %v1103, 80
    %v2009 = vpop.permute.xlu0 %2008
    %2014 = vrot.lane.b32.xlu0 %v993, 96
    %v2015 = vpop.permute.xlu0 %2014
    %2016 = vrot.lane.b32.xlu0 %v1105, 96
    %v2017 = vpop.permute.xlu0 %2016
    %2022 = vrot.lane.b32.xlu0 %v995, 112
    %v2023 = vpop.permute.xlu0 %2022
    %2024 = vrot.lane.b32.xlu0 %v1107, 112
    %v2025 = vpop.permute.xlu0 %2024
    %2030 = vrot.lane.b32.xlu0 %v1207, 16
    %v2031 = vpop.permute.xlu0 %2030
    %2032 = vrot.lane.b32.xlu0 %v1319, 16
    %v2033 = vpop.permute.xlu0 %2032
    %2038 = vrot.lane.b32.xlu0 %v1209, 32
    %v2039 = vpop.permute.xlu0 %2038
    %2040 = vrot.lane.b32.xlu0 %v1321, 32
    %v2041 = vpop.permute.xlu0 %2040
    %2046 = vrot.lane.b32.xlu0 %v1211, 48
    %v2047 = vpop.permute.xlu0 %2046
    %2048 = vrot.lane.b32.xlu0 %v1323, 48
    %v2049 = vpop.permute.xlu0 %2048
    %2054 = vrot.lane.b32.xlu0 %v1213, 64
    %v2055 = vpop.permute.xlu0 %2054
    %2056 = vrot.lane.b32.xlu0 %v1325, 64
    %v2057 = vpop.permute.xlu0 %2056
    %2062 = vrot.lane.b32.xlu0 %v1215, 80
    %v2063 = vpop.permute.xlu0 %2062
    %2064 = vrot.lane.b32.xlu0 %v1327, 80
    %v2065 = vpop.permute.xlu0 %2064
    %2070 = vrot.lane.b32.xlu0 %v1217, 96
    %v2071 = vpop.permute.xlu0 %2070
    %2072 = vrot.lane.b32.xlu0 %v1329, 96
    %v2073 = vpop.permute.xlu0 %2072
    %2078 = vrot.lane.b32.xlu0 %v1219, 112
    %v2079 = vpop.permute.xlu0 %2078
    %2080 = vrot.lane.b32.xlu0 %v1331, 112
    %v2081 = vpop.permute.xlu0 %2080
    %2086 = vrot.lane.b32.xlu0 %v1431, 16
    %v2087 = vpop.permute.xlu0 %2086
    %2088 = vrot.lane.b32.xlu0 %v1543, 16
    %v2089 = vpop.permute.xlu0 %2088
    %2094 = vrot.lane.b32.xlu0 %v1433, 32
    %v2095 = vpop.permute.xlu0 %2094
    %2096 = vrot.lane.b32.xlu0 %v1545, 32
    %v2097 = vpop.permute.xlu0 %2096
    %2102 = vrot.lane.b32.xlu0 %v1435, 48
    %v2103 = vpop.permute.xlu0 %2102
    %2104 = vrot.lane.b32.xlu0 %v1547, 48
    %v2105 = vpop.permute.xlu0 %2104
    %2110 = vrot.lane.b32.xlu0 %v1437, 64
    %v2111 = vpop.permute.xlu0 %2110
    %2112 = vrot.lane.b32.xlu0 %v1549, 64
    %v2113 = vpop.permute.xlu0 %2112
    %2118 = vrot.lane.b32.xlu0 %v1439, 80
    %v2119 = vpop.permute.xlu0 %2118
    %2120 = vrot.lane.b32.xlu0 %v1551, 80
    %v2121 = vpop.permute.xlu0 %2120
    %2126 = vrot.lane.b32.xlu0 %v1441, 96
    %v2127 = vpop.permute.xlu0 %2126
    %2128 = vrot.lane.b32.xlu0 %v1553, 96
    %v2129 = vpop.permute.xlu0 %2128
    %2134 = vrot.lane.b32.xlu0 %v1443, 112
    %v2135 = vpop.permute.xlu0 %2134
    %2136 = vrot.lane.b32.xlu0 %v1555, 112
    %v2137 = vpop.permute.xlu0 %2136
    %2142 = vrot.lane.b32.xlu0 %v1655, 16
    %v2143 = vpop.permute.xlu0 %2142
    %2144 = vrot.lane.b32.xlu0 %v1767, 16
    %v2145 = vpop.permute.xlu0 %2144
    %2150 = vrot.lane.b32.xlu0 %v1657, 32
    %v2151 = vpop.permute.xlu0 %2150
    %2152 = vrot.lane.b32.xlu0 %v1769, 32
    %v2153 = vpop.permute.xlu0 %2152
    %2158 = vrot.lane.b32.xlu0 %v1659, 48
    %v2159 = vpop.permute.xlu0 %2158
    %2160 = vrot.lane.b32.xlu0 %v1771, 48
    %v2161 = vpop.permute.xlu0 %2160
    %2166 = vrot.lane.b32.xlu0 %v1661, 64
    %v2167 = vpop.permute.xlu0 %2166
    %2168 = vrot.lane.b32.xlu0 %v1773, 64
    %v2169 = vpop.permute.xlu0 %2168
    %2174 = vrot.lane.b32.xlu0 %v1663, 80
    %v2175 = vpop.permute.xlu0 %2174
    %2176 = vrot.lane.b32.xlu0 %v1775, 80
    %v2177 = vpop.permute.xlu0 %2176
    %2182 = vrot.lane.b32.xlu0 %v1665, 96
    %v2183 = vpop.permute.xlu0 %2182
    %2184 = vrot.lane.b32.xlu0 %v1777, 96
    %v2185 = vpop.permute.xlu0 %2184
    %2190 = vrot.lane.b32.xlu0 %v1667, 112
    %v2191 = vpop.permute.xlu0 %2190
    %2192 = vrot.lane.b32.xlu0 %v1779, 112
    %v2193 = vpop.permute.xlu0 %2192
    %2198 = vrot.lane.b32.xlu0 %v1819, 16
    %v2199 = vpop.permute.xlu0 %2198
    %2200 = vrot.lane.b32.xlu0 %v1859, 16
    %v2201 = vpop.permute.xlu0 %2200
    %vm2204 = vcmask 130048
    %v2205 = vsel %vm2204, %v533, %v1863
    %v2206 = vsel %vm2204, %v645, %v1865
    %vm2207 = vcmask 261120
    %v2208 = vsel %vm2207, %v2205, %v1871
    %v2209 = vsel %vm2207, %v2206, %v1873
    %vm2210 = vcmask 392192
    %v2211 = vsel %vm2210, %v2208, %v1879
    %v2212 = vsel %vm2210, %v2209, %v1881
    %vm2213 = vcmask 523264
    %v2214 = vsel %vm2213, %v2211, %v1887
    %v2215 = vsel %vm2213, %v2212, %v1889
    %vm2216 = vcmask 654336
    %v2217 = vsel %vm2216, %v2214, %v1895
    %v2218 = vsel %vm2216, %v2215, %v1897
    %vm2219 = vcmask 785408
    %v2220 = vsel %vm2219, %v2217, %v1903
    %v2221 = vsel %vm2219, %v2218, %v1905
    %vm2222 = vcmask 916480
    %v2223 = vsel %vm2222, %v2220, %v1911
    %v2224 = vsel %vm2222, %v2221, %v1913
    %v2225 = vsel %vm2204, %v757, %v1919
    %v2226 = vsel %vm2204, %v869, %v1921
    %v2227 = vsel %vm2207, %v2225, %v1927
    %v2228 = vsel %vm2207, %v2226, %v1929
    %v2229 = vsel %vm2210, %v2227, %v1935
    %v2230 = vsel %vm2210, %v2228, %v1937
    %v2231 = vsel %vm2213, %v2229, %v1943
    %v2232 = vsel %vm2213, %v2230, %v1945
    %v2233 = vsel %vm2216, %v2231, %v1951
    %v2234 = vsel %vm2216, %v2232, %v1953
    %v2235 = vsel %vm2219, %v2233, %v1959
    %v2236 = vsel %vm2219, %v2234, %v1961
    %v2237 = vsel %vm2222, %v2235, %v1967
    %v2238 = vsel %vm2222, %v2236, %v1969
    %v2239 = vsel %vm2204, %v981, %v1975
    %v2240 = vsel %vm2204, %v1093, %v1977
    %v2241 = vsel %vm2207, %v2239, %v1983
    %v2242 = vsel %vm2207, %v2240, %v1985
    %v2243 = vsel %vm2210, %v2241, %v1991
    %v2244 = vsel %vm2210, %v2242, %v1993
    %v2245 = vsel %vm2213, %v2243, %v1999
    %v2246 = vsel %vm2213, %v2244, %v2001
    %v2247 = vsel %vm2216, %v2245, %v2007
    %v2248 = vsel %vm2216, %v2246, %v2009
    %v2249 = vsel %vm2219, %v2247, %v2015
    %v2250 = vsel %vm2219, %v2248, %v2017
    %v2251 = vsel %vm2222, %v2249, %v2023
    %v2252 = vsel %vm2222, %v2250, %v2025
    %v2253 = vsel %vm2204, %v1205, %v2031
    %v2254 = vsel %vm2204, %v1317, %v2033
    %v2255 = vsel %vm2207, %v2253, %v2039
    %v2256 = vsel %vm2207, %v2254, %v2041
    %v2257 = vsel %vm2210, %v2255, %v2047
    %v2258 = vsel %vm2210, %v2256, %v2049
    %v2259 = vsel %vm2213, %v2257, %v2055
    %v2260 = vsel %vm2213, %v2258, %v2057
    %v2261 = vsel %vm2216, %v2259, %v2063
    %v2262 = vsel %vm2216, %v2260, %v2065
    %v2263 = vsel %vm2219, %v2261, %v2071
    %v2264 = vsel %vm2219, %v2262, %v2073
    %v2265 = vsel %vm2222, %v2263, %v2079
    %v2266 = vsel %vm2222, %v2264, %v2081
    %v2267 = vsel %vm2204, %v1429, %v2087
    %v2268 = vsel %vm2204, %v1541, %v2089
    %v2269 = vsel %vm2207, %v2267, %v2095
    %v2270 = vsel %vm2207, %v2268, %v2097
    %v2271 = vsel %vm2210, %v2269, %v2103
    %v2272 = vsel %vm2210, %v2270, %v2105
    %v2273 = vsel %vm2213, %v2271, %v2111
    %v2274 = vsel %vm2213, %v2272, %v2113
    %v2275 = vsel %vm2216, %v2273, %v2119
    %v2276 = vsel %vm2216, %v2274, %v2121
    %v2277 = vsel %vm2219, %v2275, %v2127
    %v2278 = vsel %vm2219, %v2276, %v2129
    %v2279 = vsel %vm2222, %v2277, %v2135
    %v2280 = vsel %vm2222, %v2278, %v2137
    %v2281 = vsel %vm2204, %v1653, %v2143
    %v2282 = vsel %vm2204, %v1765, %v2145
    %v2283 = vsel %vm2207, %v2281, %v2151
    %v2284 = vsel %vm2207, %v2282, %v2153
    %v2285 = vsel %vm2210, %v2283, %v2159
    %v2286 = vsel %vm2210, %v2284, %v2161
    %v2287 = vsel %vm2213, %v2285, %v2167
    %v2288 = vsel %vm2213, %v2286, %v2169
    %v2289 = vsel %vm2216, %v2287, %v2175
    %v2290 = vsel %vm2216, %v2288, %v2177
    %v2291 = vsel %vm2219, %v2289, %v2183
    %v2292 = vsel %vm2219, %v2290, %v2185
    %v2293 = vsel %vm2222, %v2291, %v2191
    %v2294 = vsel %vm2222, %v2292, %v2193
    %v2295 = vsel %vm2204, %v1817, %v2199
    %v2296 = vsel %vm2204, %v1857, %v2201
    %v2297 = vld [vmem:[#allocation4] sm:$0xff]
    %v2298 = vld [vmem:[#allocation4 + $0x8] sm:$0xff]
    %v2299 = vld [vmem:[#allocation4 + $0x10] sm:$0xff]
    %v2300 = vld [vmem:[#allocation4 + $0x18] sm:$0xff]
    %v2301 = vld [vmem:[#allocation4 + $0x20] sm:$0xff]
    %v2302 = vld [vmem:[#allocation4 + $0x28] sm:$0xff]
    %v2303 = vld [vmem:[#allocation4 + $0x30] sm:$0xff]
    %v2304 = vld [vmem:[#allocation4 + $0x38] sm:$0xff]
    %v2305 = vld [vmem:[#allocation4 + $0x40] sm:$0xff]
    %v2306 = vld [vmem:[#allocation4 + $0x48] sm:$0xff]
    %v2307 = vld [vmem:[#allocation4 + $0x50] sm:$0xff]
    %v2308 = vld [vmem:[#allocation4 + $0x58] sm:$0xff]
    %v2309 = vld [vmem:[#allocation4 + $0x60] sm:$0xff]
    %v2310 = vld [vmem:[#allocation4 + $0x68] sm:$0xff]
    %v2311 = vld [vmem:[#allocation4 + $0x70] sm:$0xff]
    %v2312 = vld [vmem:[#allocation4 + $0x78] sm:$0xff]
    %v2313 = vld [vmem:[#allocation4 + $0x80] sm:$0xff]
    %v2314 = vld [vmem:[#allocation4 + $0x88] sm:$0xff]
    %v2315 = vld [vmem:[#allocation4 + $0x90] sm:$0xff]
    %v2316 = vld [vmem:[#allocation4 + $0x98] sm:$0xff]
    %v2317 = vld [vmem:[#allocation4 + $0xa0] sm:$0xff]
    %v2318 = vld [vmem:[#allocation4 + $0xa8] sm:$0xff]
    %v2319 = vld [vmem:[#allocation4 + $0xb0] sm:$0xff]
    %v2320 = vld [vmem:[#allocation4 + $0xb8] sm:$0xff]
    %v2321 = vld [vmem:[#allocation4 + $0xc0] sm:$0xff]
    %v2322 = vld [vmem:[#allocation4 + $0xc8] sm:$0xff]
    %v2323 = vld [vmem:[#allocation4 + $0xd0] sm:$0xff]
    %v2324 = vld [vmem:[#allocation4 + $0xd8] sm:$0xff]
    %v2325 = vld [vmem:[#allocation4 + $0xe0] sm:$0xff]
    %v2326 = vld [vmem:[#allocation4 + $0xe8] sm:$0xff]
    %v2327 = vld [vmem:[#allocation4 + $0xf0] sm:$0xff]
    %v2328 = vld [vmem:[#allocation4 + $0xf8] sm:$0xff]
    %v2329 = vld [vmem:[#allocation4 + $0x100] sm:$0xff]
    %v2330 = vld [vmem:[#allocation4 + $0x108] sm:$0xff]
    %v2331 = vld [vmem:[#allocation4 + $0x110] sm:$0xff]
    %v2332 = vld [vmem:[#allocation4 + $0x118] sm:$0xff]
    %v2333 = vld [vmem:[#allocation4 + $0x120] sm:$0xff]
    %v2334 = vld [vmem:[#allocation4 + $0x128] sm:$0xff]
    %v2335 = vld [vmem:[#allocation4 + $0x130] sm:$0xff]
    %v2336 = vld [vmem:[#allocation4 + $0x138] sm:$0xff]
    %v2337 = vld [vmem:[#allocation4 + $0x140] sm:$0xff]
    %v2338 = vld [vmem:[#allocation4 + $0x148] sm:$0xff]
    %v2339 = vld [vmem:[#allocation4 + $0x150] sm:$0xff]
    %v2340 = vld [vmem:[#allocation4 + $0x158] sm:$0xff]
    %v2341 = vld [vmem:[#allocation4 + $0x160] sm:$0xff]
    %v2342 = vld [vmem:[#allocation4 + $0x168] sm:$0xff]
    %v2343 = vld [vmem:[#allocation4 + $0x170] sm:$0xff]
    %v2344 = vld [vmem:[#allocation4 + $0x178] sm:$0xff]
    %v2345 = vld [vmem:[#allocation4 + $0x180] sm:$0xff]
    %v2346 = vld [vmem:[#allocation4 + $0x188] sm:$0xff]
    %v2347 = vld [vmem:[#allocation4 + $0x190] sm:$0xff]
    %v2348 = vld [vmem:[#allocation4 + $0x198] sm:$0xff]
    %v2349 = vld [vmem:[#allocation4 + $0x1a0] sm:$0xff]
    %v2350 = vld [vmem:[#allocation4 + $0x1a8] sm:$0xff]
    %v2351 = vld [vmem:[#allocation4 + $0x1b0] sm:$0xff]
    %v2352 = vld [vmem:[#allocation4 + $0x1b8] sm:$0xff]
    %v2353 = vld [vmem:[#allocation4 + $0x1c0] sm:$0xff]
    %v2354 = vld [vmem:[#allocation4 + $0x1c8] sm:$0xff]
    %v2355 = vld [vmem:[#allocation4 + $0x1d0] sm:$0xff]
    %v2356 = vld [vmem:[#allocation4 + $0x1d8] sm:$0xff]
    %v2357 = vld [vmem:[#allocation4 + $0x1e0] sm:$0xff]
    %v2358 = vld [vmem:[#allocation4 + $0x1e8] sm:$0xff]
    %v2359 = vld [vmem:[#allocation4 + $0x1f0] sm:$0xff]
    %v2360 = vld [vmem:[#allocation4 + $0x1f8] sm:$0xff]
    %v2361 = vld [vmem:[#allocation4 + $0x200] sm:$0xff]
    %v2362 = vld [vmem:[#allocation4 + $0x208] sm:$0xff]
    %v2363 = vld [vmem:[#allocation4 + $0x210] sm:$0xff]
    %v2364 = vld [vmem:[#allocation4 + $0x218] sm:$0xff]
    %v2365 = vld [vmem:[#allocation4 + $0x220] sm:$0xff]
    %v2366 = vld [vmem:[#allocation4 + $0x228] sm:$0xff]
    %v2367 = vld [vmem:[#allocation4 + $0x230] sm:$0xff]
    %v2368 = vld [vmem:[#allocation4 + $0x238] sm:$0xff]
    %v2369 = vld [vmem:[#allocation4 + $0x240] sm:$0xff]
    %v2370 = vld [vmem:[#allocation4 + $0x248] sm:$0xff]
    %v2371 = vld [vmem:[#allocation4 + $0x250] sm:$0xff]
    %v2372 = vld [vmem:[#allocation4 + $0x258] sm:$0xff]
    %v2373 = vld [vmem:[#allocation4 + $0x260] sm:$0xff]
    %v2374 = vld [vmem:[#allocation4 + $0x268] sm:$0xff]
    %v2375 = vld [vmem:[#allocation4 + $0x270] sm:$0xff]
    %v2376 = vld [vmem:[#allocation4 + $0x278] sm:$0xff]
    %v2377 = vld [vmem:[#allocation4 + $0x280] sm:$0xff]
    %v2378 = vld [vmem:[#allocation4 + $0x288] sm:$0xff]
    %v2379 = vld [vmem:[#allocation4 + $0x290] sm:$0xff]
    %v2380 = vld [vmem:[#allocation4 + $0x298] sm:$0xff]
    %v2381 = vld [vmem:[#allocation4 + $0x2a0] sm:$0xff]
    %v2382 = vld [vmem:[#allocation4 + $0x2a8] sm:$0xff]
    %v2383 = vld [vmem:[#allocation4 + $0x2b0] sm:$0xff]
    %v2384 = vld [vmem:[#allocation4 + $0x2b8] sm:$0xff]
    %v2385 = vld [vmem:[#allocation4 + $0x2c0] sm:$0xff]
    %v2386 = vld [vmem:[#allocation4 + $0x2c8] sm:$0xff]
    %v2387 = vld [vmem:[#allocation4 + $0x2d0] sm:$0xff]
    %v2388 = vld [vmem:[#allocation4 + $0x2d8] sm:$0xff]
    %v2389 = vld [vmem:[#allocation4 + $0x2e0] sm:$0xff]
    %v2390 = vld [vmem:[#allocation4 + $0x2e8] sm:$0xff]
    %v2391 = vld [vmem:[#allocation4 + $0x2f0] sm:$0xff]
    %v2392 = vld [vmem:[#allocation4 + $0x2f8] sm:$0xff]
    %v2393 = vld [vmem:[#allocation4 + $0x300] sm:$0xff]
    %v2394 = vld [vmem:[#allocation4 + $0x308] sm:$0xff]
    %v2395 = vld [vmem:[#allocation4 + $0x310] sm:$0xff]
    %v2396 = vld [vmem:[#allocation4 + $0x318] sm:$0xff]
    %v2397 = vld [vmem:[#allocation4 + $0x320] sm:$0xff]
    %v2398 = vld [vmem:[#allocation4 + $0x328] sm:$0xff]
    %v2399 = vld [vmem:[#allocation4 + $0x330] sm:$0xff]
    %v2400 = vld [vmem:[#allocation4 + $0x338] sm:$0xff]
    %v2401 = vld [vmem:[#allocation4 + $0x340] sm:$0xff]
    %v2402 = vld [vmem:[#allocation4 + $0x348] sm:$0xff]
    %v2403 = vld [vmem:[#allocation4 + $0x350] sm:$0xff]
    %v2404 = vld [vmem:[#allocation4 + $0x358] sm:$0xff]
    %v2405 = vld [vmem:[#allocation4 + $0x360] sm:$0xff]
    %v2406 = vld [vmem:[#allocation4 + $0x368] sm:$0xff]
    %v2407 = vld [vmem:[#allocation4 + $0x370] sm:$0xff]
    %v2408 = vld [vmem:[#allocation4 + $0x378] sm:$0xff]
    %v2409 = vld [vmem:[#allocation4 + $0x380] sm:$0xff]
    %v2410 = vld [vmem:[#allocation4 + $0x388] sm:$0xff]
    %v2411 = vld [vmem:[#allocation4 + $0x390] sm:$0xff]
    %v2412 = vld [vmem:[#allocation4 + $0x398] sm:$0xff]
    %v2413 = vld [vmem:[#allocation4 + $0x3a0] sm:$0xff]
    %v2414 = vld [vmem:[#allocation4 + $0x3a8] sm:$0xff]
    %v2415 = vld [vmem:[#allocation4 + $0x3b0] sm:$0xff]
    %v2416 = vld [vmem:[#allocation4 + $0x3b8] sm:$0xff]
    %v2417 = vld [vmem:[#allocation4 + $0x3c0] sm:$0xff]
    %v2418 = vld [vmem:[#allocation4 + $0x3c8] sm:$0xff]
    %v2419 = vld [vmem:[#allocation4 + $0x3d0] sm:$0xff]
    %v2420 = vld [vmem:[#allocation4 + $0x3d8] sm:$0xff]
    %v2421 = vld [vmem:[#allocation4 + $0x3e0] sm:$0xff]
    %v2422 = vld [vmem:[#allocation4 + $0x3e8] sm:$0xff]
    %v2423 = vld [vmem:[#allocation4 + $0x3f0] sm:$0xff]
    %v2424 = vld [vmem:[#allocation4 + $0x3f8] sm:$0xff]
    %v2425 = vld [vmem:[#allocation4 + $0x400] sm:$0xff]
    %v2426 = vld [vmem:[#allocation4 + $0x408] sm:$0xff]
    %v2427 = vld [vmem:[#allocation4 + $0x410] sm:$0xff]
    %v2428 = vld [vmem:[#allocation4 + $0x418] sm:$0xff]
    %v2429 = vld [vmem:[#allocation4 + $0x420] sm:$0xff]
    %v2430 = vld [vmem:[#allocation4 + $0x428] sm:$0xff]
    %v2431 = vld [vmem:[#allocation4 + $0x430] sm:$0xff]
    %v2432 = vld [vmem:[#allocation4 + $0x438] sm:$0xff]
    %v2433 = vld [vmem:[#allocation4 + $0x440] sm:$0xff]
    %v2434 = vld [vmem:[#allocation4 + $0x448] sm:$0xff]
    %v2435 = vld [vmem:[#allocation4 + $0x450] sm:$0xff]
    %v2436 = vld [vmem:[#allocation4 + $0x458] sm:$0xff]
    %v2437 = vld [vmem:[#allocation4 + $0x460] sm:$0xff]
    %v2438 = vld [vmem:[#allocation4 + $0x468] sm:$0xff]
    %v2439 = vld [vmem:[#allocation4 + $0x470] sm:$0xff]
    %v2440 = vld [vmem:[#allocation4 + $0x478] sm:$0xff]
    %v2441 = vld [vmem:[#allocation4 + $0x480] sm:$0xff]
    %v2442 = vld [vmem:[#allocation4 + $0x488] sm:$0xff]
    %v2443 = vld [vmem:[#allocation4 + $0x490] sm:$0xff]
    %v2444 = vld [vmem:[#allocation4 + $0x498] sm:$0xff]
    %v2445 = vld [vmem:[#allocation4 + $0x4a0] sm:$0xff]
    %v2446 = vld [vmem:[#allocation4 + $0x4a8] sm:$0xff]
    %v2447 = vld [vmem:[#allocation4 + $0x4b0] sm:$0xff]
    %v2448 = vld [vmem:[#allocation4 + $0x4b8] sm:$0xff]
    %v2449 = vld [vmem:[#allocation4 + $0x4c0] sm:$0xff]
    %v2450 = vld [vmem:[#allocation4 + $0x4c8] sm:$0xff]
    %v2451 = vld [vmem:[#allocation4 + $0x4d0] sm:$0xff]
    %v2452 = vld [vmem:[#allocation4 + $0x4d8] sm:$0xff]
    %v2453 = vld [vmem:[#allocation4 + $0x4e0] sm:$0xff]
    %v2454 = vld [vmem:[#allocation4 + $0x4e8] sm:$0xff]
    %v2455 = vld [vmem:[#allocation4 + $0x4f0] sm:$0xff]
    %v2456 = vld [vmem:[#allocation4 + $0x4f8] sm:$0xff]
    %v2457 = vld [vmem:[#allocation4 + $0x500] sm:$0xff]
    %v2458 = vld [vmem:[#allocation4 + $0x508] sm:$0xff]
    %v2459 = vld [vmem:[#allocation4 + $0x510] sm:$0xff]
    %v2460 = vld [vmem:[#allocation4 + $0x518] sm:$0xff]
    %v2461 = vld [vmem:[#allocation4 + $0x520] sm:$0xff]
    %v2462 = vld [vmem:[#allocation4 + $0x528] sm:$0xff]
    %v2463 = vld [vmem:[#allocation4 + $0x530] sm:$0xff]
    %v2464 = vld [vmem:[#allocation4 + $0x538] sm:$0xff]
    %v2465 = vld [vmem:[#allocation4 + $0x540] sm:$0xff]
    %v2466 = vld [vmem:[#allocation4 + $0x548] sm:$0xff]
    %v2467 = vld [vmem:[#allocation4 + $0x550] sm:$0xff]
    %v2468 = vld [vmem:[#allocation4 + $0x558] sm:$0xff]
    %v2469 = vld [vmem:[#allocation4 + $0x560] sm:$0xff]
    %v2470 = vld [vmem:[#allocation4 + $0x568] sm:$0xff]
    %v2471 = vld [vmem:[#allocation4 + $0x570] sm:$0xff]
    %v2472 = vld [vmem:[#allocation4 + $0x578] sm:$0xff]
    %v2473 = vld [vmem:[#allocation4 + $0x580] sm:$0xff]
    %v2474 = vld [vmem:[#allocation4 + $0x588] sm:$0xff]
    %v2475 = vld [vmem:[#allocation4 + $0x590] sm:$0xff]
    %v2476 = vld [vmem:[#allocation4 + $0x598] sm:$0xff]
    %v2477 = vld [vmem:[#allocation4 + $0x5a0] sm:$0xff]
    %v2478 = vld [vmem:[#allocation4 + $0x5a8] sm:$0xff]
    %v2479 = vld [vmem:[#allocation4 + $0x5b0] sm:$0xff]
    %v2480 = vld [vmem:[#allocation4 + $0x5b8] sm:$0xff]
    %v2481 = vld [vmem:[#allocation4 + $0x5c0] sm:$0xff]
    %v2482 = vld [vmem:[#allocation4 + $0x5c8] sm:$0xff]
    %v2483 = vld [vmem:[#allocation4 + $0x5d0] sm:$0xff]
    %v2484 = vld [vmem:[#allocation4 + $0x5d8] sm:$0xff]
    %v2485 = vld [vmem:[#allocation4 + $0x5e0] sm:$0xff]
    %v2486 = vld [vmem:[#allocation4 + $0x5e8] sm:$0xff]
    %v2487 = vld [vmem:[#allocation4 + $0x5f0] sm:$0xff]
    %v2488 = vld [vmem:[#allocation4 + $0x5f8] sm:$0xff]
    %v2489 = vld [vmem:[#allocation4 + $0x600] sm:$0xff]
    %v2490 = vld [vmem:[#allocation4 + $0x608] sm:$0xff]
    %v2491 = vld [vmem:[#allocation4 + $0x610] sm:$0xff]
    %v2492 = vld [vmem:[#allocation4 + $0x618] sm:$0xff]
    %v2493 = vld [vmem:[#allocation4 + $0x620] sm:$0xff]
    %v2494 = vld [vmem:[#allocation4 + $0x628] sm:$0xff]
    %v2495 = vld [vmem:[#allocation4 + $0x630] sm:$0xff]
    %v2496 = vld [vmem:[#allocation4 + $0x638] sm:$0xff]
    %v2497 = vld [vmem:[#allocation4 + $0x640] sm:$0xff]
    %v2498 = vld [vmem:[#allocation4 + $0x648] sm:$0xff]
    %v2499 = vld [vmem:[#allocation4 + $0x650] sm:$0xff]
    %v2500 = vld [vmem:[#allocation4 + $0x658] sm:$0xff]
    %v2501 = vld [vmem:[#allocation4 + $0x660] sm:$0xff]
    %v2502 = vld [vmem:[#allocation4 + $0x668] sm:$0xff]
    %v2503 = vld [vmem:[#allocation4 + $0x670] sm:$0xff]
    %v2504 = vld [vmem:[#allocation4 + $0x678] sm:$0xff]
    %v2505 = vld [vmem:[#allocation4 + $0x680] sm:$0xff]
    %v2506 = vld [vmem:[#allocation4 + $0x688] sm:$0xff]
    %v2507 = vld [vmem:[#allocation4 + $0x690] sm:$0xff]
    %v2508 = vld [vmem:[#allocation4 + $0x698] sm:$0xff]
    %v2509 = vld [vmem:[#allocation4 + $0x6a0] sm:$0xff]
    %v2510 = vld [vmem:[#allocation4 + $0x6a8] sm:$0xff]
    %v2511 = vld [vmem:[#allocation4 + $0x6b0] sm:$0xff]
    %v2512 = vld [vmem:[#allocation4 + $0x6b8] sm:$0xff]
    %v2513 = vld [vmem:[#allocation4 + $0x6c0] sm:$0xff]
    %v2514 = vld [vmem:[#allocation4 + $0x6c8] sm:$0xff]
    %v2515 = vld [vmem:[#allocation4 + $0x6d0] sm:$0xff]
    %v2516 = vld [vmem:[#allocation4 + $0x6d8] sm:$0xff]
    %v2517 = vld [vmem:[#allocation4 + $0x6e0] sm:$0xff]
    %v2518 = vld [vmem:[#allocation4 + $0x6e8] sm:$0xff]
    %v2519 = vld [vmem:[#allocation4 + $0x6f0] sm:$0xff]
    %v2520 = vld [vmem:[#allocation4 + $0x6f8] sm:$0xff]
    %v2521 = vld [vmem:[#allocation4 + $0x700] sm:$0xff]
    %v2522 = vld [vmem:[#allocation4 + $0x708] sm:$0xff]
    %v2523 = vld [vmem:[#allocation4 + $0x710] sm:$0xff]
    %v2524 = vld [vmem:[#allocation4 + $0x718] sm:$0xff]
    %v2525 = vld [vmem:[#allocation4 + $0x720] sm:$0xff]
    %v2526 = vld [vmem:[#allocation4 + $0x728] sm:$0xff]
    %v2527 = vld [vmem:[#allocation4 + $0x730] sm:$0xff]
    %v2528 = vld [vmem:[#allocation4 + $0x738] sm:$0xff]
    %v2529 = vld [vmem:[#allocation4 + $0x740] sm:$0xff]
    %v2530 = vld [vmem:[#allocation4 + $0x748] sm:$0xff]
    %v2531 = vld [vmem:[#allocation4 + $0x750] sm:$0xff]
    %v2532 = vld [vmem:[#allocation4 + $0x758] sm:$0xff]
    %v2533 = vld [vmem:[#allocation4 + $0x760] sm:$0xff]
    %v2534 = vld [vmem:[#allocation4 + $0x768] sm:$0xff]
    %v2535 = vld [vmem:[#allocation4 + $0x770] sm:$0xff]
    %v2536 = vld [vmem:[#allocation4 + $0x778] sm:$0xff]
    %v2537 = vld [vmem:[#allocation4 + $0x780] sm:$0xff]
    %v2538 = vld [vmem:[#allocation4 + $0x788] sm:$0xff]
    %v2539 = vld [vmem:[#allocation4 + $0x790] sm:$0xff]
    %v2540 = vld [vmem:[#allocation4 + $0x798] sm:$0xff]
    %v2541 = vld [vmem:[#allocation4 + $0x7a0] sm:$0xff]
    %v2542 = vld [vmem:[#allocation4 + $0x7a8] sm:$0xff]
    %v2543 = vld [vmem:[#allocation4 + $0x7b0] sm:$0xff]
    %v2544 = vld [vmem:[#allocation4 + $0x7b8] sm:$0xff]
    %v2545 = vld [vmem:[#allocation4 + $0x7c0] sm:$0xff]
    %v2546 = vld [vmem:[#allocation4 + $0x7c8] sm:$0xff]
    %v2547 = vld [vmem:[#allocation4 + $0x7d0] sm:$0xff]
    %v2548 = vld [vmem:[#allocation4 + $0x7d8] sm:$0xff]
    %v2549 = vld [vmem:[#allocation4 + $0x7e0] sm:$0xff]
    %v2550 = vld [vmem:[#allocation4 + $0x7e8] sm:$0xff]
    %v2551 = vld [vmem:[#allocation4 + $0x7f0] sm:$0xff]
    %v2552 = vld [vmem:[#allocation4 + $0x7f8] sm:$0xff]
    %v2553 = vld [vmem:[#allocation4 + $0x800] sm:$0xff]
    %v2554 = vld [vmem:[#allocation4 + $0x808] sm:$0xff]
    %v2555 = vld [vmem:[#allocation4 + $0x810] sm:$0xff]
    %v2556 = vld [vmem:[#allocation4 + $0x818] sm:$0xff]
    %v2557 = vld [vmem:[#allocation4 + $0x820] sm:$0xff]
    %v2558 = vld [vmem:[#allocation4 + $0x828] sm:$0xff]
    %v2559 = vld [vmem:[#allocation4 + $0x830] sm:$0xff]
    %v2560 = vld [vmem:[#allocation4 + $0x838] sm:$0xff]
    %v2561 = vld [vmem:[#allocation4 + $0x840] sm:$0xff]
    %v2562 = vld [vmem:[#allocation4 + $0x848] sm:$0xff]
    %v2563 = vld [vmem:[#allocation4 + $0x850] sm:$0xff]
    %v2564 = vld [vmem:[#allocation4 + $0x858] sm:$0xff]
    %v2565 = vld [vmem:[#allocation4 + $0x860] sm:$0xff]
    %v2566 = vld [vmem:[#allocation4 + $0x868] sm:$0xff]
    %v2567 = vld [vmem:[#allocation4 + $0x870] sm:$0xff]
    %v2568 = vld [vmem:[#allocation4 + $0x878] sm:$0xff]
    %v2569 = vld [vmem:[#allocation4 + $0x880] sm:$0xff]
    %v2570 = vld [vmem:[#allocation4 + $0x888] sm:$0xff]
    %v2571 = vld [vmem:[#allocation4 + $0x890] sm:$0xff]
    %v2572 = vld [vmem:[#allocation4 + $0x898] sm:$0xff]
    %v2573 = vld [vmem:[#allocation4 + $0x8a0] sm:$0xff]
    %v2574 = vld [vmem:[#allocation4 + $0x8a8] sm:$0xff]
    %v2575 = vld [vmem:[#allocation4 + $0x8b0] sm:$0xff]
    %v2576 = vld [vmem:[#allocation4 + $0x8b8] sm:$0xff]
    %v2577 = vld [vmem:[#allocation4 + $0x8c0] sm:$0xff]
    %v2578 = vld [vmem:[#allocation4 + $0x8c8] sm:$0xff]
    %v2579 = vld [vmem:[#allocation4 + $0x8d0] sm:$0xff]
    %v2580 = vld [vmem:[#allocation4 + $0x8d8] sm:$0xff]
    %v2581 = vld [vmem:[#allocation4 + $0x8e0] sm:$0xff]
    %v2582 = vld [vmem:[#allocation4 + $0x8e8] sm:$0xff]
    %v2583 = vld [vmem:[#allocation4 + $0x8f0] sm:$0xff]
    %v2584 = vld [vmem:[#allocation4 + $0x8f8] sm:$0xff]
    %v2585 = vld [vmem:[#allocation4 + $0x900] sm:$0xff]
    %v2586 = vld [vmem:[#allocation4 + $0x908] sm:$0xff]
    %v2587 = vld [vmem:[#allocation4 + $0x910] sm:$0xff]
    %v2588 = vld [vmem:[#allocation4 + $0x918] sm:$0xff]
    %v2589 = vld [vmem:[#allocation4 + $0x920] sm:$0xff]
    %v2590 = vld [vmem:[#allocation4 + $0x928] sm:$0xff]
    %v2591 = vld [vmem:[#allocation4 + $0x930] sm:$0xff]
    %v2592 = vld [vmem:[#allocation4 + $0x938] sm:$0xff]
    %v2593 = vld [vmem:[#allocation4 + $0x940] sm:$0xff]
    %v2594 = vld [vmem:[#allocation4 + $0x948] sm:$0xff]
    %v2595 = vld [vmem:[#allocation4 + $0x950] sm:$0xff]
    %v2596 = vld [vmem:[#allocation4 + $0x958] sm:$0xff]
    %v2597 = vld [vmem:[#allocation4 + $0x960] sm:$0xff]
    %v2598 = vld [vmem:[#allocation4 + $0x968] sm:$0xff]
    %v2599 = vld [vmem:[#allocation4 + $0x970] sm:$0xff]
    %v2600 = vld [vmem:[#allocation4 + $0x978] sm:$0xff]
    %v2601 = vld [vmem:[#allocation4 + $0x980] sm:$0xff]
    %v2602 = vld [vmem:[#allocation4 + $0x988] sm:$0xff]
    %v2603 = vld [vmem:[#allocation4 + $0x990] sm:$0xff]
    %v2604 = vld [vmem:[#allocation4 + $0x998] sm:$0xff]
    %v2605 = vld [vmem:[#allocation4 + $0x9a0] sm:$0xff]
    %v2606 = vld [vmem:[#allocation4 + $0x9a8] sm:$0xff]
    %v2607 = vld [vmem:[#allocation4 + $0x9b0] sm:$0xff]
    %v2608 = vld [vmem:[#allocation4 + $0x9b8] sm:$0xff]
    %v2609 = vld [vmem:[#allocation4 + $0x9c0] sm:$0xff]
    %v2610 = vld [vmem:[#allocation4 + $0x9c8] sm:$0xff]
    %v2611 = vld [vmem:[#allocation4 + $0x9d0] sm:$0xff]
    %v2612 = vld [vmem:[#allocation4 + $0x9d8] sm:$0xff]
    %v2613 = vld [vmem:[#allocation4 + $0x9e0] sm:$0xff]
    %v2614 = vld [vmem:[#allocation4 + $0x9e8] sm:$0xff]
    %v2615 = vld [vmem:[#allocation4 + $0x9f0] sm:$0xff]
    %v2616 = vld [vmem:[#allocation4 + $0x9f8] sm:$0xff]
    %v2617 = vld [vmem:[#allocation4 + $0xa00] sm:$0xff]
    %v2618 = vld [vmem:[#allocation4 + $0xa08] sm:$0xff]
    %v2619 = vld [vmem:[#allocation4 + $0xa10] sm:$0xff]
    %v2620 = vld [vmem:[#allocation4 + $0xa18] sm:$0xff]
    %v2621 = vld [vmem:[#allocation4 + $0xa20] sm:$0xff]
    %v2622 = vld [vmem:[#allocation4 + $0xa28] sm:$0xff]
    %v2623 = vld [vmem:[#allocation4 + $0xa30] sm:$0xff]
    %v2624 = vld [vmem:[#allocation4 + $0xa38] sm:$0xff]
    %v2625 = vld [vmem:[#allocation4 + $0xa40] sm:$0xff]
    %v2626 = vld [vmem:[#allocation4 + $0xa48] sm:$0xff]
    %v2627 = vld [vmem:[#allocation4 + $0xa50] sm:$0xff]
    %v2628 = vld [vmem:[#allocation4 + $0xa58] sm:$0xff]
    %v2629 = vld [vmem:[#allocation4 + $0xa60] sm:$0xff]
    %v2630 = vld [vmem:[#allocation4 + $0xa68] sm:$0xff]
    %v2631 = vld [vmem:[#allocation4 + $0xa70] sm:$0xff]
    %v2632 = vld [vmem:[#allocation4 + $0xa78] sm:$0xff]
    %v2633 = vld [vmem:[#allocation4 + $0xa80] sm:$0xff]
    %v2634 = vld [vmem:[#allocation4 + $0xa88] sm:$0xff]
    %v2635 = vld [vmem:[#allocation4 + $0xa90] sm:$0xff]
    %v2636 = vld [vmem:[#allocation4 + $0xa98] sm:$0xff]
    %v2637 = vld [vmem:[#allocation4 + $0xaa0] sm:$0xff]
    %v2638 = vld [vmem:[#allocation4 + $0xaa8] sm:$0xff]
    %v2639 = vld [vmem:[#allocation4 + $0xab0] sm:$0xff]
    %v2640 = vld [vmem:[#allocation4 + $0xab8] sm:$0xff]
    %v2641 = vld [vmem:[#allocation4 + $0xac0] sm:$0xff]
    %v2642 = vld [vmem:[#allocation4 + $0xac8] sm:$0xff]
    %v2643 = vld [vmem:[#allocation4 + $0xad0] sm:$0xff]
    %v2644 = vld [vmem:[#allocation4 + $0xad8] sm:$0xff]
    %v2645 = vld [vmem:[#allocation4 + $0xae0] sm:$0xff]
    %v2646 = vld [vmem:[#allocation4 + $0xae8] sm:$0xff]
    %v2647 = vld [vmem:[#allocation4 + $0xaf0] sm:$0xff]
    %v2648 = vld [vmem:[#allocation4 + $0xaf8] sm:$0xff]
    %v2649 = vld [vmem:[#allocation4 + $0xb00] sm:$0xff]
    %v2650 = vld [vmem:[#allocation4 + $0xb08] sm:$0xff]
    %v2651 = vld [vmem:[#allocation4 + $0xb10] sm:$0xff]
    %v2652 = vld [vmem:[#allocation4 + $0xb18] sm:$0xff]
    %v2653 = vld [vmem:[#allocation4 + $0xb20] sm:$0xff]
    %v2654 = vld [vmem:[#allocation4 + $0xb28] sm:$0xff]
    %v2655 = vld [vmem:[#allocation4 + $0xb30] sm:$0xff]
    %v2656 = vld [vmem:[#allocation4 + $0xb38] sm:$0xff]
    %v2657 = vld [vmem:[#allocation4 + $0xb40] sm:$0xff]
    %v2658 = vld [vmem:[#allocation4 + $0xb48] sm:$0xff]
    %v2659 = vld [vmem:[#allocation4 + $0xb50] sm:$0xff]
    %v2660 = vld [vmem:[#allocation4 + $0xb58] sm:$0xff]
    %v2661 = vld [vmem:[#allocation4 + $0xb60] sm:$0xff]
    %v2662 = vld [vmem:[#allocation4 + $0xb68] sm:$0xff]
    %v2663 = vld [vmem:[#allocation4 + $0xb70] sm:$0xff]
    %v2664 = vld [vmem:[#allocation4 + $0xb78] sm:$0xff]
    %v2665 = vld [vmem:[#allocation4 + $0xb80] sm:$0xff]
    %v2666 = vld [vmem:[#allocation4 + $0xb88] sm:$0xff]
    %v2667 = vld [vmem:[#allocation4 + $0xb90] sm:$0xff]
    %v2668 = vld [vmem:[#allocation4 + $0xb98] sm:$0xff]
    %v2669 = vld [vmem:[#allocation4 + $0xba0] sm:$0xff]
    %v2670 = vld [vmem:[#allocation4 + $0xba8] sm:$0xff]
    %v2671 = vld [vmem:[#allocation4 + $0xbb0] sm:$0xff]
    %v2672 = vld [vmem:[#allocation4 + $0xbb8] sm:$0xff]
    %v2673 = vld [vmem:[#allocation4 + $0xbc0] sm:$0xff]
    %v2674 = vld [vmem:[#allocation4 + $0xbc8] sm:$0xff]
    %v2675 = vld [vmem:[#allocation4 + $0xbd0] sm:$0xff]
    %v2676 = vld [vmem:[#allocation4 + $0xbd8] sm:$0xff]
    %v2677 = vld [vmem:[#allocation4 + $0xbe0] sm:$0xff]
    %v2678 = vld [vmem:[#allocation4 + $0xbe8] sm:$0xff]
    %v2679 = vld [vmem:[#allocation4 + $0xbf0] sm:$0xff]
    %v2680 = vld [vmem:[#allocation4 + $0xbf8] sm:$0xff]
    %v2681 = vld [vmem:[#allocation4 + $0xc00] sm:$0xff]
    %v2682 = vld [vmem:[#allocation4 + $0xc08] sm:$0xff]
    %v2683 = vld [vmem:[#allocation4 + $0xc10] sm:$0xff]
    %v2684 = vld [vmem:[#allocation4 + $0xc18] sm:$0xff]
    %v2685 = vld [vmem:[#allocation4 + $0xc20] sm:$0xff]
    %v2686 = vld [vmem:[#allocation4 + $0xc28] sm:$0xff]
    %v2687 = vld [vmem:[#allocation4 + $0xc30] sm:$0xff]
    %v2688 = vld [vmem:[#allocation4 + $0xc38] sm:$0xff]
    %v2689 = vld [vmem:[#allocation4 + $0xc40] sm:$0xff]
    %v2690 = vld [vmem:[#allocation4 + $0xc48] sm:$0xff]
    %v2691 = vld [vmem:[#allocation4 + $0xc50] sm:$0xff]
    %v2692 = vld [vmem:[#allocation4 + $0xc58] sm:$0xff]
    %v2693 = vld [vmem:[#allocation4 + $0xc60] sm:$0xff]
    %v2694 = vld [vmem:[#allocation4 + $0xc68] sm:$0xff]
    %v2695 = vld [vmem:[#allocation4 + $0xc70] sm:$0xff]
    %v2696 = vld [vmem:[#allocation4 + $0xc78] sm:$0xff]
    %v2697 = vld [vmem:[#allocation4 + $0xc80] sm:$0xff]
    %v2698 = vld [vmem:[#allocation4 + $0xc88] sm:$0xff]
    %v2699 = vld [vmem:[#allocation4 + $0xc90] sm:$0xff]
    %v2700 = vld [vmem:[#allocation4 + $0xc98] sm:$0xff]
    %v2701 = vld [vmem:[#allocation4 + $0xca0] sm:$0xff]
    %v2702 = vld [vmem:[#allocation4 + $0xca8] sm:$0xff]
    %v2703 = vld [vmem:[#allocation4 + $0xcb0] sm:$0xff]
    %v2704 = vld [vmem:[#allocation4 + $0xcb8] sm:$0xff]
    %v2705 = vld [vmem:[#allocation4 + $0xcc0] sm:$0xff]
    %v2706 = vld [vmem:[#allocation4 + $0xcc8] sm:$0xff]
    %v2707 = vld [vmem:[#allocation4 + $0xcd0] sm:$0xff]
    %v2708 = vld [vmem:[#allocation4 + $0xcd8] sm:$0xff]
    %v2709 = vld [vmem:[#allocation4 + $0xce0] sm:$0xff]
    %v2710 = vld [vmem:[#allocation4 + $0xce8] sm:$0xff]
    %v2711 = vld [vmem:[#allocation4 + $0xcf0] sm:$0xff]
    %v2712 = vld [vmem:[#allocation4 + $0xcf8] sm:$0xff]
    %v2713 = vld [vmem:[#allocation4 + $0xd00] sm:$0xff]
    %v2714 = vld [vmem:[#allocation4 + $0xd08] sm:$0xff]
    %v2715 = vld [vmem:[#allocation4 + $0xd10] sm:$0xff]
    %v2716 = vld [vmem:[#allocation4 + $0xd18] sm:$0xff]
    %v2717 = vld [vmem:[#allocation4 + $0xd20] sm:$0xff]
    %v2718 = vld [vmem:[#allocation4 + $0xd28] sm:$0xff]
    %v2719 = vld [vmem:[#allocation4 + $0xd30] sm:$0xff]
    %v2720 = vld [vmem:[#allocation4 + $0xd38] sm:$0xff]
    %v2721 = vld [vmem:[#allocation4 + $0xd40] sm:$0xff]
    %v2722 = vld [vmem:[#allocation4 + $0xd48] sm:$0xff]
    %v2723 = vld [vmem:[#allocation4 + $0xd50] sm:$0xff]
    %v2724 = vld [vmem:[#allocation4 + $0xd58] sm:$0xff]
    %v2725 = vld [vmem:[#allocation4 + $0xd60] sm:$0xff]
    %v2726 = vld [vmem:[#allocation4 + $0xd68] sm:$0xff]
    %v2727 = vld [vmem:[#allocation4 + $0xd70] sm:$0xff]
    %v2728 = vld [vmem:[#allocation4 + $0xd78] sm:$0xff]
    %v2729 = vld [vmem:[#allocation4 + $0xd80] sm:$0xff]
    %v2730 = vld [vmem:[#allocation4 + $0xd88] sm:$0xff]
    %v2731 = vld [vmem:[#allocation4 + $0xd90] sm:$0xff]
    %v2732 = vld [vmem:[#allocation4 + $0xd98] sm:$0xff]
    %v2733 = vld [vmem:[#allocation4 + $0xda0] sm:$0xff]
    %v2734 = vld [vmem:[#allocation4 + $0xda8] sm:$0xff]
    %v2735 = vld [vmem:[#allocation4 + $0xdb0] sm:$0xff]
    %v2736 = vld [vmem:[#allocation4 + $0xdb8] sm:$0xff]
    %v2737 = vld [vmem:[#allocation4 + $0xdc0] sm:$0xff]
    %v2738 = vld [vmem:[#allocation4 + $0xdc8] sm:$0xff]
    %v2739 = vld [vmem:[#allocation4 + $0xdd0] sm:$0xff]
    %v2740 = vld [vmem:[#allocation4 + $0xdd8] sm:$0xff]
    %v2741 = vld [vmem:[#allocation4 + $0xde0] sm:$0xff]
    %v2742 = vld [vmem:[#allocation4 + $0xde8] sm:$0xff]
    %v2743 = vld [vmem:[#allocation4 + $0xdf0] sm:$0xff]
    %v2744 = vld [vmem:[#allocation4 + $0xdf8] sm:$0xff]
    %v2745 = vld [vmem:[#allocation4 + $0xe00] sm:$0xff]
    %v2746 = vld [vmem:[#allocation4 + $0xe08] sm:$0xff]
    %v2747 = vld [vmem:[#allocation4 + $0xe10] sm:$0xff]
    %v2748 = vld [vmem:[#allocation4 + $0xe18] sm:$0xff]
    %v2749 = vld [vmem:[#allocation4 + $0xe20] sm:$0xff]
    %v2750 = vld [vmem:[#allocation4 + $0xe28] sm:$0xff]
    %v2751 = vld [vmem:[#allocation4 + $0xe30] sm:$0xff]
    %v2752 = vld [vmem:[#allocation4 + $0xe38] sm:$0xff]
    %v2753 = vld [vmem:[#allocation4 + $0xe40] sm:$0xff]
    %v2754 = vld [vmem:[#allocation4 + $0xe48] sm:$0xff]
    %v2755 = vld [vmem:[#allocation4 + $0xe50] sm:$0xff]
    %v2756 = vld [vmem:[#allocation4 + $0xe58] sm:$0xff]
    %v2757 = vld [vmem:[#allocation4 + $0xe60] sm:$0xff]
    %v2758 = vld [vmem:[#allocation4 + $0xe68] sm:$0xff]
    %v2759 = vld [vmem:[#allocation4 + $0xe70] sm:$0xff]
    %v2760 = vld [vmem:[#allocation4 + $0xe78] sm:$0xff]
    %v2761 = vld [vmem:[#allocation4 + $0xe80] sm:$0xff]
    %v2762 = vld [vmem:[#allocation4 + $0xe88] sm:$0xff]
    %v2763 = vld [vmem:[#allocation4 + $0xe90] sm:$0xff]
    %v2764 = vld [vmem:[#allocation4 + $0xe98] sm:$0xff]
    %v2765 = vld [vmem:[#allocation4 + $0xea0] sm:$0xff]
    %v2766 = vld [vmem:[#allocation4 + $0xea8] sm:$0xff]
    %v2767 = vld [vmem:[#allocation4 + $0xeb0] sm:$0xff]
    %v2768 = vld [vmem:[#allocation4 + $0xeb8] sm:$0xff]
    %v2769 = vld [vmem:[#allocation4 + $0xec0] sm:$0xff]
    %v2770 = vld [vmem:[#allocation4 + $0xec8] sm:$0xff]
    %v2771 = vld [vmem:[#allocation4 + $0xed0] sm:$0xff]
    %v2772 = vld [vmem:[#allocation4 + $0xed8] sm:$0xff]
    %v2773 = vld [vmem:[#allocation4 + $0xee0] sm:$0xff]
    %v2774 = vld [vmem:[#allocation4 + $0xee8] sm:$0xff]
    %v2775 = vld [vmem:[#allocation4 + $0xef0] sm:$0xff]
    %v2776 = vld [vmem:[#allocation4 + $0xef8] sm:$0xff]
    %v2777 = vld [vmem:[#allocation4 + $0xf00] sm:$0xff]
    %v2778 = vld [vmem:[#allocation4 + $0xf08] sm:$0xff]
    %v2779 = vld [vmem:[#allocation4 + $0xf10] sm:$0xff]
    %v2780 = vld [vmem:[#allocation4 + $0xf18] sm:$0xff]
    %v2781 = vld [vmem:[#allocation4 + $0xf20] sm:$0xff]
    %v2782 = vld [vmem:[#allocation4 + $0xf28] sm:$0xff]
    %v2783 = vld [vmem:[#allocation4 + $0xf30] sm:$0xff]
    %v2784 = vld [vmem:[#allocation4 + $0xf38] sm:$0xff]
    %v2785 = vld [vmem:[#allocation4 + $0xf40] sm:$0xff]
    %v2786 = vld [vmem:[#allocation4 + $0xf48] sm:$0xff]
    %v2787 = vld [vmem:[#allocation4 + $0xf50] sm:$0xff]
    %v2788 = vld [vmem:[#allocation4 + $0xf58] sm:$0xff]
    %v2789 = vld [vmem:[#allocation4 + $0xf60] sm:$0xff]
    %v2790 = vld [vmem:[#allocation4 + $0xf68] sm:$0xff]
    %v2791 = vld [vmem:[#allocation4 + $0xf70] sm:$0xff]
    %v2792 = vld [vmem:[#allocation4 + $0xf78] sm:$0xff]
    %v2793 = vld [vmem:[#allocation4 + $0xf80] sm:$0xff]
    %v2794 = vld [vmem:[#allocation4 + $0xf88] sm:$0xff]
    %v2795 = vld [vmem:[#allocation4 + $0xf90] sm:$0xff]
    %v2796 = vld [vmem:[#allocation4 + $0xf98] sm:$0xff]
    %v2797 = vld [vmem:[#allocation4 + $0xfa0] sm:$0xff]
    %v2798 = vld [vmem:[#allocation4 + $0xfa8] sm:$0xff]
    %v2799 = vld [vmem:[#allocation4 + $0xfb0] sm:$0xff]
    %v2800 = vld [vmem:[#allocation4 + $0xfb8] sm:$0xff]
    %v2801 = vld [vmem:[#allocation4 + $0xfc0] sm:$0xff]
    %v2802 = vld [vmem:[#allocation4 + $0xfc8] sm:$0xff]
    %v2803 = vld [vmem:[#allocation4 + $0xfd0] sm:$0xff]
    %v2804 = vld [vmem:[#allocation4 + $0xfd8] sm:$0xff]
    %v2805 = vld [vmem:[#allocation4 + $0xfe0] sm:$0xff]
    %v2806 = vld [vmem:[#allocation4 + $0xfe8] sm:$0xff]
    %v2807 = vld [vmem:[#allocation4 + $0xff0] sm:$0xff]
    %v2808 = vld [vmem:[#allocation4 + $0xff8] sm:$0xff]
    %v2809 = vld [vmem:[#allocation4 + $0x1000] sm:$0xff]
    %v2810 = vld [vmem:[#allocation4 + $0x1008] sm:$0xff]
    %v2811 = vld [vmem:[#allocation4 + $0x1010] sm:$0xff]
    %v2812 = vld [vmem:[#allocation4 + $0x1018] sm:$0xff]
    %v2813 = vld [vmem:[#allocation4 + $0x1020] sm:$0xff]
    %v2814 = vld [vmem:[#allocation4 + $0x1028] sm:$0xff]
    %v2815 = vld [vmem:[#allocation4 + $0x1030] sm:$0xff]
    %v2816 = vld [vmem:[#allocation4 + $0x1038] sm:$0xff]
    %v2817 = vld [vmem:[#allocation4 + $0x1040] sm:$0xff]
    %v2818 = vld [vmem:[#allocation4 + $0x1048] sm:$0xff]
    %v2819 = vld [vmem:[#allocation4 + $0x1050] sm:$0xff]
    %v2820 = vld [vmem:[#allocation4 + $0x1058] sm:$0xff]
    %v2821 = vld [vmem:[#allocation4 + $0x1060] sm:$0xff]
    %v2822 = vld [vmem:[#allocation4 + $0x1068] sm:$0xff]
    %v2823 = vld [vmem:[#allocation4 + $0x1070] sm:$0xff]
    %v2824 = vld [vmem:[#allocation4 + $0x1078] sm:$0xff]
    %v2825 = vld [vmem:[#allocation4 + $0x1080] sm:$0xff]
    %v2826 = vld [vmem:[#allocation4 + $0x1088] sm:$0xff]
    %v2827 = vld [vmem:[#allocation4 + $0x1090] sm:$0xff]
    %v2828 = vld [vmem:[#allocation4 + $0x1098] sm:$0xff]
    %v2829 = vld [vmem:[#allocation4 + $0x10a0] sm:$0xff]
    %v2830 = vld [vmem:[#allocation4 + $0x10a8] sm:$0xff]
    %v2831 = vld [vmem:[#allocation4 + $0x10b0] sm:$0xff]
    %v2832 = vld [vmem:[#allocation4 + $0x10b8] sm:$0xff]
    %v2833 = vld [vmem:[#allocation4 + $0x10c0] sm:$0xff]
    %v2834 = vld [vmem:[#allocation4 + $0x10c8] sm:$0xff]
    %v2835 = vld [vmem:[#allocation4 + $0x10d0] sm:$0xff]
    %v2836 = vld [vmem:[#allocation4 + $0x10d8] sm:$0xff]
    %v2837 = vld [vmem:[#allocation4 + $0x10e0] sm:$0xff]
    %v2838 = vld [vmem:[#allocation4 + $0x10e8] sm:$0xff]
    %v2839 = vld [vmem:[#allocation4 + $0x10f0] sm:$0xff]
    %v2840 = vld [vmem:[#allocation4 + $0x10f8] sm:$0xff]
    %v2841 = vld [vmem:[#allocation4 + $0x1100] sm:$0xff]
    %v2842 = vld [vmem:[#allocation4 + $0x1108] sm:$0xff]
    %v2843 = vld [vmem:[#allocation4 + $0x1110] sm:$0xff]
    %v2844 = vld [vmem:[#allocation4 + $0x1118] sm:$0xff]
    %v2845 = vld [vmem:[#allocation4 + $0x1120] sm:$0xff]
    %v2846 = vld [vmem:[#allocation4 + $0x1128] sm:$0xff]
    %v2847 = vld [vmem:[#allocation4 + $0x1130] sm:$0xff]
    %v2848 = vld [vmem:[#allocation4 + $0x1138] sm:$0xff]
    %v2849 = vld [vmem:[#allocation4 + $0x1140] sm:$0xff]
    %v2850 = vld [vmem:[#allocation4 + $0x1148] sm:$0xff]
    %v2851 = vld [vmem:[#allocation4 + $0x1150] sm:$0xff]
    %v2852 = vld [vmem:[#allocation4 + $0x1158] sm:$0xff]
    %v2853 = vld [vmem:[#allocation4 + $0x1160] sm:$0xff]
    %v2854 = vld [vmem:[#allocation4 + $0x1168] sm:$0xff]
    %v2855 = vld [vmem:[#allocation4 + $0x1170] sm:$0xff]
    %v2856 = vld [vmem:[#allocation4 + $0x1178] sm:$0xff]
    %v2857 = vld [vmem:[#allocation4 + $0x1180] sm:$0xff]
    %v2858 = vld [vmem:[#allocation4 + $0x1188] sm:$0xff]
    %v2859 = vld [vmem:[#allocation4 + $0x1190] sm:$0xff]
    %v2860 = vld [vmem:[#allocation4 + $0x1198] sm:$0xff]
    %v2861 = vld [vmem:[#allocation4 + $0x11a0] sm:$0xff]
    %v2862 = vld [vmem:[#allocation4 + $0x11a8] sm:$0xff]
    %v2863 = vld [vmem:[#allocation4 + $0x11b0] sm:$0xff]
    %v2864 = vld [vmem:[#allocation4 + $0x11b8] sm:$0xff]
    %v2865 = vld [vmem:[#allocation4 + $0x11c0] sm:$0xff]
    %v2866 = vld [vmem:[#allocation4 + $0x11c8] sm:$0xff]
    %v2867 = vld [vmem:[#allocation4 + $0x11d0] sm:$0xff]
    %v2868 = vld [vmem:[#allocation4 + $0x11d8] sm:$0xff]
    %v2869 = vld [vmem:[#allocation4 + $0x11e0] sm:$0xff]
    %v2870 = vld [vmem:[#allocation4 + $0x11e8] sm:$0xff]
    %v2871 = vld [vmem:[#allocation4 + $0x11f0] sm:$0xff]
    %v2872 = vld [vmem:[#allocation4 + $0x11f8] sm:$0xff]
    %v2873 = vld [vmem:[#allocation4 + $0x1200] sm:$0xff]
    %v2874 = vld [vmem:[#allocation4 + $0x1208] sm:$0xff]
    %v2875 = vld [vmem:[#allocation4 + $0x1210] sm:$0xff]
    %v2876 = vld [vmem:[#allocation4 + $0x1218] sm:$0xff]
    %v2877 = vld [vmem:[#allocation4 + $0x1220] sm:$0xff]
    %v2878 = vld [vmem:[#allocation4 + $0x1228] sm:$0xff]
    %v2879 = vld [vmem:[#allocation4 + $0x1230] sm:$0xff]
    %v2880 = vld [vmem:[#allocation4 + $0x1238] sm:$0xff]
    %v2881 = vld [vmem:[#allocation4 + $0x1240] sm:$0xff]
    %v2882 = vld [vmem:[#allocation4 + $0x1248] sm:$0xff]
    %v2883 = vld [vmem:[#allocation4 + $0x1250] sm:$0xff]
    %v2884 = vld [vmem:[#allocation4 + $0x1258] sm:$0xff]
    %v2885 = vld [vmem:[#allocation4 + $0x1260] sm:$0xff]
    %v2886 = vld [vmem:[#allocation4 + $0x1268] sm:$0xff]
    %v2887 = vld [vmem:[#allocation4 + $0x1270] sm:$0xff]
    %v2888 = vld [vmem:[#allocation4 + $0x1278] sm:$0xff]
    %v2889 = vld [vmem:[#allocation4 + $0x1280] sm:$0xff]
    %v2890 = vld [vmem:[#allocation4 + $0x1288] sm:$0xff]
    %v2891 = vld [vmem:[#allocation4 + $0x1290] sm:$0xff]
    %v2892 = vld [vmem:[#allocation4 + $0x1298] sm:$0xff]
    %v2893 = vld [vmem:[#allocation4 + $0x12a0] sm:$0xff]
    %v2894 = vld [vmem:[#allocation4 + $0x12a8] sm:$0xff]
    %v2895 = vld [vmem:[#allocation4 + $0x12b0] sm:$0xff]
    %v2896 = vld [vmem:[#allocation4 + $0x12b8] sm:$0xff]
    %v2897 = vld [vmem:[#allocation4 + $0x12c0] sm:$0xff]
    %v2898 = vld [vmem:[#allocation4 + $0x12c8] sm:$0xff]
    %v2899 = vld [vmem:[#allocation4 + $0x12d0] sm:$0xff]
    %v2900 = vld [vmem:[#allocation4 + $0x12d8] sm:$0xff]
    %v2901 = vld [vmem:[#allocation4 + $0x12e0] sm:$0xff]
    %v2902 = vld [vmem:[#allocation4 + $0x12e8] sm:$0xff]
    %v2903 = vld [vmem:[#allocation4 + $0x12f0] sm:$0xff]
    %v2904 = vld [vmem:[#allocation4 + $0x12f8] sm:$0xff]
    %v2905 = vld [vmem:[#allocation4 + $0x1300] sm:$0xff]
    %v2906 = vld [vmem:[#allocation4 + $0x1308] sm:$0xff]
    %v2907 = vld [vmem:[#allocation4 + $0x1310] sm:$0xff]
    %v2908 = vld [vmem:[#allocation4 + $0x1318] sm:$0xff]
    %v2909 = vld [vmem:[#allocation4 + $0x1320] sm:$0xff]
    %v2910 = vld [vmem:[#allocation4 + $0x1328] sm:$0xff]
    %v2911 = vld [vmem:[#allocation4 + $0x1330] sm:$0xff]
    %v2912 = vld [vmem:[#allocation4 + $0x1338] sm:$0xff]
    %v2913 = vld [vmem:[#allocation4 + $0x1340] sm:$0xff]
    %v2914 = vld [vmem:[#allocation4 + $0x1348] sm:$0xff]
    %v2915 = vld [vmem:[#allocation4 + $0x1350] sm:$0xff]
    %v2916 = vld [vmem:[#allocation4 + $0x1358] sm:$0xff]
    %v2917 = vld [vmem:[#allocation4 + $0x1360] sm:$0xff]
    %v2918 = vld [vmem:[#allocation4 + $0x1368] sm:$0xff]
    %v2919 = vld [vmem:[#allocation4 + $0x1370] sm:$0xff]
    %v2920 = vld [vmem:[#allocation4 + $0x1378] sm:$0xff]
    %v2921 = vld [vmem:[#allocation4 + $0x1380] sm:$0xff]
    %v2922 = vld [vmem:[#allocation4 + $0x1388] sm:$0xff]
    %v2923 = vld [vmem:[#allocation4 + $0x1390] sm:$0xff]
    %v2924 = vld [vmem:[#allocation4 + $0x1398] sm:$0xff]
    %v2925 = vld [vmem:[#allocation4 + $0x13a0] sm:$0xff]
    %v2926 = vld [vmem:[#allocation4 + $0x13a8] sm:$0xff]
    %v2927 = vld [vmem:[#allocation4 + $0x13b0] sm:$0xff]
    %v2928 = vld [vmem:[#allocation4 + $0x13b8] sm:$0xff]
    %v2929 = vld [vmem:[#allocation4 + $0x13c0] sm:$0xff]
    %v2930 = vld [vmem:[#allocation4 + $0x13c8] sm:$0xff]
    %v2931 = vld [vmem:[#allocation4 + $0x13d0] sm:$0xff]
    %v2932 = vld [vmem:[#allocation4 + $0x13d8] sm:$0xff]
    %v2933 = vld [vmem:[#allocation4 + $0x13e0] sm:$0xff]
    %v2934 = vld [vmem:[#allocation4 + $0x13e8] sm:$0xff]
    %v2935 = vld [vmem:[#allocation4 + $0x13f0] sm:$0xff]
    %v2936 = vld [vmem:[#allocation4 + $0x13f8] sm:$0xff]
    %v2937 = vld [vmem:[#allocation4 + $0x1400] sm:$0xff]
    %v2938 = vld [vmem:[#allocation4 + $0x1408] sm:$0xff]
    %v2939 = vld [vmem:[#allocation4 + $0x1410] sm:$0xff]
    %v2940 = vld [vmem:[#allocation4 + $0x1418] sm:$0xff]
    %v2941 = vld [vmem:[#allocation4 + $0x1420] sm:$0xff]
    %v2942 = vld [vmem:[#allocation4 + $0x1428] sm:$0xff]
    %v2943 = vld [vmem:[#allocation4 + $0x1430] sm:$0xff]
    %v2944 = vld [vmem:[#allocation4 + $0x1438] sm:$0xff]
    %v2945 = vld [vmem:[#allocation4 + $0x1440] sm:$0xff]
    %v2946 = vld [vmem:[#allocation4 + $0x1448] sm:$0xff]
    %v2947 = vld [vmem:[#allocation4 + $0x1450] sm:$0xff]
    %v2948 = vld [vmem:[#allocation4 + $0x1458] sm:$0xff]
    %v2949 = vld [vmem:[#allocation4 + $0x1460] sm:$0xff]
    %v2950 = vld [vmem:[#allocation4 + $0x1468] sm:$0xff]
    %v2951 = vld [vmem:[#allocation4 + $0x1470] sm:$0xff]
    %v2952 = vld [vmem:[#allocation4 + $0x1478] sm:$0xff]
    %v2953 = vld [vmem:[#allocation4 + $0x1480] sm:$0xff]
    %v2954 = vld [vmem:[#allocation4 + $0x1488] sm:$0xff]
    %v2955 = vld [vmem:[#allocation4 + $0x1490] sm:$0xff]
    %v2956 = vld [vmem:[#allocation4 + $0x1498] sm:$0xff]
    %v2957 = vld [vmem:[#allocation4 + $0x14a0] sm:$0xff]
    %v2958 = vld [vmem:[#allocation4 + $0x14a8] sm:$0xff]
    %v2959 = vld [vmem:[#allocation4 + $0x14b0] sm:$0xff]
    %v2960 = vld [vmem:[#allocation4 + $0x14b8] sm:$0xff]
    %v2961 = vld [vmem:[#allocation4 + $0x14c0] sm:$0xff]
    %v2962 = vld [vmem:[#allocation4 + $0x14c8] sm:$0xff]
    %v2963 = vld [vmem:[#allocation4 + $0x14d0] sm:$0xff]
    %v2964 = vld [vmem:[#allocation4 + $0x14d8] sm:$0xff]
    %v2965 = vld [vmem:[#allocation4 + $0x14e0] sm:$0xff]
    %v2966 = vld [vmem:[#allocation4 + $0x14e8] sm:$0xff]
    %v2967 = vld [vmem:[#allocation4 + $0x14f0] sm:$0xff]
    %v2968 = vld [vmem:[#allocation4 + $0x14f8] sm:$0xff]
    %v2969 = vld [vmem:[#allocation4 + $0x1500] sm:$0xff]
    %v2970 = vld [vmem:[#allocation4 + $0x1508] sm:$0xff]
    %v2971 = vld [vmem:[#allocation4 + $0x1510] sm:$0xff]
    %v2972 = vld [vmem:[#allocation4 + $0x1518] sm:$0xff]
    %v2973 = vld [vmem:[#allocation4 + $0x1520] sm:$0xff]
    %v2974 = vld [vmem:[#allocation4 + $0x1528] sm:$0xff]
    %v2975 = vld [vmem:[#allocation4 + $0x1530] sm:$0xff]
    %v2976 = vld [vmem:[#allocation4 + $0x1538] sm:$0xff]
    %v2977 = vld [vmem:[#allocation4 + $0x1540] sm:$0xff]
    %v2978 = vld [vmem:[#allocation4 + $0x1548] sm:$0xff]
    %v2979 = vld [vmem:[#allocation4 + $0x1550] sm:$0xff]
    %v2980 = vld [vmem:[#allocation4 + $0x1558] sm:$0xff]
    %v2981 = vld [vmem:[#allocation4 + $0x1560] sm:$0xff]
    %v2982 = vld [vmem:[#allocation4 + $0x1568] sm:$0xff]
    %v2983 = vld [vmem:[#allocation4 + $0x1570] sm:$0xff]
    %v2984 = vld [vmem:[#allocation4 + $0x1578] sm:$0xff]
    %v2985 = vld [vmem:[#allocation4 + $0x1580] sm:$0xff]
    %v2986 = vld [vmem:[#allocation4 + $0x1588] sm:$0xff]
    %v2987 = vld [vmem:[#allocation4 + $0x1590] sm:$0xff]
    %v2988 = vld [vmem:[#allocation4 + $0x1598] sm:$0xff]
    %v2989 = vld [vmem:[#allocation4 + $0x15a0] sm:$0xff]
    %v2990 = vld [vmem:[#allocation4 + $0x15a8] sm:$0xff]
    %v2991 = vld [vmem:[#allocation4 + $0x15b0] sm:$0xff]
    %v2992 = vld [vmem:[#allocation4 + $0x15b8] sm:$0xff]
    %v2993 = vld [vmem:[#allocation4 + $0x15c0] sm:$0xff]
    %v2994 = vld [vmem:[#allocation4 + $0x15c8] sm:$0xff]
    %v2995 = vld [vmem:[#allocation4 + $0x15d0] sm:$0xff]
    %v2996 = vld [vmem:[#allocation4 + $0x15d8] sm:$0xff]
    %v2998 = vsel %vm2207, %v2295, 0
    %v3001 = vsel %vm2207, %v2296, 0
    %3003 = vmatpush.msra.mxu0 %v2402
    %3004 = vmatpush.msra.mxu0 %v2395
    %3005 = vmatpush.msra.mxu0 %v2388
    %3006 = vmatpush.msra.mxu0 %v2381
    %3007 = vmatpush.msra.mxu0 %v2374
    %3008 = vmatpush.msra.mxu0 %v2367
    %3009 = vmatpush.msra.mxu0 %v2360
    %3010 = vmatpush.msra.mxu0 %v2353
    %3011 = vmatpush.msra.mxu0 %v2346
    %3012 = vmatpush.msra.mxu0 %v2339
    %3013 = vmatpush.msra.mxu0 %v2332
    %3014 = vmatpush.msra.mxu0 %v2325
    %3015 = vmatpush.msra.mxu0 %v2318
    %3016 = vmatpush.msra.mxu0 %v2311
    %3017 = vmatpush.msra.mxu0 %v2304
    %3018 = vmatpush.msra.mxu0 %v2297
    %3019 = vmatmul.f32.gmra.mxu0 %v2223
    %v3020 = vpop.f32.mrf.mxu0
    %v3021 = vadd.f32 0.0, %v3020
    %3022 = vmatmul.f32.gmra.mxu0 %v2224
    %v3023 = vpop.f32.mrf.mxu0
    %v3024 = vadd.f32 0.0, %v3023
    %3025 = vdwg.mxu0
    %3026 = vmatpush.msra.mxu0 %v2514
    %3027 = vmatpush.msra.mxu0 %v2507
    %3028 = vmatpush.msra.mxu0 %v2500
    %3029 = vmatpush.msra.mxu0 %v2493
    %3030 = vmatpush.msra.mxu0 %v2486
    %3031 = vmatpush.msra.mxu0 %v2479
    %3032 = vmatpush.msra.mxu0 %v2472
    %3033 = vmatpush.msra.mxu0 %v2465
    %3034 = vmatpush.msra.mxu0 %v2458
    %3035 = vmatpush.msra.mxu0 %v2451
    %3036 = vmatpush.msra.mxu0 %v2444
    %3037 = vmatpush.msra.mxu0 %v2437
    %3038 = vmatpush.msra.mxu0 %v2430
    %3039 = vmatpush.msra.mxu0 %v2423
    %3040 = vmatpush.msra.mxu0 %v2416
    %3041 = vmatpush.msra.mxu0 %v2409
    %3042 = vmatmul.f32.gmra.mxu0 %v2237
    %v3043 = vpop.f32.mrf.mxu0
    %v3044 = vadd.f32 %v3021, %v3043
    %3045 = vmatmul.f32.gmra.mxu0 %v2238
    %v3046 = vpop.f32.mrf.mxu0
    %v3047 = vadd.f32 %v3024, %v3046
    %3048 = vdwg.mxu0
    %3049 = vmatpush.msra.mxu0 %v2626
    %3050 = vmatpush.msra.mxu0 %v2619
    %3051 = vmatpush.msra.mxu0 %v2612
    %3052 = vmatpush.msra.mxu0 %v2605
    %3053 = vmatpush.msra.mxu0 %v2598
    %3054 = vmatpush.msra.mxu0 %v2591
    %3055 = vmatpush.msra.mxu0 %v2584
    %3056 = vmatpush.msra.mxu0 %v2577
    %3057 = vmatpush.msra.mxu0 %v2570
    %3058 = vmatpush.msra.mxu0 %v2563
    %3059 = vmatpush.msra.mxu0 %v2556
    %3060 = vmatpush.msra.mxu0 %v2549
    %3061 = vmatpush.msra.mxu0 %v2542
    %3062 = vmatpush.msra.mxu0 %v2535
    %3063 = vmatpush.msra.mxu0 %v2528
    %3064 = vmatpush.msra.mxu0 %v2521
    %3065 = vmatmul.f32.gmra.mxu0 %v2251
    %v3066 = vpop.f32.mrf.mxu0
    %v3067 = vadd.f32 %v3044, %v3066
    %3068 = vmatmul.f32.gmra.mxu0 %v2252
    %v3069 = vpop.f32.mrf.mxu0
    %v3070 = vadd.f32 %v3047, %v3069
    %3071 = vdwg.mxu0
    %3072 = vmatpush.msra.mxu0 %v2738
    %3073 = vmatpush.msra.mxu0 %v2731
    %3074 = vmatpush.msra.mxu0 %v2724
    %3075 = vmatpush.msra.mxu0 %v2717
    %3076 = vmatpush.msra.mxu0 %v2710
    %3077 = vmatpush.msra.mxu0 %v2703
    %3078 = vmatpush.msra.mxu0 %v2696
    %3079 = vmatpush.msra.mxu0 %v2689
    %3080 = vmatpush.msra.mxu0 %v2682
    %3081 = vmatpush.msra.mxu0 %v2675
    %3082 = vmatpush.msra.mxu0 %v2668
    %3083 = vmatpush.msra.mxu0 %v2661
    %3084 = vmatpush.msra.mxu0 %v2654
    %3085 = vmatpush.msra.mxu0 %v2647
    %3086 = vmatpush.msra.mxu0 %v2640
    %3087 = vmatpush.msra.mxu0 %v2633
    %3088 = vmatmul.f32.gmra.mxu0 %v2265
    %v3089 = vpop.f32.mrf.mxu0
    %v3090 = vadd.f32 %v3067, %v3089
    %3091 = vmatmul.f32.gmra.mxu0 %v2266
    %v3092 = vpop.f32.mrf.mxu0
    %v3093 = vadd.f32 %v3070, %v3092
    %3094 = vdwg.mxu0
    %3095 = vmatpush.msra.mxu0 %v2850
    %3096 = vmatpush.msra.mxu0 %v2843
    %3097 = vmatpush.msra.mxu0 %v2836
    %3098 = vmatpush.msra.mxu0 %v2829
    %3099 = vmatpush.msra.mxu0 %v2822
    %3100 = vmatpush.msra.mxu0 %v2815
    %3101 = vmatpush.msra.mxu0 %v2808
    %3102 = vmatpush.msra.mxu0 %v2801
    %3103 = vmatpush.msra.mxu0 %v2794
    %3104 = vmatpush.msra.mxu0 %v2787
    %3105 = vmatpush.msra.mxu0 %v2780
    %3106 = vmatpush.msra.mxu0 %v2773
    %3107 = vmatpush.msra.mxu0 %v2766
    %3108 = vmatpush.msra.mxu0 %v2759
    %3109 = vmatpush.msra.mxu0 %v2752
    %3110 = vmatpush.msra.mxu0 %v2745
    %3111 = vmatmul.f32.gmra.mxu0 %v2279
    %v3112 = vpop.f32.mrf.mxu0
    %v3113 = vadd.f32 %v3090, %v3112
    %3114 = vmatmul.f32.gmra.mxu0 %v2280
    %v3115 = vpop.f32.mrf.mxu0
    %v3116 = vadd.f32 %v3093, %v3115
    %3117 = vdwg.mxu0
    %3118 = vmatpush.msra.mxu0 %v2962
    %3119 = vmatpush.msra.mxu0 %v2955
    %3120 = vmatpush.msra.mxu0 %v2948
    %3121 = vmatpush.msra.mxu0 %v2941
    %3122 = vmatpush.msra.mxu0 %v2934
    %3123 = vmatpush.msra.mxu0 %v2927
    %3124 = vmatpush.msra.mxu0 %v2920
    %3125 = vmatpush.msra.mxu0 %v2913
    %3126 = vmatpush.msra.mxu0 %v2906
    %3127 = vmatpush.msra.mxu0 %v2899
    %3128 = vmatpush.msra.mxu0 %v2892
    %3129 = vmatpush.msra.mxu0 %v2885
    %3130 = vmatpush.msra.mxu0 %v2878
    %3131 = vmatpush.msra.mxu0 %v2871
    %3132 = vmatpush.msra.mxu0 %v2864
    %3133 = vmatpush.msra.mxu0 %v2857
    %3134 = vmatmul.f32.gmra.mxu0 %v2293
    %v3135 = vpop.f32.mrf.mxu0
    %v3136 = vadd.f32 %v3113, %v3135
    %3137 = vmatmul.f32.gmra.mxu0 %v2294
    %v3138 = vpop.f32.mrf.mxu0
    %v3139 = vadd.f32 %v3116, %v3138
    %3140 = vdwg.mxu0
    %3141 = vmatpush.msra.mxu0 0.0
    %3142 = vmatpush.msra.mxu0 0.0
    %3143 = vmatpush.msra.mxu0 0.0
    %3144 = vmatpush.msra.mxu0 0.0
    %3145 = vmatpush.msra.mxu0 0.0
    %3146 = vmatpush.msra.mxu0 0.0
    %3147 = vmatpush.msra.mxu0 0.0
    %3148 = vmatpush.msra.mxu0 0.0
    %3149 = vmatpush.msra.mxu0 0.0
    %3150 = vmatpush.msra.mxu0 0.0
    %3151 = vmatpush.msra.mxu0 0.0
    %3152 = vmatpush.msra.mxu0 0.0
    %3153 = vmatpush.msra.mxu0 %v2990
    %3154 = vmatpush.msra.mxu0 %v2983
    %3155 = vmatpush.msra.mxu0 %v2976
    %3156 = vmatpush.msra.mxu0 %v2969
    %3157 = vmatmul.f32.gmra.mxu0 %v2998
    %v3158 = vpop.f32.mrf.mxu0
    %v3159 = vadd.f32 %v3136, %v3158
    %3160 = vmatmul.f32.gmra.mxu0 %v3001
    %v3161 = vpop.f32.mrf.mxu0
    %v3162 = vadd.f32 %v3139, %v3161
    %3163 = vdwg.mxu0
    %3164 = vmatpush.msra.mxu0 %v2403
    %3165 = vmatpush.msra.mxu0 %v2396
    %3166 = vmatpush.msra.mxu0 %v2389
    %3167 = vmatpush.msra.mxu0 %v2382
    %3168 = vmatpush.msra.mxu0 %v2375
    %3169 = vmatpush.msra.mxu0 %v2368
    %3170 = vmatpush.msra.mxu0 %v2361
    %3171 = vmatpush.msra.mxu0 %v2354
    %3172 = vmatpush.msra.mxu0 %v2347
    %3173 = vmatpush.msra.mxu0 %v2340
    %3174 = vmatpush.msra.mxu0 %v2333
    %3175 = vmatpush.msra.mxu0 %v2326
    %3176 = vmatpush.msra.mxu0 %v2319
    %3177 = vmatpush.msra.mxu0 %v2312
    %3178 = vmatpush.msra.mxu0 %v2305
    %3179 = vmatpush.msra.mxu0 %v2298
    %3180 = vmatmul.f32.gmra.mxu0 %v2223
    %v3181 = vpop.f32.mrf.mxu0
    %v3182 = vadd.f32 0.0, %v3181
    %3183 = vmatmul.f32.gmra.mxu0 %v2224
    %v3184 = vpop.f32.mrf.mxu0
    %v3185 = vadd.f32 0.0, %v3184
    %3186 = vdwg.mxu0
    %3187 = vmatpush.msra.mxu0 %v2515
    %3188 = vmatpush.msra.mxu0 %v2508
    %3189 = vmatpush.msra.mxu0 %v2501
    %3190 = vmatpush.msra.mxu0 %v2494
    %3191 = vmatpush.msra.mxu0 %v2487
    %3192 = vmatpush.msra.mxu0 %v2480
    %3193 = vmatpush.msra.mxu0 %v2473
    %3194 = vmatpush.msra.mxu0 %v2466
    %3195 = vmatpush.msra.mxu0 %v2459
    %3196 = vmatpush.msra.mxu0 %v2452
    %3197 = vmatpush.msra.mxu0 %v2445
    %3198 = vmatpush.msra.mxu0 %v2438
    %3199 = vmatpush.msra.mxu0 %v2431
    %3200 = vmatpush.msra.mxu0 %v2424
    %3201 = vmatpush.msra.mxu0 %v2417
    %3202 = vmatpush.msra.mxu0 %v2410
    %3203 = vmatmul.f32.gmra.mxu0 %v2237
    %v3204 = vpop.f32.mrf.mxu0
    %v3205 = vadd.f32 %v3182, %v3204
    %3206 = vmatmul.f32.gmra.mxu0 %v2238
    %v3207 = vpop.f32.mrf.mxu0
    %v3208 = vadd.f32 %v3185, %v3207
    %3209 = vdwg.mxu0
    %3210 = vmatpush.msra.mxu0 %v2627
    %3211 = vmatpush.msra.mxu0 %v2620
    %3212 = vmatpush.msra.mxu0 %v2613
    %3213 = vmatpush.msra.mxu0 %v2606
    %3214 = vmatpush.msra.mxu0 %v2599
    %3215 = vmatpush.msra.mxu0 %v2592
    %3216 = vmatpush.msra.mxu0 %v2585
    %3217 = vmatpush.msra.mxu0 %v2578
    %3218 = vmatpush.msra.mxu0 %v2571
    %3219 = vmatpush.msra.mxu0 %v2564
    %3220 = vmatpush.msra.mxu0 %v2557
    %3221 = vmatpush.msra.mxu0 %v2550
    %3222 = vmatpush.msra.mxu0 %v2543
    %3223 = vmatpush.msra.mxu0 %v2536
    %3224 = vmatpush.msra.mxu0 %v2529
    %3225 = vmatpush.msra.mxu0 %v2522
    %3226 = vmatmul.f32.gmra.mxu0 %v2251
    %v3227 = vpop.f32.mrf.mxu0
    %v3228 = vadd.f32 %v3205, %v3227
    %3229 = vmatmul.f32.gmra.mxu0 %v2252
    %v3230 = vpop.f32.mrf.mxu0
    %v3231 = vadd.f32 %v3208, %v3230
    %3232 = vdwg.mxu0
    %3233 = vmatpush.msra.mxu0 %v2739
    %3234 = vmatpush.msra.mxu0 %v2732
    %3235 = vmatpush.msra.mxu0 %v2725
    %3236 = vmatpush.msra.mxu0 %v2718
    %3237 = vmatpush.msra.mxu0 %v2711
    %3238 = vmatpush.msra.mxu0 %v2704
    %3239 = vmatpush.msra.mxu0 %v2697
    %3240 = vmatpush.msra.mxu0 %v2690
    %3241 = vmatpush.msra.mxu0 %v2683
    %3242 = vmatpush.msra.mxu0 %v2676
    %3243 = vmatpush.msra.mxu0 %v2669
    %3244 = vmatpush.msra.mxu0 %v2662
    %3245 = vmatpush.msra.mxu0 %v2655
    %3246 = vmatpush.msra.mxu0 %v2648
    %3247 = vmatpush.msra.mxu0 %v2641
    %3248 = vmatpush.msra.mxu0 %v2634
    %3249 = vmatmul.f32.gmra.mxu0 %v2265
    %v3250 = vpop.f32.mrf.mxu0
    %v3251 = vadd.f32 %v3228, %v3250
    %3252 = vmatmul.f32.gmra.mxu0 %v2266
    %v3253 = vpop.f32.mrf.mxu0
    %v3254 = vadd.f32 %v3231, %v3253
    %3255 = vdwg.mxu0
    %3256 = vmatpush.msra.mxu0 %v2851
    %3257 = vmatpush.msra.mxu0 %v2844
    %3258 = vmatpush.msra.mxu0 %v2837
    %3259 = vmatpush.msra.mxu0 %v2830
    %3260 = vmatpush.msra.mxu0 %v2823
    %3261 = vmatpush.msra.mxu0 %v2816
    %3262 = vmatpush.msra.mxu0 %v2809
    %3263 = vmatpush.msra.mxu0 %v2802
    %3264 = vmatpush.msra.mxu0 %v2795
    %3265 = vmatpush.msra.mxu0 %v2788
    %3266 = vmatpush.msra.mxu0 %v2781
    %3267 = vmatpush.msra.mxu0 %v2774
    %3268 = vmatpush.msra.mxu0 %v2767
    %3269 = vmatpush.msra.mxu0 %v2760
    %3270 = vmatpush.msra.mxu0 %v2753
    %3271 = vmatpush.msra.mxu0 %v2746
    %3272 = vmatmul.f32.gmra.mxu0 %v2279
    %v3273 = vpop.f32.mrf.mxu0
    %v3274 = vadd.f32 %v3251, %v3273
    %3275 = vmatmul.f32.gmra.mxu0 %v2280
    %v3276 = vpop.f32.mrf.mxu0
    %v3277 = vadd.f32 %v3254, %v3276
    %3278 = vdwg.mxu0
    %3279 = vmatpush.msra.mxu0 %v2963
    %3280 = vmatpush.msra.mxu0 %v2956
    %3281 = vmatpush.msra.mxu0 %v2949
    %3282 = vmatpush.msra.mxu0 %v2942
    %3283 = vmatpush.msra.mxu0 %v2935
    %3284 = vmatpush.msra.mxu0 %v2928
    %3285 = vmatpush.msra.mxu0 %v2921
    %3286 = vmatpush.msra.mxu0 %v2914
    %3287 = vmatpush.msra.mxu0 %v2907
    %3288 = vmatpush.msra.mxu0 %v2900
    %3289 = vmatpush.msra.mxu0 %v2893
    %3290 = vmatpush.msra.mxu0 %v2886
    %3291 = vmatpush.msra.mxu0 %v2879
    %3292 = vmatpush.msra.mxu0 %v2872
    %3293 = vmatpush.msra.mxu0 %v2865
    %3294 = vmatpush.msra.mxu0 %v2858
    %3295 = vmatmul.f32.gmra.mxu0 %v2293
    %v3296 = vpop.f32.mrf.mxu0
    %v3297 = vadd.f32 %v3274, %v3296
    %3298 = vmatmul.f32.gmra.mxu0 %v2294
    %v3299 = vpop.f32.mrf.mxu0
    %v3300 = vadd.f32 %v3277, %v3299
    %3301 = vdwg.mxu0
    %3302 = vmatpush.msra.mxu0 0.0
    %3303 = vmatpush.msra.mxu0 0.0
    %3304 = vmatpush.msra.mxu0 0.0
    %3305 = vmatpush.msra.mxu0 0.0
    %3306 = vmatpush.msra.mxu0 0.0
    %3307 = vmatpush.msra.mxu0 0.0
    %3308 = vmatpush.msra.mxu0 0.0
    %3309 = vmatpush.msra.mxu0 0.0
    %3310 = vmatpush.msra.mxu0 0.0
    %3311 = vmatpush.msra.mxu0 0.0
    %3312 = vmatpush.msra.mxu0 0.0
    %3313 = vmatpush.msra.mxu0 0.0
    %3314 = vmatpush.msra.mxu0 %v2991
    %3315 = vmatpush.msra.mxu0 %v2984
    %3316 = vmatpush.msra.mxu0 %v2977
    %3317 = vmatpush.msra.mxu0 %v2970
    %3318 = vmatmul.f32.gmra.mxu0 %v2998
    %v3319 = vpop.f32.mrf.mxu0
    %v3320 = vadd.f32 %v3297, %v3319
    %3321 = vmatmul.f32.gmra.mxu0 %v3001
    %v3322 = vpop.f32.mrf.mxu0
    %v3323 = vadd.f32 %v3300, %v3322
    %3324 = vdwg.mxu0
    %3325 = vmatpush.msra.mxu0 %v2404
    %3326 = vmatpush.msra.mxu0 %v2397
    %3327 = vmatpush.msra.mxu0 %v2390
    %3328 = vmatpush.msra.mxu0 %v2383
    %3329 = vmatpush.msra.mxu0 %v2376
    %3330 = vmatpush.msra.mxu0 %v2369
    %3331 = vmatpush.msra.mxu0 %v2362
    %3332 = vmatpush.msra.mxu0 %v2355
    %3333 = vmatpush.msra.mxu0 %v2348
    %3334 = vmatpush.msra.mxu0 %v2341
    %3335 = vmatpush.msra.mxu0 %v2334
    %3336 = vmatpush.msra.mxu0 %v2327
    %3337 = vmatpush.msra.mxu0 %v2320
    %3338 = vmatpush.msra.mxu0 %v2313
    %3339 = vmatpush.msra.mxu0 %v2306
    %3340 = vmatpush.msra.mxu0 %v2299
    %3341 = vmatmul.f32.gmra.mxu0 %v2223
    %v3342 = vpop.f32.mrf.mxu0
    %v3343 = vadd.f32 0.0, %v3342
    %3344 = vmatmul.f32.gmra.mxu0 %v2224
    %v3345 = vpop.f32.mrf.mxu0
    %v3346 = vadd.f32 0.0, %v3345
    %3347 = vdwg.mxu0
    %3348 = vmatpush.msra.mxu0 %v2516
    %3349 = vmatpush.msra.mxu0 %v2509
    %3350 = vmatpush.msra.mxu0 %v2502
    %3351 = vmatpush.msra.mxu0 %v2495
    %3352 = vmatpush.msra.mxu0 %v2488
    %3353 = vmatpush.msra.mxu0 %v2481
    %3354 = vmatpush.msra.mxu0 %v2474
    %3355 = vmatpush.msra.mxu0 %v2467
    %3356 = vmatpush.msra.mxu0 %v2460
    %3357 = vmatpush.msra.mxu0 %v2453
    %3358 = vmatpush.msra.mxu0 %v2446
    %3359 = vmatpush.msra.mxu0 %v2439
    %3360 = vmatpush.msra.mxu0 %v2432
    %3361 = vmatpush.msra.mxu0 %v2425
    %3362 = vmatpush.msra.mxu0 %v2418
    %3363 = vmatpush.msra.mxu0 %v2411
    %3364 = vmatmul.f32.gmra.mxu0 %v2237
    %v3365 = vpop.f32.mrf.mxu0
    %v3366 = vadd.f32 %v3343, %v3365
    %3367 = vmatmul.f32.gmra.mxu0 %v2238
    %v3368 = vpop.f32.mrf.mxu0
    %v3369 = vadd.f32 %v3346, %v3368
    %3370 = vdwg.mxu0
    %3371 = vmatpush.msra.mxu0 %v2628
    %3372 = vmatpush.msra.mxu0 %v2621
    %3373 = vmatpush.msra.mxu0 %v2614
    %3374 = vmatpush.msra.mxu0 %v2607
    %3375 = vmatpush.msra.mxu0 %v2600
    %3376 = vmatpush.msra.mxu0 %v2593
    %3377 = vmatpush.msra.mxu0 %v2586
    %3378 = vmatpush.msra.mxu0 %v2579
    %3379 = vmatpush.msra.mxu0 %v2572
    %3380 = vmatpush.msra.mxu0 %v2565
    %3381 = vmatpush.msra.mxu0 %v2558
    %3382 = vmatpush.msra.mxu0 %v2551
    %3383 = vmatpush.msra.mxu0 %v2544
    %3384 = vmatpush.msra.mxu0 %v2537
    %3385 = vmatpush.msra.mxu0 %v2530
    %3386 = vmatpush.msra.mxu0 %v2523
    %3387 = vmatmul.f32.gmra.mxu0 %v2251
    %v3388 = vpop.f32.mrf.mxu0
    %v3389 = vadd.f32 %v3366, %v3388
    %3390 = vmatmul.f32.gmra.mxu0 %v2252
    %v3391 = vpop.f32.mrf.mxu0
    %v3392 = vadd.f32 %v3369, %v3391
    %3393 = vdwg.mxu0
    %3394 = vmatpush.msra.mxu0 %v2740
    %3395 = vmatpush.msra.mxu0 %v2733
    %3396 = vmatpush.msra.mxu0 %v2726
    %3397 = vmatpush.msra.mxu0 %v2719
    %3398 = vmatpush.msra.mxu0 %v2712
    %3399 = vmatpush.msra.mxu0 %v2705
    %3400 = vmatpush.msra.mxu0 %v2698
    %3401 = vmatpush.msra.mxu0 %v2691
    %3402 = vmatpush.msra.mxu0 %v2684
    %3403 = vmatpush.msra.mxu0 %v2677
    %3404 = vmatpush.msra.mxu0 %v2670
    %3405 = vmatpush.msra.mxu0 %v2663
    %3406 = vmatpush.msra.mxu0 %v2656
    %3407 = vmatpush.msra.mxu0 %v2649
    %3408 = vmatpush.msra.mxu0 %v2642
    %3409 = vmatpush.msra.mxu0 %v2635
    %3410 = vmatmul.f32.gmra.mxu0 %v2265
    %v3411 = vpop.f32.mrf.mxu0
    %v3412 = vadd.f32 %v3389, %v3411
    %3413 = vmatmul.f32.gmra.mxu0 %v2266
    %v3414 = vpop.f32.mrf.mxu0
    %v3415 = vadd.f32 %v3392, %v3414
    %3416 = vdwg.mxu0
    %3417 = vmatpush.msra.mxu0 %v2852
    %3418 = vmatpush.msra.mxu0 %v2845
    %3419 = vmatpush.msra.mxu0 %v2838
    %3420 = vmatpush.msra.mxu0 %v2831
    %3421 = vmatpush.msra.mxu0 %v2824
    %3422 = vmatpush.msra.mxu0 %v2817
    %3423 = vmatpush.msra.mxu0 %v2810
    %3424 = vmatpush.msra.mxu0 %v2803
    %3425 = vmatpush.msra.mxu0 %v2796
    %3426 = vmatpush.msra.mxu0 %v2789
    %3427 = vmatpush.msra.mxu0 %v2782
    %3428 = vmatpush.msra.mxu0 %v2775
    %3429 = vmatpush.msra.mxu0 %v2768
    %3430 = vmatpush.msra.mxu0 %v2761
    %3431 = vmatpush.msra.mxu0 %v2754
    %3432 = vmatpush.msra.mxu0 %v2747
    %3433 = vmatmul.f32.gmra.mxu0 %v2279
    %v3434 = vpop.f32.mrf.mxu0
    %v3435 = vadd.f32 %v3412, %v3434
    %3436 = vmatmul.f32.gmra.mxu0 %v2280
    %v3437 = vpop.f32.mrf.mxu0
    %v3438 = vadd.f32 %v3415, %v3437
    %3439 = vdwg.mxu0
    %3440 = vmatpush.msra.mxu0 %v2964
    %3441 = vmatpush.msra.mxu0 %v2957
    %3442 = vmatpush.msra.mxu0 %v2950
    %3443 = vmatpush.msra.mxu0 %v2943
    %3444 = vmatpush.msra.mxu0 %v2936
    %3445 = vmatpush.msra.mxu0 %v2929
    %3446 = vmatpush.msra.mxu0 %v2922
    %3447 = vmatpush.msra.mxu0 %v2915
    %3448 = vmatpush.msra.mxu0 %v2908
    %3449 = vmatpush.msra.mxu0 %v2901
    %3450 = vmatpush.msra.mxu0 %v2894
    %3451 = vmatpush.msra.mxu0 %v2887
    %3452 = vmatpush.msra.mxu0 %v2880
    %3453 = vmatpush.msra.mxu0 %v2873
    %3454 = vmatpush.msra.mxu0 %v2866
    %3455 = vmatpush.msra.mxu0 %v2859
    %3456 = vmatmul.f32.gmra.mxu0 %v2293
    %v3457 = vpop.f32.mrf.mxu0
    %v3458 = vadd.f32 %v3435, %v3457
    %3459 = vmatmul.f32.gmra.mxu0 %v2294
    %v3460 = vpop.f32.mrf.mxu0
    %v3461 = vadd.f32 %v3438, %v3460
    %3462 = vdwg.mxu0
    %3463 = vmatpush.msra.mxu0 0.0
    %3464 = vmatpush.msra.mxu0 0.0
    %3465 = vmatpush.msra.mxu0 0.0
    %3466 = vmatpush.msra.mxu0 0.0
    %3467 = vmatpush.msra.mxu0 0.0
    %3468 = vmatpush.msra.mxu0 0.0
    %3469 = vmatpush.msra.mxu0 0.0
    %3470 = vmatpush.msra.mxu0 0.0
    %3471 = vmatpush.msra.mxu0 0.0
    %3472 = vmatpush.msra.mxu0 0.0
    %3473 = vmatpush.msra.mxu0 0.0
    %3474 = vmatpush.msra.mxu0 0.0
    %3475 = vmatpush.msra.mxu0 %v2992
    %3476 = vmatpush.msra.mxu0 %v2985
    %3477 = vmatpush.msra.mxu0 %v2978
    %3478 = vmatpush.msra.mxu0 %v2971
    %3479 = vmatmul.f32.gmra.mxu0 %v2998
    %v3480 = vpop.f32.mrf.mxu0
    %v3481 = vadd.f32 %v3458, %v3480
    %3482 = vmatmul.f32.gmra.mxu0 %v3001
    %v3483 = vpop.f32.mrf.mxu0
    %v3484 = vadd.f32 %v3461, %v3483
    %3485 = vdwg.mxu0
    %3486 = vmatpush.msra.mxu0 %v2405
    %3487 = vmatpush.msra.mxu0 %v2398
    %3488 = vmatpush.msra.mxu0 %v2391
    %3489 = vmatpush.msra.mxu0 %v2384
    %3490 = vmatpush.msra.mxu0 %v2377
    %3491 = vmatpush.msra.mxu0 %v2370
    %3492 = vmatpush.msra.mxu0 %v2363
    %3493 = vmatpush.msra.mxu0 %v2356
    %3494 = vmatpush.msra.mxu0 %v2349
    %3495 = vmatpush.msra.mxu0 %v2342
    %3496 = vmatpush.msra.mxu0 %v2335
    %3497 = vmatpush.msra.mxu0 %v2328
    %3498 = vmatpush.msra.mxu0 %v2321
    %3499 = vmatpush.msra.mxu0 %v2314
    %3500 = vmatpush.msra.mxu0 %v2307
    %3501 = vmatpush.msra.mxu0 %v2300
    %3502 = vmatmul.f32.gmra.mxu0 %v2223
    %v3503 = vpop.f32.mrf.mxu0
    %v3504 = vadd.f32 0.0, %v3503
    %3505 = vmatmul.f32.gmra.mxu0 %v2224
    %v3506 = vpop.f32.mrf.mxu0
    %v3507 = vadd.f32 0.0, %v3506
    %3508 = vdwg.mxu0
    %3509 = vmatpush.msra.mxu0 %v2517
    %3510 = vmatpush.msra.mxu0 %v2510
    %3511 = vmatpush.msra.mxu0 %v2503
    %3512 = vmatpush.msra.mxu0 %v2496
    %3513 = vmatpush.msra.mxu0 %v2489
    %3514 = vmatpush.msra.mxu0 %v2482
    %3515 = vmatpush.msra.mxu0 %v2475
    %3516 = vmatpush.msra.mxu0 %v2468
    %3517 = vmatpush.msra.mxu0 %v2461
    %3518 = vmatpush.msra.mxu0 %v2454
    %3519 = vmatpush.msra.mxu0 %v2447
    %3520 = vmatpush.msra.mxu0 %v2440
    %3521 = vmatpush.msra.mxu0 %v2433
    %3522 = vmatpush.msra.mxu0 %v2426
    %3523 = vmatpush.msra.mxu0 %v2419
    %3524 = vmatpush.msra.mxu0 %v2412
    %3525 = vmatmul.f32.gmra.mxu0 %v2237
    %v3526 = vpop.f32.mrf.mxu0
    %v3527 = vadd.f32 %v3504, %v3526
    %3528 = vmatmul.f32.gmra.mxu0 %v2238
    %v3529 = vpop.f32.mrf.mxu0
    %v3530 = vadd.f32 %v3507, %v3529
    %3531 = vdwg.mxu0
    %3532 = vmatpush.msra.mxu0 %v2629
    %3533 = vmatpush.msra.mxu0 %v2622
    %3534 = vmatpush.msra.mxu0 %v2615
    %3535 = vmatpush.msra.mxu0 %v2608
    %3536 = vmatpush.msra.mxu0 %v2601
    %3537 = vmatpush.msra.mxu0 %v2594
    %3538 = vmatpush.msra.mxu0 %v2587
    %3539 = vmatpush.msra.mxu0 %v2580
    %3540 = vmatpush.msra.mxu0 %v2573
    %3541 = vmatpush.msra.mxu0 %v2566
    %3542 = vmatpush.msra.mxu0 %v2559
    %3543 = vmatpush.msra.mxu0 %v2552
    %3544 = vmatpush.msra.mxu0 %v2545
    %3545 = vmatpush.msra.mxu0 %v2538
    %3546 = vmatpush.msra.mxu0 %v2531
    %3547 = vmatpush.msra.mxu0 %v2524
    %3548 = vmatmul.f32.gmra.mxu0 %v2251
    %v3549 = vpop.f32.mrf.mxu0
    %v3550 = vadd.f32 %v3527, %v3549
    %3551 = vmatmul.f32.gmra.mxu0 %v2252
    %v3552 = vpop.f32.mrf.mxu0
    %v3553 = vadd.f32 %v3530, %v3552
    %3554 = vdwg.mxu0
    %3555 = vmatpush.msra.mxu0 %v2741
    %3556 = vmatpush.msra.mxu0 %v2734
    %3557 = vmatpush.msra.mxu0 %v2727
    %3558 = vmatpush.msra.mxu0 %v2720
    %3559 = vmatpush.msra.mxu0 %v2713
    %3560 = vmatpush.msra.mxu0 %v2706
    %3561 = vmatpush.msra.mxu0 %v2699
    %3562 = vmatpush.msra.mxu0 %v2692
    %3563 = vmatpush.msra.mxu0 %v2685
    %3564 = vmatpush.msra.mxu0 %v2678
    %3565 = vmatpush.msra.mxu0 %v2671
    %3566 = vmatpush.msra.mxu0 %v2664
    %3567 = vmatpush.msra.mxu0 %v2657
    %3568 = vmatpush.msra.mxu0 %v2650
    %3569 = vmatpush.msra.mxu0 %v2643
    %3570 = vmatpush.msra.mxu0 %v2636
    %3571 = vmatmul.f32.gmra.mxu0 %v2265
    %v3572 = vpop.f32.mrf.mxu0
    %v3573 = vadd.f32 %v3550, %v3572
    %3574 = vmatmul.f32.gmra.mxu0 %v2266
    %v3575 = vpop.f32.mrf.mxu0
    %v3576 = vadd.f32 %v3553, %v3575
    %3577 = vdwg.mxu0
    %3578 = vmatpush.msra.mxu0 %v2853
    %3579 = vmatpush.msra.mxu0 %v2846
    %3580 = vmatpush.msra.mxu0 %v2839
    %3581 = vmatpush.msra.mxu0 %v2832
    %3582 = vmatpush.msra.mxu0 %v2825
    %3583 = vmatpush.msra.mxu0 %v2818
    %3584 = vmatpush.msra.mxu0 %v2811
    %3585 = vmatpush.msra.mxu0 %v2804
    %3586 = vmatpush.msra.mxu0 %v2797
    %3587 = vmatpush.msra.mxu0 %v2790
    %3588 = vmatpush.msra.mxu0 %v2783
    %3589 = vmatpush.msra.mxu0 %v2776
    %3590 = vmatpush.msra.mxu0 %v2769
    %3591 = vmatpush.msra.mxu0 %v2762
    %3592 = vmatpush.msra.mxu0 %v2755
    %3593 = vmatpush.msra.mxu0 %v2748
    %3594 = vmatmul.f32.gmra.mxu0 %v2279
    %v3595 = vpop.f32.mrf.mxu0
    %v3596 = vadd.f32 %v3573, %v3595
    %3597 = vmatmul.f32.gmra.mxu0 %v2280
    %v3598 = vpop.f32.mrf.mxu0
    %v3599 = vadd.f32 %v3576, %v3598
    %3600 = vdwg.mxu0
    %3601 = vmatpush.msra.mxu0 %v2965
    %3602 = vmatpush.msra.mxu0 %v2958
    %3603 = vmatpush.msra.mxu0 %v2951
    %3604 = vmatpush.msra.mxu0 %v2944
    %3605 = vmatpush.msra.mxu0 %v2937
    %3606 = vmatpush.msra.mxu0 %v2930
    %3607 = vmatpush.msra.mxu0 %v2923
    %3608 = vmatpush.msra.mxu0 %v2916
    %3609 = vmatpush.msra.mxu0 %v2909
    %3610 = vmatpush.msra.mxu0 %v2902
    %3611 = vmatpush.msra.mxu0 %v2895
    %3612 = vmatpush.msra.mxu0 %v2888
    %3613 = vmatpush.msra.mxu0 %v2881
    %3614 = vmatpush.msra.mxu0 %v2874
    %3615 = vmatpush.msra.mxu0 %v2867
    %3616 = vmatpush.msra.mxu0 %v2860
    %3617 = vmatmul.f32.gmra.mxu0 %v2293
    %v3618 = vpop.f32.mrf.mxu0
    %v3619 = vadd.f32 %v3596, %v3618
    %3620 = vmatmul.f32.gmra.mxu0 %v2294
    %v3621 = vpop.f32.mrf.mxu0
    %v3622 = vadd.f32 %v3599, %v3621
    %3623 = vdwg.mxu0
    %3624 = vmatpush.msra.mxu0 0.0
    %3625 = vmatpush.msra.mxu0 0.0
    %3626 = vmatpush.msra.mxu0 0.0
    %3627 = vmatpush.msra.mxu0 0.0
    %3628 = vmatpush.msra.mxu0 0.0
    %3629 = vmatpush.msra.mxu0 0.0
    %3630 = vmatpush.msra.mxu0 0.0
    %3631 = vmatpush.msra.mxu0 0.0
    %3632 = vmatpush.msra.mxu0 0.0
    %3633 = vmatpush.msra.mxu0 0.0
    %3634 = vmatpush.msra.mxu0 0.0
    %3635 = vmatpush.msra.mxu0 0.0
    %3636 = vmatpush.msra.mxu0 %v2993
    %3637 = vmatpush.msra.mxu0 %v2986
    %3638 = vmatpush.msra.mxu0 %v2979
    %3639 = vmatpush.msra.mxu0 %v2972
    %3640 = vmatmul.f32.gmra.mxu0 %v2998
    %v3641 = vpop.f32.mrf.mxu0
    %v3642 = vadd.f32 %v3619, %v3641
    %3643 = vmatmul.f32.gmra.mxu0 %v3001
    %v3644 = vpop.f32.mrf.mxu0
    %v3645 = vadd.f32 %v3622, %v3644
    %3646 = vdwg.mxu0
    %3647 = vmatpush.msra.mxu0 %v2406
    %3648 = vmatpush.msra.mxu0 %v2399
    %3649 = vmatpush.msra.mxu0 %v2392
    %3650 = vmatpush.msra.mxu0 %v2385
    %3651 = vmatpush.msra.mxu0 %v2378
    %3652 = vmatpush.msra.mxu0 %v2371
    %3653 = vmatpush.msra.mxu0 %v2364
    %3654 = vmatpush.msra.mxu0 %v2357
    %3655 = vmatpush.msra.mxu0 %v2350
    %3656 = vmatpush.msra.mxu0 %v2343
    %3657 = vmatpush.msra.mxu0 %v2336
    %3658 = vmatpush.msra.mxu0 %v2329
    %3659 = vmatpush.msra.mxu0 %v2322
    %3660 = vmatpush.msra.mxu0 %v2315
    %3661 = vmatpush.msra.mxu0 %v2308
    %3662 = vmatpush.msra.mxu0 %v2301
    %3663 = vmatmul.f32.gmra.mxu0 %v2223
    %v3664 = vpop.f32.mrf.mxu0
    %v3665 = vadd.f32 0.0, %v3664
    %3666 = vmatmul.f32.gmra.mxu0 %v2224
    %v3667 = vpop.f32.mrf.mxu0
    %v3668 = vadd.f32 0.0, %v3667
    %3669 = vdwg.mxu0
    %3670 = vmatpush.msra.mxu0 %v2518
    %3671 = vmatpush.msra.mxu0 %v2511
    %3672 = vmatpush.msra.mxu0 %v2504
    %3673 = vmatpush.msra.mxu0 %v2497
    %3674 = vmatpush.msra.mxu0 %v2490
    %3675 = vmatpush.msra.mxu0 %v2483
    %3676 = vmatpush.msra.mxu0 %v2476
    %3677 = vmatpush.msra.mxu0 %v2469
    %3678 = vmatpush.msra.mxu0 %v2462
    %3679 = vmatpush.msra.mxu0 %v2455
    %3680 = vmatpush.msra.mxu0 %v2448
    %3681 = vmatpush.msra.mxu0 %v2441
    %3682 = vmatpush.msra.mxu0 %v2434
    %3683 = vmatpush.msra.mxu0 %v2427
    %3684 = vmatpush.msra.mxu0 %v2420
    %3685 = vmatpush.msra.mxu0 %v2413
    %3686 = vmatmul.f32.gmra.mxu0 %v2237
    %v3687 = vpop.f32.mrf.mxu0
    %v3688 = vadd.f32 %v3665, %v3687
    %3689 = vmatmul.f32.gmra.mxu0 %v2238
    %v3690 = vpop.f32.mrf.mxu0
    %v3691 = vadd.f32 %v3668, %v3690
    %3692 = vdwg.mxu0
    %3693 = vmatpush.msra.mxu0 %v2630
    %3694 = vmatpush.msra.mxu0 %v2623
    %3695 = vmatpush.msra.mxu0 %v2616
    %3696 = vmatpush.msra.mxu0 %v2609
    %3697 = vmatpush.msra.mxu0 %v2602
    %3698 = vmatpush.msra.mxu0 %v2595
    %3699 = vmatpush.msra.mxu0 %v2588
    %3700 = vmatpush.msra.mxu0 %v2581
    %3701 = vmatpush.msra.mxu0 %v2574
    %3702 = vmatpush.msra.mxu0 %v2567
    %3703 = vmatpush.msra.mxu0 %v2560
    %3704 = vmatpush.msra.mxu0 %v2553
    %3705 = vmatpush.msra.mxu0 %v2546
    %3706 = vmatpush.msra.mxu0 %v2539
    %3707 = vmatpush.msra.mxu0 %v2532
    %3708 = vmatpush.msra.mxu0 %v2525
    %3709 = vmatmul.f32.gmra.mxu0 %v2251
    %v3710 = vpop.f32.mrf.mxu0
    %v3711 = vadd.f32 %v3688, %v3710
    %3712 = vmatmul.f32.gmra.mxu0 %v2252
    %v3713 = vpop.f32.mrf.mxu0
    %v3714 = vadd.f32 %v3691, %v3713
    %3715 = vdwg.mxu0
    %3716 = vmatpush.msra.mxu0 %v2742
    %3717 = vmatpush.msra.mxu0 %v2735
    %3718 = vmatpush.msra.mxu0 %v2728
    %3719 = vmatpush.msra.mxu0 %v2721
    %3720 = vmatpush.msra.mxu0 %v2714
    %3721 = vmatpush.msra.mxu0 %v2707
    %3722 = vmatpush.msra.mxu0 %v2700
    %3723 = vmatpush.msra.mxu0 %v2693
    %3724 = vmatpush.msra.mxu0 %v2686
    %3725 = vmatpush.msra.mxu0 %v2679
    %3726 = vmatpush.msra.mxu0 %v2672
    %3727 = vmatpush.msra.mxu0 %v2665
    %3728 = vmatpush.msra.mxu0 %v2658
    %3729 = vmatpush.msra.mxu0 %v2651
    %3730 = vmatpush.msra.mxu0 %v2644
    %3731 = vmatpush.msra.mxu0 %v2637
    %3732 = vmatmul.f32.gmra.mxu0 %v2265
    %v3733 = vpop.f32.mrf.mxu0
    %v3734 = vadd.f32 %v3711, %v3733
    %3735 = vmatmul.f32.gmra.mxu0 %v2266
    %v3736 = vpop.f32.mrf.mxu0
    %v3737 = vadd.f32 %v3714, %v3736
    %3738 = vdwg.mxu0
    %3739 = vmatpush.msra.mxu0 %v2854
    %3740 = vmatpush.msra.mxu0 %v2847
    %3741 = vmatpush.msra.mxu0 %v2840
    %3742 = vmatpush.msra.mxu0 %v2833
    %3743 = vmatpush.msra.mxu0 %v2826
    %3744 = vmatpush.msra.mxu0 %v2819
    %3745 = vmatpush.msra.mxu0 %v2812
    %3746 = vmatpush.msra.mxu0 %v2805
    %3747 = vmatpush.msra.mxu0 %v2798
    %3748 = vmatpush.msra.mxu0 %v2791
    %3749 = vmatpush.msra.mxu0 %v2784
    %3750 = vmatpush.msra.mxu0 %v2777
    %3751 = vmatpush.msra.mxu0 %v2770
    %3752 = vmatpush.msra.mxu0 %v2763
    %3753 = vmatpush.msra.mxu0 %v2756
    %3754 = vmatpush.msra.mxu0 %v2749
    %3755 = vmatmul.f32.gmra.mxu0 %v2279
    %v3756 = vpop.f32.mrf.mxu0
    %v3757 = vadd.f32 %v3734, %v3756
    %3758 = vmatmul.f32.gmra.mxu0 %v2280
    %v3759 = vpop.f32.mrf.mxu0
    %v3760 = vadd.f32 %v3737, %v3759
    %3761 = vdwg.mxu0
    %3762 = vmatpush.msra.mxu0 %v2966
    %3763 = vmatpush.msra.mxu0 %v2959
    %3764 = vmatpush.msra.mxu0 %v2952
    %3765 = vmatpush.msra.mxu0 %v2945
    %3766 = vmatpush.msra.mxu0 %v2938
    %3767 = vmatpush.msra.mxu0 %v2931
    %3768 = vmatpush.msra.mxu0 %v2924
    %3769 = vmatpush.msra.mxu0 %v2917
    %3770 = vmatpush.msra.mxu0 %v2910
    %3771 = vmatpush.msra.mxu0 %v2903
    %3772 = vmatpush.msra.mxu0 %v2896
    %3773 = vmatpush.msra.mxu0 %v2889
    %3774 = vmatpush.msra.mxu0 %v2882
    %3775 = vmatpush.msra.mxu0 %v2875
    %3776 = vmatpush.msra.mxu0 %v2868
    %3777 = vmatpush.msra.mxu0 %v2861
    %3778 = vmatmul.f32.gmra.mxu0 %v2293
    %v3779 = vpop.f32.mrf.mxu0
    %v3780 = vadd.f32 %v3757, %v3779
    %3781 = vmatmul.f32.gmra.mxu0 %v2294
    %v3782 = vpop.f32.mrf.mxu0
    %v3783 = vadd.f32 %v3760, %v3782
    %3784 = vdwg.mxu0
    %3785 = vmatpush.msra.mxu0 0.0
    %3786 = vmatpush.msra.mxu0 0.0
    %3787 = vmatpush.msra.mxu0 0.0
    %3788 = vmatpush.msra.mxu0 0.0
    %3789 = vmatpush.msra.mxu0 0.0
    %3790 = vmatpush.msra.mxu0 0.0
    %3791 = vmatpush.msra.mxu0 0.0
    %3792 = vmatpush.msra.mxu0 0.0
    %3793 = vmatpush.msra.mxu0 0.0
    %3794 = vmatpush.msra.mxu0 0.0
    %3795 = vmatpush.msra.mxu0 0.0
    %3796 = vmatpush.msra.mxu0 0.0
    %3797 = vmatpush.msra.mxu0 %v2994
    %3798 = vmatpush.msra.mxu0 %v2987
    %3799 = vmatpush.msra.mxu0 %v2980
    %3800 = vmatpush.msra.mxu0 %v2973
    %3801 = vmatmul.f32.gmra.mxu0 %v2998
    %v3802 = vpop.f32.mrf.mxu0
    %v3803 = vadd.f32 %v3780, %v3802
    %3804 = vmatmul.f32.gmra.mxu0 %v3001
    %v3805 = vpop.f32.mrf.mxu0
    %v3806 = vadd.f32 %v3783, %v3805
    %3807 = vdwg.mxu0
    %3808 = vmatpush.msra.mxu0 %v2407
    %3809 = vmatpush.msra.mxu0 %v2400
    %3810 = vmatpush.msra.mxu0 %v2393
    %3811 = vmatpush.msra.mxu0 %v2386
    %3812 = vmatpush.msra.mxu0 %v2379
    %3813 = vmatpush.msra.mxu0 %v2372
    %3814 = vmatpush.msra.mxu0 %v2365
    %3815 = vmatpush.msra.mxu0 %v2358
    %3816 = vmatpush.msra.mxu0 %v2351
    %3817 = vmatpush.msra.mxu0 %v2344
    %3818 = vmatpush.msra.mxu0 %v2337
    %3819 = vmatpush.msra.mxu0 %v2330
    %3820 = vmatpush.msra.mxu0 %v2323
    %3821 = vmatpush.msra.mxu0 %v2316
    %3822 = vmatpush.msra.mxu0 %v2309
    %3823 = vmatpush.msra.mxu0 %v2302
    %3824 = vmatmul.f32.gmra.mxu0 %v2223
    %v3825 = vpop.f32.mrf.mxu0
    %v3826 = vadd.f32 0.0, %v3825
    %3827 = vmatmul.f32.gmra.mxu0 %v2224
    %v3828 = vpop.f32.mrf.mxu0
    %v3829 = vadd.f32 0.0, %v3828
    %3830 = vdwg.mxu0
    %3831 = vmatpush.msra.mxu0 %v2519
    %3832 = vmatpush.msra.mxu0 %v2512
    %3833 = vmatpush.msra.mxu0 %v2505
    %3834 = vmatpush.msra.mxu0 %v2498
    %3835 = vmatpush.msra.mxu0 %v2491
    %3836 = vmatpush.msra.mxu0 %v2484
    %3837 = vmatpush.msra.mxu0 %v2477
    %3838 = vmatpush.msra.mxu0 %v2470
    %3839 = vmatpush.msra.mxu0 %v2463
    %3840 = vmatpush.msra.mxu0 %v2456
    %3841 = vmatpush.msra.mxu0 %v2449
    %3842 = vmatpush.msra.mxu0 %v2442
    %3843 = vmatpush.msra.mxu0 %v2435
    %3844 = vmatpush.msra.mxu0 %v2428
    %3845 = vmatpush.msra.mxu0 %v2421
    %3846 = vmatpush.msra.mxu0 %v2414
    %3847 = vmatmul.f32.gmra.mxu0 %v2237
    %v3848 = vpop.f32.mrf.mxu0
    %v3849 = vadd.f32 %v3826, %v3848
    %3850 = vmatmul.f32.gmra.mxu0 %v2238
    %v3851 = vpop.f32.mrf.mxu0
    %v3852 = vadd.f32 %v3829, %v3851
    %3853 = vdwg.mxu0
    %3854 = vmatpush.msra.mxu0 %v2631
    %3855 = vmatpush.msra.mxu0 %v2624
    %3856 = vmatpush.msra.mxu0 %v2617
    %3857 = vmatpush.msra.mxu0 %v2610
    %3858 = vmatpush.msra.mxu0 %v2603
    %3859 = vmatpush.msra.mxu0 %v2596
    %3860 = vmatpush.msra.mxu0 %v2589
    %3861 = vmatpush.msra.mxu0 %v2582
    %3862 = vmatpush.msra.mxu0 %v2575
    %3863 = vmatpush.msra.mxu0 %v2568
    %3864 = vmatpush.msra.mxu0 %v2561
    %3865 = vmatpush.msra.mxu0 %v2554
    %3866 = vmatpush.msra.mxu0 %v2547
    %3867 = vmatpush.msra.mxu0 %v2540
    %3868 = vmatpush.msra.mxu0 %v2533
    %3869 = vmatpush.msra.mxu0 %v2526
    %3870 = vmatmul.f32.gmra.mxu0 %v2251
    %v3871 = vpop.f32.mrf.mxu0
    %v3872 = vadd.f32 %v3849, %v3871
    %3873 = vmatmul.f32.gmra.mxu0 %v2252
    %v3874 = vpop.f32.mrf.mxu0
    %v3875 = vadd.f32 %v3852, %v3874
    %3876 = vdwg.mxu0
    %3877 = vmatpush.msra.mxu0 %v2743
    %3878 = vmatpush.msra.mxu0 %v2736
    %3879 = vmatpush.msra.mxu0 %v2729
    %3880 = vmatpush.msra.mxu0 %v2722
    %3881 = vmatpush.msra.mxu0 %v2715
    %3882 = vmatpush.msra.mxu0 %v2708
    %3883 = vmatpush.msra.mxu0 %v2701
    %3884 = vmatpush.msra.mxu0 %v2694
    %3885 = vmatpush.msra.mxu0 %v2687
    %3886 = vmatpush.msra.mxu0 %v2680
    %3887 = vmatpush.msra.mxu0 %v2673
    %3888 = vmatpush.msra.mxu0 %v2666
    %3889 = vmatpush.msra.mxu0 %v2659
    %3890 = vmatpush.msra.mxu0 %v2652
    %3891 = vmatpush.msra.mxu0 %v2645
    %3892 = vmatpush.msra.mxu0 %v2638
    %3893 = vmatmul.f32.gmra.mxu0 %v2265
    %v3894 = vpop.f32.mrf.mxu0
    %v3895 = vadd.f32 %v3872, %v3894
    %3896 = vmatmul.f32.gmra.mxu0 %v2266
    %v3897 = vpop.f32.mrf.mxu0
    %v3898 = vadd.f32 %v3875, %v3897
    %3899 = vdwg.mxu0
    %3900 = vmatpush.msra.mxu0 %v2855
    %3901 = vmatpush.msra.mxu0 %v2848
    %3902 = vmatpush.msra.mxu0 %v2841
    %3903 = vmatpush.msra.mxu0 %v2834
    %3904 = vmatpush.msra.mxu0 %v2827
    %3905 = vmatpush.msra.mxu0 %v2820
    %3906 = vmatpush.msra.mxu0 %v2813
    %3907 = vmatpush.msra.mxu0 %v2806
    %3908 = vmatpush.msra.mxu0 %v2799
    %3909 = vmatpush.msra.mxu0 %v2792
    %3910 = vmatpush.msra.mxu0 %v2785
    %3911 = vmatpush.msra.mxu0 %v2778
    %3912 = vmatpush.msra.mxu0 %v2771
    %3913 = vmatpush.msra.mxu0 %v2764
    %3914 = vmatpush.msra.mxu0 %v2757
    %3915 = vmatpush.msra.mxu0 %v2750
    %3916 = vmatmul.f32.gmra.mxu0 %v2279
    %v3917 = vpop.f32.mrf.mxu0
    %v3918 = vadd.f32 %v3895, %v3917
    %3919 = vmatmul.f32.gmra.mxu0 %v2280
    %v3920 = vpop.f32.mrf.mxu0
    %v3921 = vadd.f32 %v3898, %v3920
    %3922 = vdwg.mxu0
    %3923 = vmatpush.msra.mxu0 %v2967
    %3924 = vmatpush.msra.mxu0 %v2960
    %3925 = vmatpush.msra.mxu0 %v2953
    %3926 = vmatpush.msra.mxu0 %v2946
    %3927 = vmatpush.msra.mxu0 %v2939
    %3928 = vmatpush.msra.mxu0 %v2932
    %3929 = vmatpush.msra.mxu0 %v2925
    %3930 = vmatpush.msra.mxu0 %v2918
    %3931 = vmatpush.msra.mxu0 %v2911
    %3932 = vmatpush.msra.mxu0 %v2904
    %3933 = vmatpush.msra.mxu0 %v2897
    %3934 = vmatpush.msra.mxu0 %v2890
    %3935 = vmatpush.msra.mxu0 %v2883
    %3936 = vmatpush.msra.mxu0 %v2876
    %3937 = vmatpush.msra.mxu0 %v2869
    %3938 = vmatpush.msra.mxu0 %v2862
    %3939 = vmatmul.f32.gmra.mxu0 %v2293
    %v3940 = vpop.f32.mrf.mxu0
    %v3941 = vadd.f32 %v3918, %v3940
    %3942 = vmatmul.f32.gmra.mxu0 %v2294
    %v3943 = vpop.f32.mrf.mxu0
    %v3944 = vadd.f32 %v3921, %v3943
    %3945 = vdwg.mxu0
    %3946 = vmatpush.msra.mxu0 0.0
    %3947 = vmatpush.msra.mxu0 0.0
    %3948 = vmatpush.msra.mxu0 0.0
    %3949 = vmatpush.msra.mxu0 0.0
    %3950 = vmatpush.msra.mxu0 0.0
    %3951 = vmatpush.msra.mxu0 0.0
    %3952 = vmatpush.msra.mxu0 0.0
    %3953 = vmatpush.msra.mxu0 0.0
    %3954 = vmatpush.msra.mxu0 0.0
    %3955 = vmatpush.msra.mxu0 0.0
    %3956 = vmatpush.msra.mxu0 0.0
    %3957 = vmatpush.msra.mxu0 0.0
    %3958 = vmatpush.msra.mxu0 %v2995
    %3959 = vmatpush.msra.mxu0 %v2988
    %3960 = vmatpush.msra.mxu0 %v2981
    %3961 = vmatpush.msra.mxu0 %v2974
    %3962 = vmatmul.f32.gmra.mxu0 %v2998
    %v3963 = vpop.f32.mrf.mxu0
    %v3964 = vadd.f32 %v3941, %v3963
    %3965 = vmatmul.f32.gmra.mxu0 %v3001
    %v3966 = vpop.f32.mrf.mxu0
    %v3967 = vadd.f32 %v3944, %v3966
    %3968 = vdwg.mxu0
    %3969 = vmatpush.msra.mxu0 %v2408
    %3970 = vmatpush.msra.mxu0 %v2401
    %3971 = vmatpush.msra.mxu0 %v2394
    %3972 = vmatpush.msra.mxu0 %v2387
    %3973 = vmatpush.msra.mxu0 %v2380
    %3974 = vmatpush.msra.mxu0 %v2373
    %3975 = vmatpush.msra.mxu0 %v2366
    %3976 = vmatpush.msra.mxu0 %v2359
    %3977 = vmatpush.msra.mxu0 %v2352
    %3978 = vmatpush.msra.mxu0 %v2345
    %3979 = vmatpush.msra.mxu0 %v2338
    %3980 = vmatpush.msra.mxu0 %v2331
    %3981 = vmatpush.msra.mxu0 %v2324
    %3982 = vmatpush.msra.mxu0 %v2317
    %3983 = vmatpush.msra.mxu0 %v2310
    %3984 = vmatpush.msra.mxu0 %v2303
    %3985 = vmatmul.f32.gmra.mxu0 %v2223
    %v3986 = vpop.f32.mrf.mxu0
    %v3987 = vadd.f32 0.0, %v3986
    %3988 = vmatmul.f32.gmra.mxu0 %v2224
    %v3989 = vpop.f32.mrf.mxu0
    %v3990 = vadd.f32 0.0, %v3989
    %3991 = vdwg.mxu0
    %3992 = vmatpush.msra.mxu0 %v2520
    %3993 = vmatpush.msra.mxu0 %v2513
    %3994 = vmatpush.msra.mxu0 %v2506
    %3995 = vmatpush.msra.mxu0 %v2499
    %3996 = vmatpush.msra.mxu0 %v2492
    %3997 = vmatpush.msra.mxu0 %v2485
    %3998 = vmatpush.msra.mxu0 %v2478
    %3999 = vmatpush.msra.mxu0 %v2471
    %4000 = vmatpush.msra.mxu0 %v2464
    %4001 = vmatpush.msra.mxu0 %v2457
    %4002 = vmatpush.msra.mxu0 %v2450
    %4003 = vmatpush.msra.mxu0 %v2443
    %4004 = vmatpush.msra.mxu0 %v2436
    %4005 = vmatpush.msra.mxu0 %v2429
    %4006 = vmatpush.msra.mxu0 %v2422
    %4007 = vmatpush.msra.mxu0 %v2415
    %4008 = vmatmul.f32.gmra.mxu0 %v2237
    %v4009 = vpop.f32.mrf.mxu0
    %v4010 = vadd.f32 %v3987, %v4009
    %4011 = vmatmul.f32.gmra.mxu0 %v2238
    %v4012 = vpop.f32.mrf.mxu0
    %v4013 = vadd.f32 %v3990, %v4012
    %4014 = vdwg.mxu0
    %4015 = vmatpush.msra.mxu0 %v2632
    %4016 = vmatpush.msra.mxu0 %v2625
    %4017 = vmatpush.msra.mxu0 %v2618
    %4018 = vmatpush.msra.mxu0 %v2611
    %4019 = vmatpush.msra.mxu0 %v2604
    %4020 = vmatpush.msra.mxu0 %v2597
    %4021 = vmatpush.msra.mxu0 %v2590
    %4022 = vmatpush.msra.mxu0 %v2583
    %4023 = vmatpush.msra.mxu0 %v2576
    %4024 = vmatpush.msra.mxu0 %v2569
    %4025 = vmatpush.msra.mxu0 %v2562
    %4026 = vmatpush.msra.mxu0 %v2555
    %4027 = vmatpush.msra.mxu0 %v2548
    %4028 = vmatpush.msra.mxu0 %v2541
    %4029 = vmatpush.msra.mxu0 %v2534
    %4030 = vmatpush.msra.mxu0 %v2527
    %4031 = vmatmul.f32.gmra.mxu0 %v2251
    %v4032 = vpop.f32.mrf.mxu0
    %v4033 = vadd.f32 %v4010, %v4032
    %4034 = vmatmul.f32.gmra.mxu0 %v2252
    %v4035 = vpop.f32.mrf.mxu0
    %v4036 = vadd.f32 %v4013, %v4035
    %4037 = vdwg.mxu0
    %4038 = vmatpush.msra.mxu0 %v2744
    %4039 = vmatpush.msra.mxu0 %v2737
    %4040 = vmatpush.msra.mxu0 %v2730
    %4041 = vmatpush.msra.mxu0 %v2723
    %4042 = vmatpush.msra.mxu0 %v2716
    %4043 = vmatpush.msra.mxu0 %v2709
    %4044 = vmatpush.msra.mxu0 %v2702
    %4045 = vmatpush.msra.mxu0 %v2695
    %4046 = vmatpush.msra.mxu0 %v2688
    %4047 = vmatpush.msra.mxu0 %v2681
    %4048 = vmatpush.msra.mxu0 %v2674
    %4049 = vmatpush.msra.mxu0 %v2667
    %4050 = vmatpush.msra.mxu0 %v2660
    %4051 = vmatpush.msra.mxu0 %v2653
    %4052 = vmatpush.msra.mxu0 %v2646
    %4053 = vmatpush.msra.mxu0 %v2639
    %4054 = vmatmul.f32.gmra.mxu0 %v2265
    %v4055 = vpop.f32.mrf.mxu0
    %v4056 = vadd.f32 %v4033, %v4055
    %4057 = vmatmul.f32.gmra.mxu0 %v2266
    %v4058 = vpop.f32.mrf.mxu0
    %v4059 = vadd.f32 %v4036, %v4058
    %4060 = vdwg.mxu0
    %4061 = vmatpush.msra.mxu0 %v2856
    %4062 = vmatpush.msra.mxu0 %v2849
    %4063 = vmatpush.msra.mxu0 %v2842
    %4064 = vmatpush.msra.mxu0 %v2835
    %4065 = vmatpush.msra.mxu0 %v2828
    %4066 = vmatpush.msra.mxu0 %v2821
    %4067 = vmatpush.msra.mxu0 %v2814
    %4068 = vmatpush.msra.mxu0 %v2807
    %4069 = vmatpush.msra.mxu0 %v2800
    %4070 = vmatpush.msra.mxu0 %v2793
    %4071 = vmatpush.msra.mxu0 %v2786
    %4072 = vmatpush.msra.mxu0 %v2779
    %4073 = vmatpush.msra.mxu0 %v2772
    %4074 = vmatpush.msra.mxu0 %v2765
    %4075 = vmatpush.msra.mxu0 %v2758
    %4076 = vmatpush.msra.mxu0 %v2751
    %4077 = vmatmul.f32.gmra.mxu0 %v2279
    %v4078 = vpop.f32.mrf.mxu0
    %v4079 = vadd.f32 %v4056, %v4078
    %4080 = vmatmul.f32.gmra.mxu0 %v2280
    %v4081 = vpop.f32.mrf.mxu0
    %v4082 = vadd.f32 %v4059, %v4081
    %4083 = vdwg.mxu0
    %4084 = vmatpush.msra.mxu0 %v2968
    %4085 = vmatpush.msra.mxu0 %v2961
    %4086 = vmatpush.msra.mxu0 %v2954
    %4087 = vmatpush.msra.mxu0 %v2947
    %4088 = vmatpush.msra.mxu0 %v2940
    %4089 = vmatpush.msra.mxu0 %v2933
    %4090 = vmatpush.msra.mxu0 %v2926
    %4091 = vmatpush.msra.mxu0 %v2919
    %4092 = vmatpush.msra.mxu0 %v2912
    %4093 = vmatpush.msra.mxu0 %v2905
    %4094 = vmatpush.msra.mxu0 %v2898
    %4095 = vmatpush.msra.mxu0 %v2891
    %4096 = vmatpush.msra.mxu0 %v2884
    %4097 = vmatpush.msra.mxu0 %v2877
    %4098 = vmatpush.msra.mxu0 %v2870
    %4099 = vmatpush.msra.mxu0 %v2863
    %4100 = vmatmul.f32.gmra.mxu0 %v2293
    %v4101 = vpop.f32.mrf.mxu0
    %v4102 = vadd.f32 %v4079, %v4101
    %4103 = vmatmul.f32.gmra.mxu0 %v2294
    %v4104 = vpop.f32.mrf.mxu0
    %v4105 = vadd.f32 %v4082, %v4104
    %4106 = vdwg.mxu0
    %4107 = vmatpush.msra.mxu0 0.0
    %4108 = vmatpush.msra.mxu0 0.0
    %4109 = vmatpush.msra.mxu0 0.0
    %4110 = vmatpush.msra.mxu0 0.0
    %4111 = vmatpush.msra.mxu0 0.0
    %4112 = vmatpush.msra.mxu0 0.0
    %4113 = vmatpush.msra.mxu0 0.0
    %4114 = vmatpush.msra.mxu0 0.0
    %4115 = vmatpush.msra.mxu0 0.0
    %4116 = vmatpush.msra.mxu0 0.0
    %4117 = vmatpush.msra.mxu0 0.0
    %4118 = vmatpush.msra.mxu0 0.0
    %4119 = vmatpush.msra.mxu0 %v2996
    %4120 = vmatpush.msra.mxu0 %v2989
    %4121 = vmatpush.msra.mxu0 %v2982
    %4122 = vmatpush.msra.mxu0 %v2975
    %4123 = vmatmul.f32.gmra.mxu0 %v2998
    %v4124 = vpop.f32.mrf.mxu0
    %v4125 = vadd.f32 %v4102, %v4124
    %4126 = vmatmul.f32.gmra.mxu0 %v3001
    %v4127 = vpop.f32.mrf.mxu0
    %v4128 = vadd.f32 %v4105, %v4127
    %4129 = vdwg.mxu0
    %4132 = vrot.lane.b32.xlu0 %v3159, 112
    %v4133 = vpop.permute.xlu0 %4132
    %4134 = vrot.lane.b32.xlu0 %v3162, 112
    %v4135 = vpop.permute.xlu0 %4134
    %v4138 = vmax.f32 %v3159, %v4133
    %v4139 = vmax.f32 %v3162, %v4135
    %4142 = vrot.lane.b32.xlu0 %v3320, 112
    %v4143 = vpop.permute.xlu0 %4142
    %4144 = vrot.lane.b32.xlu0 %v3323, 112
    %v4145 = vpop.permute.xlu0 %4144
    %v4148 = vmax.f32 %v3320, %v4143
    %v4149 = vmax.f32 %v3323, %v4145
    %4152 = vrot.lane.b32.xlu0 %v4138, 96
    %v4153 = vpop.permute.xlu0 %4152
    %4154 = vrot.lane.b32.xlu0 %v4139, 96
    %v4155 = vpop.permute.xlu0 %4154
    %v4158 = vmax.f32 %v4138, %v4153
    %v4159 = vmax.f32 %v4139, %v4155
    %4162 = vrot.lane.b32.xlu0 %v4148, 96
    %v4163 = vpop.permute.xlu0 %4162
    %4164 = vrot.lane.b32.xlu0 %v4149, 96
    %v4165 = vpop.permute.xlu0 %4164
    %v4168 = vmax.f32 %v4148, %v4163
    %v4169 = vmax.f32 %v4149, %v4165
    %4170 = vrot.lane.b32.xlu0 %v3320, 96
    %v4171 = vpop.permute.xlu0 %4170
    %4172 = vrot.lane.b32.xlu0 %v3323, 96
    %v4173 = vpop.permute.xlu0 %4172
    %v4176 = vmax.f32 %v4148, %v4171
    %v4177 = vmax.f32 %v4149, %v4173
    %4180 = vrot.lane.b32.xlu0 %v4158, 64
    %v4181 = vpop.permute.xlu0 %4180
    %4182 = vrot.lane.b32.xlu0 %v4159, 64
    %v4183 = vpop.permute.xlu0 %4182
    %v4186 = vmax.f32 %v4158, %v4181
    %v4187 = vmax.f32 %v4159, %v4183
    %4190 = vrot.lane.b32.xlu0 %v4176, 64
    %v4191 = vpop.permute.xlu0 %4190
    %4192 = vrot.lane.b32.xlu0 %v4177, 64
    %v4193 = vpop.permute.xlu0 %4192
    %v4196 = vmax.f32 %v4168, %v4191
    %v4197 = vmax.f32 %v4169, %v4193
    %v4198 = vmax.f32 %v4186, %v4196
    %v4199 = vmax.f32 %v4187, %v4197
    %4202 = vrot.lane.b32.xlu0 %v3481, 112
    %v4203 = vpop.permute.xlu0 %4202
    %4204 = vrot.lane.b32.xlu0 %v3484, 112
    %v4205 = vpop.permute.xlu0 %4204
    %v4208 = vmax.f32 %v3320, %v4203
    %v4209 = vmax.f32 %v3323, %v4205
    %v4210 = vmax.f32 %v3481, %v4203
    %v4211 = vmax.f32 %v3484, %v4205
    %4214 = vrot.lane.b32.xlu0 %v3642, 112
    %v4215 = vpop.permute.xlu0 %4214
    %4216 = vrot.lane.b32.xlu0 %v3645, 112
    %v4217 = vpop.permute.xlu0 %4216
    %v4220 = vmax.f32 %v3481, %v4215
    %v4221 = vmax.f32 %v3484, %v4217
    %v4222 = vmax.f32 %v3642, %v4215
    %v4223 = vmax.f32 %v3645, %v4217
    %4226 = vrot.lane.b32.xlu0 %v4210, 96
    %v4227 = vpop.permute.xlu0 %4226
    %4228 = vrot.lane.b32.xlu0 %v4211, 96
    %v4229 = vpop.permute.xlu0 %4228
    %v4232 = vmax.f32 %v4208, %v4227
    %v4233 = vmax.f32 %v4209, %v4229
    %v4234 = vmax.f32 %v4210, %v4227
    %v4235 = vmax.f32 %v4211, %v4229
    %4238 = vrot.lane.b32.xlu0 %v4222, 96
    %v4239 = vpop.permute.xlu0 %4238
    %4240 = vrot.lane.b32.xlu0 %v4223, 96
    %v4241 = vpop.permute.xlu0 %4240
    %v4244 = vmax.f32 %v4220, %v4239
    %v4245 = vmax.f32 %v4221, %v4241
    %4248 = vrot.lane.b32.xlu0 %v4234, 64
    %v4249 = vpop.permute.xlu0 %4248
    %4250 = vrot.lane.b32.xlu0 %v4235, 64
    %v4251 = vpop.permute.xlu0 %4250
    %v4254 = vmax.f32 %v4232, %v4249
    %v4255 = vmax.f32 %v4233, %v4251
    %4256 = vrot.lane.b32.xlu0 %v4222, 64
    %v4257 = vpop.permute.xlu0 %4256
    %4258 = vrot.lane.b32.xlu0 %v4223, 64
    %v4259 = vpop.permute.xlu0 %4258
    %v4262 = vmax.f32 %v4244, %v4257
    %v4263 = vmax.f32 %v4245, %v4259
    %v4264 = vmax.f32 %v4254, %v4262
    %v4265 = vmax.f32 %v4255, %v4263
    %4268 = vrot.lane.b32.xlu0 %v3642, 96
    %v4269 = vpop.permute.xlu0 %4268
    %4270 = vrot.lane.b32.xlu0 %v3803, 96
    %v4271 = vpop.permute.xlu0 %4270
    %4272 = vrot.lane.b32.xlu0 %v3645, 96
    %v4273 = vpop.permute.xlu0 %4272
    %4274 = vrot.lane.b32.xlu0 %v3806, 96
    %v4275 = vpop.permute.xlu0 %4274
    %v4276 = vsel %vm2219, %v4269, %v4271
    %v4277 = vsel %vm2219, %v4273, %v4275
    %v4280 = vmax.f32 %v3642, %v4276
    %v4281 = vmax.f32 %v3645, %v4277
    %v4284 = vmax.f32 %v3803, %v4271
    %v4285 = vmax.f32 %v3806, %v4275
    %4288 = vrot.lane.b32.xlu0 %v3964, 96
    %v4289 = vpop.permute.xlu0 %4288
    %4290 = vrot.lane.b32.xlu0 %v3967, 96
    %v4291 = vpop.permute.xlu0 %4290
    %v4292 = vsel %vm2219, %v4271, %v4289
    %v4293 = vsel %vm2219, %v4275, %v4291
    %v4296 = vmax.f32 %v3803, %v4292
    %v4297 = vmax.f32 %v3806, %v4293
    %v4300 = vmax.f32 %v3964, %v4289
    %v4301 = vmax.f32 %v3967, %v4291
    %4304 = vrot.lane.b32.xlu0 %v4125, 96
    %v4305 = vpop.permute.xlu0 %4304
    %4306 = vrot.lane.b32.xlu0 %v4128, 96
    %v4307 = vpop.permute.xlu0 %4306
    %v4308 = vsel %vm2219, %v4289, %v4305
    %v4309 = vsel %vm2219, %v4291, %v4307
    %v4312 = vmax.f32 %v3964, %v4308
    %v4313 = vmax.f32 %v3967, %v4309
    %v4316 = vmax.f32 %v4125, %v4305
    %v4317 = vmax.f32 %v4128, %v4307
    %4320 = vrot.lane.b32.xlu0 %v4284, 64
    %v4321 = vpop.permute.xlu0 %4320
    %4322 = vrot.lane.b32.xlu0 %v4285, 64
    %v4323 = vpop.permute.xlu0 %4322
    %v4326 = vmax.f32 %v4280, %v4321
    %v4327 = vmax.f32 %v4281, %v4323
    %4330 = vrot.lane.b32.xlu0 %v4300, 64
    %v4331 = vpop.permute.xlu0 %4330
    %4332 = vrot.lane.b32.xlu0 %v4301, 64
    %v4333 = vpop.permute.xlu0 %4332
    %v4336 = vmax.f32 %v4296, %v4331
    %v4337 = vmax.f32 %v4297, %v4333
    %4340 = vrot.lane.b32.xlu0 %v4316, 64
    %v4341 = vpop.permute.xlu0 %4340
    %4342 = vrot.lane.b32.xlu0 %v4317, 64
    %v4343 = vpop.permute.xlu0 %4342
    %v4346 = vmax.f32 %v4312, %v4341
    %v4347 = vmax.f32 %v4313, %v4343
    %v4348 = vmax.f32 %v4326, %v4336
    %v4349 = vmax.f32 %v4327, %v4337
    %v4350 = vmax.f32 %v4346, %v4125
    %v4351 = vmax.f32 %v4347, %v4128
    %v4352 = vmax.f32 %v4348, %v4350
    %v4353 = vmax.f32 %v4349, %v4351
    %4356 = vrot.lane.b32.xlu0 %v4264, 32
    %v4357 = vpop.permute.xlu0 %4356
    %4358 = vrot.lane.b32.xlu0 %v4265, 32
    %v4359 = vpop.permute.xlu0 %4358
    %4364 = vrot.lane.b32.xlu0 %v4352, 80
    %v4365 = vpop.permute.xlu0 %4364
    %4366 = vrot.lane.b32.xlu0 %v4353, 80
    %v4367 = vpop.permute.xlu0 %4366
    %v4370 = vsel %vm2204, %v4198, %v4357
    %v4371 = vsel %vm2204, %v4199, %v4359
    %v4372 = vsel %vm2207, %v4370, %v4365
    %v4373 = vsel %vm2207, %v4371, %v4367
    %v4374 = vsel %vm2213, %v4372, 0.0
    %v4375 = vsel %vm2213, %v4373, 0.0
    %v4376 = vld [vmem:[#allocation6] sm:$0x1]
    %v4378 = vperm.slane %v4376, 0
    %v4380 = vadd.f32 %v4374, %v4378
    %v4381 = vadd.f32 %v4375, %v4378
    %4382 = vst [vmem:[%s3] sm:$0xff] %v4380
    %4383 = vst [vmem:[%s3 + $0x8] sm:$0xff] %v4381
    // Predicated region
    $region26: #{_lambda_.6} parent=1 // pred_check
      _
    $region27: #{_lambda_.6} parent=1 // pred_check_branch
      %4385 = sbr.rel (0) target = $region29
    $region28: #{_lambda_.6} parent=1 // pred_region
      _
    $region29: #{_lambda_.6} parent=1 // pred_fallthru
      _
    // Predicated region
    $region30: #{_lambda_.6} parent=1 // pred_check
      _
    $region31: #{_lambda_.6} parent=1 // pred_check_branch
      %4387 = sbr.rel (0) target = $region33
    $region32: #{_lambda_.6} parent=1 // pred_region
      _
    $region33: #{_lambda_.6} parent=1 // pred_fallthru
      _
    %4388 = vsyncpa [#allocation3], 1
    %4389 = vsyncpa [#allocation5], 1

</llo_original>
